<compile_context>
chip_gen: v6e
topology: v6e:2x2x1
jax: 0.10.0
libtpu: 0.0.40
codegen_flags: <defaults>
</compile_context>

<pallas_src>
import numpy as np
import jax
import jax.numpy as jnp
from jax.experimental import pallas as pl
from jax.experimental.pallas import tpu as pltpu


# ----------------------------------------------------------------------------
# conv tap row/col offsets (trace-time constants)
# ----------------------------------------------------------------------------
_D3 = (-1, 0, 1)                      # conv_k3 : 3x3, dil 1, pad 1
_D5 = (-4, -2, 0, 2, 4)               # conv_k5 : 5x5, dil 2, pad 4
_D7 = (-9, -6, -3, 0, 3, 6, 9)        # conv_K7 : 7x7, dil 3, pad 9
_DC = (-3, -2, -1, 0, 1, 2, 3)        # Channel_Integration : 7x7, pad 3

_MASK_GROUPS = (("r3", _D3, True), ("c3", _D3, False),
                ("r5", _D5, True), ("c5", _D5, False),
                ("r7", _D7, True), ("c7", _D7, False),
                ("rci", _DC, True), ("cci", _DC, False))


def _build_masks(H, W, L):
    """Row/column boundary masks, stacked into one small (44, L) f32 array."""
    HW = H * W
    p = np.arange(L)
    h = p // W
    w = p % W
    in_img = p < HW
    rows, base = [], {}
    for name, offs, is_row in _MASK_GROUPS:
        base[name] = len(rows)
        for d in offs:
            ok = ((h + d >= 0) & (h + d < H)) if is_row else ((w + d >= 0) & (w + d < W))
            rows.append((ok & in_img).astype(np.float32))
    return jnp.asarray(np.stack(rows, axis=0)), base


# ----------------------------------------------------------------------------
# in-kernel helpers
# ----------------------------------------------------------------------------
def _tree_sum(terms):
    """Pairwise (tree) sum -> short dependence chains, more VALU ILP."""
    ts = list(terms)
    while len(ts) > 1:
        nxt = [a + b for a, b in zip(ts[0::2], ts[1::2])]
        if len(ts) % 2:
            nxt.append(ts[-1])
        ts = nxt
    return ts[0]


def _erf_approx(x):
    # Abramowitz & Stegun 7.1.26 (exp/recip on EUP, mul/add/where on VPU)
    a1, a2, a3, a4, a5 = 0.254829592, -0.284496736, 1.421413741, -1.453152027, 1.061405429
    pc = 0.3275911
    s = jnp.where(x >= 0.0, 1.0, -1.0)
    ax = jnp.abs(x)
    t = pl.reciprocal(1.0 + pc * ax, approx=False)
    poly = ((((a5 * t + a4) * t + a3) * t + a2) * t + a1) * t
    return s * (1.0 - poly * jnp.exp(-ax * ax))


def _gelu_exact(x):
    # nn.GELU() default = exact (erf-based) GELU.
    return 0.5 * x * (1.0 + _erf_approx(x * 0.7071067811865476))


# ----------------------------------------------------------------------------
# fused kernel
# ----------------------------------------------------------------------------
def _make_kernel(W, L, base):
    f32 = jnp.float32

    def shift_mask(x, d, stride, m_ref, row):
        """Zero-padded shift by d*stride lanes along the flat per-image axis."""
        if d == 0:
            return x
        r = pltpu.roll(x, shift=(-d * stride) % L, axis=1)
        return r * m_ref[row:row + 1, :]

    def dw_conv(y, w_ref, b_ref, offs, m_ref, rbase, cbase):
        """Depthwise KxK conv, row/col factorized: 2K rolls instead of K^2."""
        K = len(offs)
        rows = [shift_mask(y, dh, W, m_ref, rbase + i) for i, dh in enumerate(offs)]
        parts = []
        for j, dw in enumerate(offs):
            s = _tree_sum([w_ref[:, i * K + j:i * K + j + 1] * rows[i] for i in range(K)])
            parts.append(shift_mask(s, dw, 1, m_ref, cbase + j))
        return _tree_sum(parts) + b_ref[...]

    def dense3(y, w3_ref, b_ref, m_ref, rbase, cbase):
        """Dense 3x3 as 9 accumulating (C,C)@(C,L) MXU matmuls (no im2col slab)."""
        rows = [shift_mask(y, dh, W, m_ref, rbase + i) for i, dh in enumerate(_D3)]
        parts = []
        for j, dw in enumerate(_D3):
            s = _tree_sum([jnp.dot(w3_ref[i * 3 + j], rows[i],
                                   preferred_element_type=f32) for i in range(3)])
            parts.append(shift_mask(s, dw, 1, m_ref, cbase + j))
        return _tree_sum(parts) + b_ref[...]

    def chan_integration(atten, wci_ref, bci_ref, m_ref, rbase, cbase):
        """7x7 (2->4) conv: 7 row-rolls -> one (28,14)@(14,L) matmul -> 7 col-rolls."""
        rows = [shift_mask(atten, dh, W, m_ref, rbase + i) for i, dh in enumerate(_DC)]
        acat = jnp.concatenate(rows, axis=0)                              # (14, L)
        sall = jnp.dot(wci_ref[...], acat, preferred_element_type=f32)    # (28, L)
        parts = []
        for j, dw in enumerate(_DC):
            parts.append(shift_mask(sall[4 * j:4 * j + 4, :], dw, 1, m_ref, cbase + j))
        return _tree_sum(parts) + bci_ref[...]

    def kernel(x_ref, w1_ref, b1_ref, wk1_ref, bk1_ref, w3_ref, bk3_ref,
               wk5_ref, bk5_ref, wk7_ref, bk7_ref, wsq_ref, bsq_ref,
               wci_ref, bci_ref, wmix_ref, bmix_ref, w2_ref, b2_ref,
               m_ref, out_ref):
        # ---- CISB.conv1 (1x1) + GELU ------------------------------------
        y = _gelu_exact(jnp.dot(w1_ref[...], x_ref[...],
                                preferred_element_type=f32) + b1_ref[...])

        # ---- branch convs (largest K first keeps peak vreg pressure low) --
        f4 = dw_conv(y, wk7_ref, bk7_ref, _D7, m_ref, base["r7"], base["c7"])
        f3 = dw_conv(y, wk5_ref, bk5_ref, _D5, m_ref, base["r5"], base["c5"])
        f2 = dense3(y, w3_ref, bk3_ref, m_ref, base["r3"], base["c3"])
        f1 = wk1_ref[...] * y + bk1_ref[...]

        # ---- conv1..conv4 (1x1, dim->dim//4) as ONE block-diag matmul -----
        fcat = jnp.concatenate([f1, f2, f3, f4], axis=0)                  # (4C, L)
        cis = jnp.dot(wsq_ref[...], fcat, preferred_element_type=f32) + bsq_ref[...]
        nsq = cis.shape[0]
        avg = jnp.sum(cis, axis=0, keepdims=True) * (1.0 / nsq)
        mx = jnp.max(cis, axis=0, keepdims=True)
        atten = jnp.concatenate([avg, mx], axis=0)                        # (2, L)

        # ---- Channel_Integration 7x7 (2->4) on MXU + sigmoid ---------------
        sig = jax.nn.sigmoid(chan_integration(atten, wci_ref, bci_ref,
                                              m_ref, base["rci"], base["cci"]))

        # ---- gating, inner 1x1 (16->dim), x*attn, CISB.conv2 ----------------
        attn = (f1 * sig[0:1, :] + f2 * sig[1:2, :]
                + f3 * sig[2:3, :] + f4 * sig[3:4, :])
        attn = jnp.dot(wmix_ref[...], attn, preferred_element_type=f32) + bmix_ref[...]
        gci = y * attn                                                    # x * attn
        out_ref[...] = jnp.dot(w2_ref[...], gci,
                               preferred_element_type=f32) + b2_ref[...]

    return kernel


# ----------------------------------------------------------------------------
# wrapper
# ----------------------------------------------------------------------------
def _full(shape):
    n = len(shape)
    return pl.BlockSpec(shape, lambda b, _n=n: (0,) * _n)


def cisb_forward(x_nchw, p):
    B, C, H, W = x_nchw.shape
    HW = H * W
    Lp = ((HW + 127) // 128) * 128          # lane-dense (unmasked vst) last dim
    x = x_nchw.reshape(B, C, HW)
    if Lp != HW:
        x = jnp.pad(x, ((0, 0), (0, 0), (0, Lp - HW)))

    masks, base = _build_masks(H, W, Lp)

    weights = [p["w1"], p["b1"], p["wk1"], p["bk1"], p["w3t"], p["bk3"],
               p["wk5"], p["bk5"], p["wk7"], p["bk7"], p["wsq_bd"], p["bsq_cat"],
               p["wci_rc"], p["bci"], p["wmix"], p["bmix"], p["w2"], p["b2"]]

    kernel = _make_kernel(W, Lp, base)
    # one image per grid step; constant-index weight/mask blocks are fetched once.
    img_spec = pl.BlockSpec((None, C, Lp), lambda b: (b, 0, 0))

    out = pl.pallas_call(
        kernel,
        out_shape=jax.ShapeDtypeStruct((B, C, Lp), jnp.float32),
        grid=(B,),
        in_specs=[img_spec] + [_full(a.shape) for a in weights] + [_full(masks.shape)],
        out_specs=img_spec,
        compiler_params=pltpu.CompilerParams(dimension_semantics=("parallel",)),
    )(x, *weights, masks)

    if Lp != HW:
        out = out[:, :, :HW]
    return out.reshape(B, C, H, W)


# ----------------------------------------------------------------------------
# deterministic parameter init (PyTorch layouts -> kernel layouts)
# ----------------------------------------------------------------------------
def init_params(key, d_model):
    C = d_model
    assert C == 16, "inner nn.Conv2d(16, dim, 1) requires d_model == 16"
    ks = jax.random.split(key, 18)

    def rnd(k, shape, scale=0.1):
        return (scale * jax.random.normal(k, shape)).astype(jnp.float32)

    w1 = rnd(ks[0], (C, C, 1, 1));      b1 = rnd(ks[1], (C,))
    wk1 = rnd(ks[2], (C, 1, 1, 1));     bk1 = rnd(ks[3], (C,))
    wk3 = rnd(ks[4], (C, C, 3, 3));     bk3 = rnd(ks[5], (C,))
    wk5 = rnd(ks[6], (C, 1, 5, 5));     bk5 = rnd(ks[7], (C,))
    wk7 = rnd(ks[8], (C, 1, 7, 7));     bk7 = rnd(ks[9], (C,))
    wsq = rnd(ks[10], (4, C // 4, C, 1, 1)); bsq = rnd(ks[11], (4, C // 4))
    wci = rnd(ks[12], (4, 2, 7, 7));    bci = rnd(ks[13], (4,))
    wmix = rnd(ks[14], (C, 16, 1, 1));  bmix = rnd(ks[15], (C,))
    w2 = rnd(ks[16], (C, C, 1, 1));     b2 = rnd(ks[17], (C,))

    # block-diagonal squeeze weight: rows g*(C//4)+j, cols g*C+i
    q = C // 4
    wsq_bd = jnp.zeros((4 * q, 4 * C), jnp.float32)
    for g in range(4):
        wsq_bd = wsq_bd.at[g * q:(g + 1) * q, g * C:(g + 1) * C].set(wsq[g, :, :, 0, 0])

    return dict(
        w1=w1.reshape(C, C), b1=b1.reshape(C, 1),
        wk1=wk1.reshape(C, 1), bk1=bk1.reshape(C, 1),
        # dense 3x3: per-tap (C,C) matrices, tap = kh*3 + kw
        w3t=jnp.transpose(wk3, (2, 3, 0, 1)).reshape(9, C, C), bk3=bk3.reshape(C, 1),
        # depthwise: (C,1,K,K) -> (C, K*K), tap = kh*K + kw
        wk5=wk5.reshape(C, 25), bk5=bk5.reshape(C, 1),
        wk7=wk7.reshape(C, 49), bk7=bk7.reshape(C, 1),
        wsq_bd=wsq_bd, bsq_cat=bsq.reshape(4 * q, 1),
        # Channel_Integration row/col-factorized weight:
        #   row = kw*4 + out_channel, col = kh*2 + in_channel(avg/max)
        wci_rc=jnp.transpose(wci, (3, 0, 2, 1)).reshape(4 * 7, 2 * 7),
        bci=bci.reshape(4, 1),
        wmix=wmix.reshape(C, 16), bmix=bmix.reshape(C, 1),
        w2=w2.reshape(C, C), b2=b2.reshape(C, 1),
    )


if __name__ == "__main__":
    d_model = 16          # forced by the module's nn.Conv2d(16, dim, 1)
    B, H, W = 2, 16, 16
    key = jax.random.PRNGKey(0)
    kx, kp = jax.random.split(key)
    x = jax.random.normal(kx, (B, d_model, H, W), dtype=jnp.float32)
    params = init_params(kp, d_model)

    out = jax.jit(cisb_forward)(x, params)
    jax.block_until_ready(out)
    assert out.shape == (B, d_model, H, W) and out.dtype == jnp.float32
    print("KERNEL_OK")
</pallas_src>

<mosaic_0001>
module attributes {stable_mosaic.version = 11 : i64} {
  func.func @kernel(%arg0: i32, %arg1: memref<1x16x256xf32, #tpu.memory_space<vmem>>, %arg2: memref<16x16xf32, #tpu.memory_space<vmem>>, %arg3: memref<16x1xf32, #tpu.memory_space<vmem>>, %arg4: memref<16x1xf32, #tpu.memory_space<vmem>>, %arg5: memref<16x1xf32, #tpu.memory_space<vmem>>, %arg6: memref<9x16x16xf32, #tpu.memory_space<vmem>>, %arg7: memref<16x1xf32, #tpu.memory_space<vmem>>, %arg8: memref<16x25xf32, #tpu.memory_space<vmem>>, %arg9: memref<16x1xf32, #tpu.memory_space<vmem>>, %arg10: memref<16x49xf32, #tpu.memory_space<vmem>>, %arg11: memref<16x1xf32, #tpu.memory_space<vmem>>, %arg12: memref<16x64xf32, #tpu.memory_space<vmem>>, %arg13: memref<16x1xf32, #tpu.memory_space<vmem>>, %arg14: memref<28x14xf32, #tpu.memory_space<vmem>>, %arg15: memref<4x1xf32, #tpu.memory_space<vmem>>, %arg16: memref<16x16xf32, #tpu.memory_space<vmem>>, %arg17: memref<16x1xf32, #tpu.memory_space<vmem>>, %arg18: memref<16x16xf32, #tpu.memory_space<vmem>>, %arg19: memref<16x1xf32, #tpu.memory_space<vmem>>, %arg20: memref<44x256xf32, #tpu.memory_space<vmem>>, %arg21: memref<1x16x256xf32, #tpu.memory_space<vmem>>) attributes {dimension_semantics = [#tpu.dimension_semantics<parallel>], iteration_bounds = array<i64: 2>, scalar_prefetch = 0 : i64, scratch_operands = 0 : i64, tpu.core_type = #tpu.core_type<tc>, window_params = [{transform_indices = @transform_0, window_bounds = array<i64: 1, 16, 256>}, {pipeline_mode = #tpu.pipeline_mode<synchronous>, transform_indices = @transform_1, window_bounds = array<i64: 16, 16>}, {pipeline_mode = #tpu.pipeline_mode<synchronous>, transform_indices = @transform_2, window_bounds = array<i64: 16, 1>}, {pipeline_mode = #tpu.pipeline_mode<synchronous>, transform_indices = @transform_3, window_bounds = array<i64: 16, 1>}, {pipeline_mode = #tpu.pipeline_mode<synchronous>, transform_indices = @transform_4, window_bounds = array<i64: 16, 1>}, {pipeline_mode = #tpu.pipeline_mode<synchronous>, transform_indices = @transform_5, window_bounds = array<i64: 9, 16, 16>}, {pipeline_mode = #tpu.pipeline_mode<synchronous>, transform_indices = @transform_6, window_bounds = array<i64: 16, 1>}, {pipeline_mode = #tpu.pipeline_mode<synchronous>, transform_indices = @transform_7, window_bounds = array<i64: 16, 25>}, {pipeline_mode = #tpu.pipeline_mode<synchronous>, transform_indices = @transform_8, window_bounds = array<i64: 16, 1>}, {pipeline_mode = #tpu.pipeline_mode<synchronous>, transform_indices = @transform_9, window_bounds = array<i64: 16, 49>}, {pipeline_mode = #tpu.pipeline_mode<synchronous>, transform_indices = @transform_10, window_bounds = array<i64: 16, 1>}, {pipeline_mode = #tpu.pipeline_mode<synchronous>, transform_indices = @transform_11, window_bounds = array<i64: 16, 64>}, {pipeline_mode = #tpu.pipeline_mode<synchronous>, transform_indices = @transform_12, window_bounds = array<i64: 16, 1>}, {pipeline_mode = #tpu.pipeline_mode<synchronous>, transform_indices = @transform_13, window_bounds = array<i64: 28, 14>}, {pipeline_mode = #tpu.pipeline_mode<synchronous>, transform_indices = @transform_14, window_bounds = array<i64: 4, 1>}, {pipeline_mode = #tpu.pipeline_mode<synchronous>, transform_indices = @transform_15, window_bounds = array<i64: 16, 16>}, {pipeline_mode = #tpu.pipeline_mode<synchronous>, transform_indices = @transform_16, window_bounds = array<i64: 16, 1>}, {pipeline_mode = #tpu.pipeline_mode<synchronous>, transform_indices = @transform_17, window_bounds = array<i64: 16, 16>}, {pipeline_mode = #tpu.pipeline_mode<synchronous>, transform_indices = @transform_18, window_bounds = array<i64: 16, 1>}, {pipeline_mode = #tpu.pipeline_mode<synchronous>, transform_indices = @transform_19, window_bounds = array<i64: 44, 256>}, {transform_indices = @transform_20, window_bounds = array<i64: 1, 16, 256>}]} {
    %c0 = arith.constant 0 : index
    %c0_0 = arith.constant 0 : index
    %0 = vector.load %arg2[%c0, %c0_0] : memref<16x16xf32, #tpu.memory_space<vmem>>, vector<16x16xf32>
    %c0_1 = arith.constant 0 : index
    %c0_2 = arith.constant 0 : index
    %c0_3 = arith.constant 0 : index
    %1 = vector.load %arg1[%c0_1, %c0_2, %c0_3] : memref<1x16x256xf32, #tpu.memory_space<vmem>>, vector<1x16x256xf32>
    %2 = vector.shape_cast %1 : vector<1x16x256xf32> to vector<16x256xf32>
    %cst = arith.constant dense<0.000000e+00> : vector<16x256xf32>
    %3 = tpu.matmul %0, %2, %cst {dimension_numbers = #tpu.dot_dimension_numbers<[1], [0], [0], [1], [0, 0, 1, 1], [], []>} : vector<16x16xf32>, vector<16x256xf32>, vector<16x256xf32> -> vector<16x256xf32>
    %c0_4 = arith.constant 0 : index
    %c0_5 = arith.constant 0 : index
    %4 = vector.load %arg3[%c0_4, %c0_5] : memref<16x1xf32, #tpu.memory_space<vmem>>, vector<16x1xf32>
    %5 = vector.broadcast %4 : vector<16x1xf32> to vector<16x256xf32>
    %6 = arith.addf %3, %5 : vector<16x256xf32>
    %cst_6 = arith.constant 5.000000e-01 : f32
    %7 = vector.broadcast %cst_6 : f32 to vector<16x256xf32>
    %8 = arith.mulf %7, %6 : vector<16x256xf32>
    %cst_7 = arith.constant 0.707106769 : f32
    %9 = vector.broadcast %cst_7 : f32 to vector<16x256xf32>
    %10 = arith.mulf %6, %9 : vector<16x256xf32>
    %cst_8 = arith.constant 0.000000e+00 : f32
    %11 = vector.broadcast %cst_8 : f32 to vector<16x256xf32>
    %12 = arith.cmpf oge, %10, %11 : vector<16x256xf32>
    %cst_9 = arith.constant 1.000000e+00 : f32
    %cst_10 = arith.constant -1.000000e+00 : f32
    %13 = vector.broadcast %cst_9 : f32 to vector<16x256xf32>
    %14 = vector.broadcast %cst_10 : f32 to vector<16x256xf32>
    %15 = arith.select %12, %13, %14 : vector<16x256xi1>, vector<16x256xf32>
    %16 = math.absf %10 : vector<16x256xf32>
    %cst_11 = arith.constant 0.327591091 : f32
    %17 = vector.broadcast %cst_11 : f32 to vector<16x256xf32>
    %18 = arith.mulf %17, %16 : vector<16x256xf32>
    %cst_12 = arith.constant 1.000000e+00 : f32
    %19 = vector.broadcast %cst_12 : f32 to vector<16x256xf32>
    %20 = arith.addf %19, %18 : vector<16x256xf32>
    %21 = tpu.reciprocal %20 : vector<16x256xf32> -> vector<16x256xf32>
    %cst_13 = arith.constant 1.06140542 : f32
    %22 = vector.broadcast %cst_13 : f32 to vector<16x256xf32>
    %23 = arith.mulf %22, %21 : vector<16x256xf32>
    %cst_14 = arith.constant -1.45315206 : f32
    %24 = vector.broadcast %cst_14 : f32 to vector<16x256xf32>
    %25 = arith.addf %23, %24 : vector<16x256xf32>
    %26 = arith.mulf %25, %21 : vector<16x256xf32>
    %cst_15 = arith.constant 1.42141378 : f32
    %27 = vector.broadcast %cst_15 : f32 to vector<16x256xf32>
    %28 = arith.addf %26, %27 : vector<16x256xf32>
    %29 = arith.mulf %28, %21 : vector<16x256xf32>
    %cst_16 = arith.constant -0.284496725 : f32
    %30 = vector.broadcast %cst_16 : f32 to vector<16x256xf32>
    %31 = arith.addf %29, %30 : vector<16x256xf32>
    %32 = arith.mulf %31, %21 : vector<16x256xf32>
    %cst_17 = arith.constant 0.254829586 : f32
    %33 = vector.broadcast %cst_17 : f32 to vector<16x256xf32>
    %34 = arith.addf %32, %33 : vector<16x256xf32>
    %35 = arith.mulf %34, %21 : vector<16x256xf32>
    %cst_18 = arith.constant 0.000000e+00 : f32
    %36 = vector.broadcast %cst_18 : f32 to vector<16x256xf32>
    %37 = arith.subf %36, %16 : vector<16x256xf32>
    %38 = arith.mulf %37, %16 : vector<16x256xf32>
    %39 = math.exp %38 : vector<16x256xf32>
    %40 = arith.mulf %35, %39 : vector<16x256xf32>
    %cst_19 = arith.constant 1.000000e+00 : f32
    %41 = vector.broadcast %cst_19 : f32 to vector<16x256xf32>
    %42 = arith.subf %41, %40 : vector<16x256xf32>
    %43 = arith.mulf %15, %42 : vector<16x256xf32>
    %cst_20 = arith.constant 1.000000e+00 : f32
    %44 = vector.broadcast %cst_20 : f32 to vector<16x256xf32>
    %45 = arith.addf %44, %43 : vector<16x256xf32>
    %46 = arith.mulf %8, %45 : vector<16x256xf32>
    %c144_i32 = arith.constant 144 : i32
    %47 = tpu.dynamic_rotate %46 by %c144_i32 dim 1 : vector<16x256xf32>, i32 -> vector<16x256xf32>
    %c16 = arith.constant 16 : index
    %c0_21 = arith.constant 0 : index
    %48 = vector.load %arg20[%c16, %c0_21] : memref<44x256xf32, #tpu.memory_space<vmem>>, vector<1x256xf32>
    %49 = vector.broadcast %48 : vector<1x256xf32> to vector<16x256xf32>
    %50 = arith.mulf %47, %49 : vector<16x256xf32>
    %c96_i32 = arith.constant 96 : i32
    %51 = tpu.dynamic_rotate %46 by %c96_i32 dim 1 : vector<16x256xf32>, i32 -> vector<16x256xf32>
    %c17 = arith.constant 17 : index
    %c0_22 = arith.constant 0 : index
    %52 = vector.load %arg20[%c17, %c0_22] : memref<44x256xf32, #tpu.memory_space<vmem>>, vector<1x256xf32>
    %53 = vector.broadcast %52 : vector<1x256xf32> to vector<16x256xf32>
    %54 = arith.mulf %51, %53 : vector<16x256xf32>
    %c48_i32 = arith.constant 48 : i32
    %55 = tpu.dynamic_rotate %46 by %c48_i32 dim 1 : vector<16x256xf32>, i32 -> vector<16x256xf32>
    %c18 = arith.constant 18 : index
    %c0_23 = arith.constant 0 : index
    %56 = vector.load %arg20[%c18, %c0_23] : memref<44x256xf32, #tpu.memory_space<vmem>>, vector<1x256xf32>
    %57 = vector.broadcast %56 : vector<1x256xf32> to vector<16x256xf32>
    %58 = arith.mulf %55, %57 : vector<16x256xf32>
    %c208_i32 = arith.constant 208 : i32
    %59 = tpu.dynamic_rotate %46 by %c208_i32 dim 1 : vector<16x256xf32>, i32 -> vector<16x256xf32>
    %c20 = arith.constant 20 : index
    %c0_24 = arith.constant 0 : index
    %60 = vector.load %arg20[%c20, %c0_24] : memref<44x256xf32, #tpu.memory_space<vmem>>, vector<1x256xf32>
    %61 = vector.broadcast %60 : vector<1x256xf32> to vector<16x256xf32>
    %62 = arith.mulf %59, %61 : vector<16x256xf32>
    %c160_i32 = arith.constant 160 : i32
    %63 = tpu.dynamic_rotate %46 by %c160_i32 dim 1 : vector<16x256xf32>, i32 -> vector<16x256xf32>
    %c21 = arith.constant 21 : index
    %c0_25 = arith.constant 0 : index
    %64 = vector.load %arg20[%c21, %c0_25] : memref<44x256xf32, #tpu.memory_space<vmem>>, vector<1x256xf32>
    %65 = vector.broadcast %64 : vector<1x256xf32> to vector<16x256xf32>
    %66 = arith.mulf %63, %65 : vector<16x256xf32>
    %c112_i32 = arith.constant 112 : i32
    %67 = tpu.dynamic_rotate %46 by %c112_i32 dim 1 : vector<16x256xf32>, i32 -> vector<16x256xf32>
    %c22 = arith.constant 22 : index
    %c0_26 = arith.constant 0 : index
    %68 = vector.load %arg20[%c22, %c0_26] : memref<44x256xf32, #tpu.memory_space<vmem>>, vector<1x256xf32>
    %69 = vector.broadcast %68 : vector<1x256xf32> to vector<16x256xf32>
    %70 = arith.mulf %67, %69 : vector<16x256xf32>
    %c0_27 = arith.constant 0 : index
    %c0_28 = arith.constant 0 : index
    %71 = vector.load %arg10[%c0_27, %c0_28] : memref<16x49xf32, #tpu.memory_space<vmem>>, vector<16x1xf32>
    %72 = vector.broadcast %71 : vector<16x1xf32> to vector<16x256xf32>
    %73 = arith.mulf %72, %50 : vector<16x256xf32>
    %c0_29 = arith.constant 0 : index
    %c7 = arith.constant 7 : index
    %74 = vector.load %arg10[%c0_29, %c7] : memref<16x49xf32, #tpu.memory_space<vmem>>, vector<16x1xf32>
    %75 = vector.broadcast %74 : vector<16x1xf32> to vector<16x256xf32>
    %76 = arith.mulf %75, %54 : vector<16x256xf32>
    %c0_30 = arith.constant 0 : index
    %c14 = arith.constant 14 : index
    %77 = vector.load %arg10[%c0_30, %c14] : memref<16x49xf32, #tpu.memory_space<vmem>>, vector<16x1xf32>
    %78 = vector.broadcast %77 : vector<16x1xf32> to vector<16x256xf32>
    %79 = arith.mulf %78, %58 : vector<16x256xf32>
    %c0_31 = arith.constant 0 : index
    %c21_32 = arith.constant 21 : index
    %80 = vector.load %arg10[%c0_31, %c21_32] : memref<16x49xf32, #tpu.memory_space<vmem>>, vector<16x1xf32>
    %81 = vector.broadcast %80 : vector<16x1xf32> to vector<16x256xf32>
    %82 = arith.mulf %81, %46 : vector<16x256xf32>
    %c0_33 = arith.constant 0 : index
    %c28 = arith.constant 28 : index
    %83 = vector.load %arg10[%c0_33, %c28] : memref<16x49xf32, #tpu.memory_space<vmem>>, vector<16x1xf32>
    %84 = vector.broadcast %83 : vector<16x1xf32> to vector<16x256xf32>
    %85 = arith.mulf %84, %62 : vector<16x256xf32>
    %c0_34 = arith.constant 0 : index
    %c35 = arith.constant 35 : index
    %86 = vector.load %arg10[%c0_34, %c35] : memref<16x49xf32, #tpu.memory_space<vmem>>, vector<16x1xf32>
    %87 = vector.broadcast %86 : vector<16x1xf32> to vector<16x256xf32>
    %88 = arith.mulf %87, %66 : vector<16x256xf32>
    %c0_35 = arith.constant 0 : index
    %c42 = arith.constant 42 : index
    %89 = vector.load %arg10[%c0_35, %c42] : memref<16x49xf32, #tpu.memory_space<vmem>>, vector<16x1xf32>
    %90 = vector.broadcast %89 : vector<16x1xf32> to vector<16x256xf32>
    %91 = arith.mulf %90, %70 : vector<16x256xf32>
    %92 = arith.addf %73, %76 : vector<16x256xf32>
    %93 = arith.addf %79, %82 : vector<16x256xf32>
    %94 = arith.addf %85, %88 : vector<16x256xf32>
    %95 = arith.addf %92, %93 : vector<16x256xf32>
    %96 = arith.addf %94, %91 : vector<16x256xf32>
    %97 = arith.addf %95, %96 : vector<16x256xf32>
    %c9_i32 = arith.constant 9 : i32
    %98 = tpu.dynamic_rotate %97 by %c9_i32 dim 1 : vector<16x256xf32>, i32 -> vector<16x256xf32>
    %c23 = arith.constant 23 : index
    %c0_36 = arith.constant 0 : index
    %99 = vector.load %arg20[%c23, %c0_36] : memref<44x256xf32, #tpu.memory_space<vmem>>, vector<1x256xf32>
    %100 = vector.broadcast %99 : vector<1x256xf32> to vector<16x256xf32>
    %101 = arith.mulf %98, %100 : vector<16x256xf32>
    %c0_37 = arith.constant 0 : index
    %c1 = arith.constant 1 : index
    %102 = vector.load %arg10[%c0_37, %c1] : memref<16x49xf32, #tpu.memory_space<vmem>>, vector<16x1xf32>
    %103 = vector.broadcast %102 : vector<16x1xf32> to vector<16x256xf32>
    %104 = arith.mulf %103, %50 : vector<16x256xf32>
    %c0_38 = arith.constant 0 : index
    %c8 = arith.constant 8 : index
    %105 = vector.load %arg10[%c0_38, %c8] : memref<16x49xf32, #tpu.memory_space<vmem>>, vector<16x1xf32>
    %106 = vector.broadcast %105 : vector<16x1xf32> to vector<16x256xf32>
    %107 = arith.mulf %106, %54 : vector<16x256xf32>
    %c0_39 = arith.constant 0 : index
    %c15 = arith.constant 15 : index
    %108 = vector.load %arg10[%c0_39, %c15] : memref<16x49xf32, #tpu.memory_space<vmem>>, vector<16x1xf32>
    %109 = vector.broadcast %108 : vector<16x1xf32> to vector<16x256xf32>
    %110 = arith.mulf %109, %58 : vector<16x256xf32>
    %c0_40 = arith.constant 0 : index
    %c22_41 = arith.constant 22 : index
    %111 = vector.load %arg10[%c0_40, %c22_41] : memref<16x49xf32, #tpu.memory_space<vmem>>, vector<16x1xf32>
    %112 = vector.broadcast %111 : vector<16x1xf32> to vector<16x256xf32>
    %113 = arith.mulf %112, %46 : vector<16x256xf32>
    %c0_42 = arith.constant 0 : index
    %c29 = arith.constant 29 : index
    %114 = vector.load %arg10[%c0_42, %c29] : memref<16x49xf32, #tpu.memory_space<vmem>>, vector<16x1xf32>
    %115 = vector.broadcast %114 : vector<16x1xf32> to vector<16x256xf32>
    %116 = arith.mulf %115, %62 : vector<16x256xf32>
    %c0_43 = arith.constant 0 : index
    %c36 = arith.constant 36 : index
    %117 = vector.load %arg10[%c0_43, %c36] : memref<16x49xf32, #tpu.memory_space<vmem>>, vector<16x1xf32>
    %118 = vector.broadcast %117 : vector<16x1xf32> to vector<16x256xf32>
    %119 = arith.mulf %118, %66 : vector<16x256xf32>
    %c0_44 = arith.constant 0 : index
    %c43 = arith.constant 43 : index
    %120 = vector.load %arg10[%c0_44, %c43] : memref<16x49xf32, #tpu.memory_space<vmem>>, vector<16x1xf32>
    %121 = vector.broadcast %120 : vector<16x1xf32> to vector<16x256xf32>
    %122 = arith.mulf %121, %70 : vector<16x256xf32>
    %123 = arith.addf %104, %107 : vector<16x256xf32>
    %124 = arith.addf %110, %113 : vector<16x256xf32>
    %125 = arith.addf %116, %119 : vector<16x256xf32>
    %126 = arith.addf %123, %124 : vector<16x256xf32>
    %127 = arith.addf %125, %122 : vector<16x256xf32>
    %128 = arith.addf %126, %127 : vector<16x256xf32>
    %c6_i32 = arith.constant 6 : i32
    %129 = tpu.dynamic_rotate %128 by %c6_i32 dim 1 : vector<16x256xf32>, i32 -> vector<16x256xf32>
    %c24 = arith.constant 24 : index
    %c0_45 = arith.constant 0 : index
    %130 = vector.load %arg20[%c24, %c0_45] : memref<44x256xf32, #tpu.memory_space<vmem>>, vector<1x256xf32>
    %131 = vector.broadcast %130 : vector<1x256xf32> to vector<16x256xf32>
    %132 = arith.mulf %129, %131 : vector<16x256xf32>
    %c0_46 = arith.constant 0 : index
    %c2 = arith.constant 2 : index
    %133 = vector.load %arg10[%c0_46, %c2] : memref<16x49xf32, #tpu.memory_space<vmem>>, vector<16x1xf32>
    %134 = vector.broadcast %133 : vector<16x1xf32> to vector<16x256xf32>
    %135 = arith.mulf %134, %50 : vector<16x256xf32>
    %c0_47 = arith.constant 0 : index
    %c9 = arith.constant 9 : index
    %136 = vector.load %arg10[%c0_47, %c9] : memref<16x49xf32, #tpu.memory_space<vmem>>, vector<16x1xf32>
    %137 = vector.broadcast %136 : vector<16x1xf32> to vector<16x256xf32>
    %138 = arith.mulf %137, %54 : vector<16x256xf32>
    %c0_48 = arith.constant 0 : index
    %c16_49 = arith.constant 16 : index
    %139 = vector.load %arg10[%c0_48, %c16_49] : memref<16x49xf32, #tpu.memory_space<vmem>>, vector<16x1xf32>
    %140 = vector.broadcast %139 : vector<16x1xf32> to vector<16x256xf32>
    %141 = arith.mulf %140, %58 : vector<16x256xf32>
    %c0_50 = arith.constant 0 : index
    %c23_51 = arith.constant 23 : index
    %142 = vector.load %arg10[%c0_50, %c23_51] : memref<16x49xf32, #tpu.memory_space<vmem>>, vector<16x1xf32>
    %143 = vector.broadcast %142 : vector<16x1xf32> to vector<16x256xf32>
    %144 = arith.mulf %143, %46 : vector<16x256xf32>
    %c0_52 = arith.constant 0 : index
    %c30 = arith.constant 30 : index
    %145 = vector.load %arg10[%c0_52, %c30] : memref<16x49xf32, #tpu.memory_space<vmem>>, vector<16x1xf32>
    %146 = vector.broadcast %145 : vector<16x1xf32> to vector<16x256xf32>
    %147 = arith.mulf %146, %62 : vector<16x256xf32>
    %c0_53 = arith.constant 0 : index
    %c37 = arith.constant 37 : index
    %148 = vector.load %arg10[%c0_53, %c37] : memref<16x49xf32, #tpu.memory_space<vmem>>, vector<16x1xf32>
    %149 = vector.broadcast %148 : vector<16x1xf32> to vector<16x256xf32>
    %150 = arith.mulf %149, %66 : vector<16x256xf32>
    %c0_54 = arith.constant 0 : index
    %c44 = arith.constant 44 : index
    %151 = vector.load %arg10[%c0_54, %c44] : memref<16x49xf32, #tpu.memory_space<vmem>>, vector<16x1xf32>
    %152 = vector.broadcast %151 : vector<16x1xf32> to vector<16x256xf32>
    %153 = arith.mulf %152, %70 : vector<16x256xf32>
    %154 = arith.addf %135, %138 : vector<16x256xf32>
    %155 = arith.addf %141, %144 : vector<16x256xf32>
    %156 = arith.addf %147, %150 : vector<16x256xf32>
    %157 = arith.addf %154, %155 : vector<16x256xf32>
    %158 = arith.addf %156, %153 : vector<16x256xf32>
    %159 = arith.addf %157, %158 : vector<16x256xf32>
    %c3_i32 = arith.constant 3 : i32
    %160 = tpu.dynamic_rotate %159 by %c3_i32 dim 1 : vector<16x256xf32>, i32 -> vector<16x256xf32>
    %c25 = arith.constant 25 : index
    %c0_55 = arith.constant 0 : index
    %161 = vector.load %arg20[%c25, %c0_55] : memref<44x256xf32, #tpu.memory_space<vmem>>, vector<1x256xf32>
    %162 = vector.broadcast %161 : vector<1x256xf32> to vector<16x256xf32>
    %163 = arith.mulf %160, %162 : vector<16x256xf32>
    %c0_56 = arith.constant 0 : index
    %c3 = arith.constant 3 : index
    %164 = vector.load %arg10[%c0_56, %c3] : memref<16x49xf32, #tpu.memory_space<vmem>>, vector<16x1xf32>
    %165 = vector.broadcast %164 : vector<16x1xf32> to vector<16x256xf32>
    %166 = arith.mulf %165, %50 : vector<16x256xf32>
    %c0_57 = arith.constant 0 : index
    %c10 = arith.constant 10 : index
    %167 = vector.load %arg10[%c0_57, %c10] : memref<16x49xf32, #tpu.memory_space<vmem>>, vector<16x1xf32>
    %168 = vector.broadcast %167 : vector<16x1xf32> to vector<16x256xf32>
    %169 = arith.mulf %168, %54 : vector<16x256xf32>
    %c0_58 = arith.constant 0 : index
    %c17_59 = arith.constant 17 : index
    %170 = vector.load %arg10[%c0_58, %c17_59] : memref<16x49xf32, #tpu.memory_space<vmem>>, vector<16x1xf32>
    %171 = vector.broadcast %170 : vector<16x1xf32> to vector<16x256xf32>
    %172 = arith.mulf %171, %58 : vector<16x256xf32>
    %c0_60 = arith.constant 0 : index
    %c24_61 = arith.constant 24 : index
    %173 = vector.load %arg10[%c0_60, %c24_61] : memref<16x49xf32, #tpu.memory_space<vmem>>, vector<16x1xf32>
    %174 = vector.broadcast %173 : vector<16x1xf32> to vector<16x256xf32>
    %175 = arith.mulf %174, %46 : vector<16x256xf32>
    %c0_62 = arith.constant 0 : index
    %c31 = arith.constant 31 : index
    %176 = vector.load %arg10[%c0_62, %c31] : memref<16x49xf32, #tpu.memory_space<vmem>>, vector<16x1xf32>
    %177 = vector.broadcast %176 : vector<16x1xf32> to vector<16x256xf32>
    %178 = arith.mulf %177, %62 : vector<16x256xf32>
    %c0_63 = arith.constant 0 : index
    %c38 = arith.constant 38 : index
    %179 = vector.load %arg10[%c0_63, %c38] : memref<16x49xf32, #tpu.memory_space<vmem>>, vector<16x1xf32>
    %180 = vector.broadcast %179 : vector<16x1xf32> to vector<16x256xf32>
    %181 = arith.mulf %180, %66 : vector<16x256xf32>
    %c0_64 = arith.constant 0 : index
    %c45 = arith.constant 45 : index
    %182 = vector.load %arg10[%c0_64, %c45] : memref<16x49xf32, #tpu.memory_space<vmem>>, vector<16x1xf32>
    %183 = vector.broadcast %182 : vector<16x1xf32> to vector<16x256xf32>
    %184 = arith.mulf %183, %70 : vector<16x256xf32>
    %185 = arith.addf %166, %169 : vector<16x256xf32>
    %186 = arith.addf %172, %175 : vector<16x256xf32>
    %187 = arith.addf %178, %181 : vector<16x256xf32>
    %188 = arith.addf %185, %186 : vector<16x256xf32>
    %189 = arith.addf %187, %184 : vector<16x256xf32>
    %190 = arith.addf %188, %189 : vector<16x256xf32>
    %c0_65 = arith.constant 0 : index
    %c4 = arith.constant 4 : index
    %191 = vector.load %arg10[%c0_65, %c4] : memref<16x49xf32, #tpu.memory_space<vmem>>, vector<16x1xf32>
    %192 = vector.broadcast %191 : vector<16x1xf32> to vector<16x256xf32>
    %193 = arith.mulf %192, %50 : vector<16x256xf32>
    %c0_66 = arith.constant 0 : index
    %c11 = arith.constant 11 : index
    %194 = vector.load %arg10[%c0_66, %c11] : memref<16x49xf32, #tpu.memory_space<vmem>>, vector<16x1xf32>
    %195 = vector.broadcast %194 : vector<16x1xf32> to vector<16x256xf32>
    %196 = arith.mulf %195, %54 : vector<16x256xf32>
    %c0_67 = arith.constant 0 : index
    %c18_68 = arith.constant 18 : index
    %197 = vector.load %arg10[%c0_67, %c18_68] : memref<16x49xf32, #tpu.memory_space<vmem>>, vector<16x1xf32>
    %198 = vector.broadcast %197 : vector<16x1xf32> to vector<16x256xf32>
    %199 = arith.mulf %198, %58 : vector<16x256xf32>
    %c0_69 = arith.constant 0 : index
    %c25_70 = arith.constant 25 : index
    %200 = vector.load %arg10[%c0_69, %c25_70] : memref<16x49xf32, #tpu.memory_space<vmem>>, vector<16x1xf32>
    %201 = vector.broadcast %200 : vector<16x1xf32> to vector<16x256xf32>
    %202 = arith.mulf %201, %46 : vector<16x256xf32>
    %c0_71 = arith.constant 0 : index
    %c32 = arith.constant 32 : index
    %203 = vector.load %arg10[%c0_71, %c32] : memref<16x49xf32, #tpu.memory_space<vmem>>, vector<16x1xf32>
    %204 = vector.broadcast %203 : vector<16x1xf32> to vector<16x256xf32>
    %205 = arith.mulf %204, %62 : vector<16x256xf32>
    %c0_72 = arith.constant 0 : index
    %c39 = arith.constant 39 : index
    %206 = vector.load %arg10[%c0_72, %c39] : memref<16x49xf32, #tpu.memory_space<vmem>>, vector<16x1xf32>
    %207 = vector.broadcast %206 : vector<16x1xf32> to vector<16x256xf32>
    %208 = arith.mulf %207, %66 : vector<16x256xf32>
    %c0_73 = arith.constant 0 : index
    %c46 = arith.constant 46 : index
    %209 = vector.load %arg10[%c0_73, %c46] : memref<16x49xf32, #tpu.memory_space<vmem>>, vector<16x1xf32>
    %210 = vector.broadcast %209 : vector<16x1xf32> to vector<16x256xf32>
    %211 = arith.mulf %210, %70 : vector<16x256xf32>
    %212 = arith.addf %193, %196 : vector<16x256xf32>
    %213 = arith.addf %199, %202 : vector<16x256xf32>
    %214 = arith.addf %205, %208 : vector<16x256xf32>
    %215 = arith.addf %212, %213 : vector<16x256xf32>
    %216 = arith.addf %214, %211 : vector<16x256xf32>
    %217 = arith.addf %215, %216 : vector<16x256xf32>
    %c253_i32 = arith.constant 253 : i32
    %218 = tpu.dynamic_rotate %217 by %c253_i32 dim 1 : vector<16x256xf32>, i32 -> vector<16x256xf32>
    %c27 = arith.constant 27 : index
    %c0_74 = arith.constant 0 : index
    %219 = vector.load %arg20[%c27, %c0_74] : memref<44x256xf32, #tpu.memory_space<vmem>>, vector<1x256xf32>
    %220 = vector.broadcast %219 : vector<1x256xf32> to vector<16x256xf32>
    %221 = arith.mulf %218, %220 : vector<16x256xf32>
    %c0_75 = arith.constant 0 : index
    %c5 = arith.constant 5 : index
    %222 = vector.load %arg10[%c0_75, %c5] : memref<16x49xf32, #tpu.memory_space<vmem>>, vector<16x1xf32>
    %223 = vector.broadcast %222 : vector<16x1xf32> to vector<16x256xf32>
    %224 = arith.mulf %223, %50 : vector<16x256xf32>
    %c0_76 = arith.constant 0 : index
    %c12 = arith.constant 12 : index
    %225 = vector.load %arg10[%c0_76, %c12] : memref<16x49xf32, #tpu.memory_space<vmem>>, vector<16x1xf32>
    %226 = vector.broadcast %225 : vector<16x1xf32> to vector<16x256xf32>
    %227 = arith.mulf %226, %54 : vector<16x256xf32>
    %c0_77 = arith.constant 0 : index
    %c19 = arith.constant 19 : index
    %228 = vector.load %arg10[%c0_77, %c19] : memref<16x49xf32, #tpu.memory_space<vmem>>, vector<16x1xf32>
    %229 = vector.broadcast %228 : vector<16x1xf32> to vector<16x256xf32>
    %230 = arith.mulf %229, %58 : vector<16x256xf32>
    %c0_78 = arith.constant 0 : index
    %c26 = arith.constant 26 : index
    %231 = vector.load %arg10[%c0_78, %c26] : memref<16x49xf32, #tpu.memory_space<vmem>>, vector<16x1xf32>
    %232 = vector.broadcast %231 : vector<16x1xf32> to vector<16x256xf32>
    %233 = arith.mulf %232, %46 : vector<16x256xf32>
    %c0_79 = arith.constant 0 : index
    %c33 = arith.constant 33 : index
    %234 = vector.load %arg10[%c0_79, %c33] : memref<16x49xf32, #tpu.memory_space<vmem>>, vector<16x1xf32>
    %235 = vector.broadcast %234 : vector<16x1xf32> to vector<16x256xf32>
    %236 = arith.mulf %235, %62 : vector<16x256xf32>
    %c0_80 = arith.constant 0 : index
    %c40 = arith.constant 40 : index
    %237 = vector.load %arg10[%c0_80, %c40] : memref<16x49xf32, #tpu.memory_space<vmem>>, vector<16x1xf32>
    %238 = vector.broadcast %237 : vector<16x1xf32> to vector<16x256xf32>
    %239 = arith.mulf %238, %66 : vector<16x256xf32>
    %c0_81 = arith.constant 0 : index
    %c47 = arith.constant 47 : index
    %240 = vector.load %arg10[%c0_81, %c47] : memref<16x49xf32, #tpu.memory_space<vmem>>, vector<16x1xf32>
    %241 = vector.broadcast %240 : vector<16x1xf32> to vector<16x256xf32>
    %242 = arith.mulf %241, %70 : vector<16x256xf32>
    %243 = arith.addf %224, %227 : vector<16x256xf32>
    %244 = arith.addf %230, %233 : vector<16x256xf32>
    %245 = arith.addf %236, %239 : vector<16x256xf32>
    %246 = arith.addf %243, %244 : vector<16x256xf32>
    %247 = arith.addf %245, %242 : vector<16x256xf32>
    %248 = arith.addf %246, %247 : vector<16x256xf32>
    %c250_i32 = arith.constant 250 : i32
    %249 = tpu.dynamic_rotate %248 by %c250_i32 dim 1 : vector<16x256xf32>, i32 -> vector<16x256xf32>
    %c28_82 = arith.constant 28 : index
    %c0_83 = arith.constant 0 : index
    %250 = vector.load %arg20[%c28_82, %c0_83] : memref<44x256xf32, #tpu.memory_space<vmem>>, vector<1x256xf32>
    %251 = vector.broadcast %250 : vector<1x256xf32> to vector<16x256xf32>
    %252 = arith.mulf %249, %251 : vector<16x256xf32>
    %c0_84 = arith.constant 0 : index
    %c6 = arith.constant 6 : index
    %253 = vector.load %arg10[%c0_84, %c6] : memref<16x49xf32, #tpu.memory_space<vmem>>, vector<16x1xf32>
    %254 = vector.broadcast %253 : vector<16x1xf32> to vector<16x256xf32>
    %255 = arith.mulf %254, %50 : vector<16x256xf32>
    %c0_85 = arith.constant 0 : index
    %c13 = arith.constant 13 : index
    %256 = vector.load %arg10[%c0_85, %c13] : memref<16x49xf32, #tpu.memory_space<vmem>>, vector<16x1xf32>
    %257 = vector.broadcast %256 : vector<16x1xf32> to vector<16x256xf32>
    %258 = arith.mulf %257, %54 : vector<16x256xf32>
    %c0_86 = arith.constant 0 : index
    %c20_87 = arith.constant 20 : index
    %259 = vector.load %arg10[%c0_86, %c20_87] : memref<16x49xf32, #tpu.memory_space<vmem>>, vector<16x1xf32>
    %260 = vector.broadcast %259 : vector<16x1xf32> to vector<16x256xf32>
    %261 = arith.mulf %260, %58 : vector<16x256xf32>
    %c0_88 = arith.constant 0 : index
    %c27_89 = arith.constant 27 : index
    %262 = vector.load %arg10[%c0_88, %c27_89] : memref<16x49xf32, #tpu.memory_space<vmem>>, vector<16x1xf32>
    %263 = vector.broadcast %262 : vector<16x1xf32> to vector<16x256xf32>
    %264 = arith.mulf %263, %46 : vector<16x256xf32>
    %c0_90 = arith.constant 0 : index
    %c34 = arith.constant 34 : index
    %265 = vector.load %arg10[%c0_90, %c34] : memref<16x49xf32, #tpu.memory_space<vmem>>, vector<16x1xf32>
    %266 = vector.broadcast %265 : vector<16x1xf32> to vector<16x256xf32>
    %267 = arith.mulf %266, %62 : vector<16x256xf32>
    %c0_91 = arith.constant 0 : index
    %c41 = arith.constant 41 : index
    %268 = vector.load %arg10[%c0_91, %c41] : memref<16x49xf32, #tpu.memory_space<vmem>>, vector<16x1xf32>
    %269 = vector.broadcast %268 : vector<16x1xf32> to vector<16x256xf32>
    %270 = arith.mulf %269, %66 : vector<16x256xf32>
    %c0_92 = arith.constant 0 : index
    %c48 = arith.constant 48 : index
    %271 = vector.load %arg10[%c0_92, %c48] : memref<16x49xf32, #tpu.memory_space<vmem>>, vector<16x1xf32>
    %272 = vector.broadcast %271 : vector<16x1xf32> to vector<16x256xf32>
    %273 = arith.mulf %272, %70 : vector<16x256xf32>
    %274 = arith.addf %255, %258 : vector<16x256xf32>
    %275 = arith.addf %261, %264 : vector<16x256xf32>
    %276 = arith.addf %267, %270 : vector<16x256xf32>
    %277 = arith.addf %274, %275 : vector<16x256xf32>
    %278 = arith.addf %276, %273 : vector<16x256xf32>
    %279 = arith.addf %277, %278 : vector<16x256xf32>
    %c247_i32 = arith.constant 247 : i32
    %280 = tpu.dynamic_rotate %279 by %c247_i32 dim 1 : vector<16x256xf32>, i32 -> vector<16x256xf32>
    %c29_93 = arith.constant 29 : index
    %c0_94 = arith.constant 0 : index
    %281 = vector.load %arg20[%c29_93, %c0_94] : memref<44x256xf32, #tpu.memory_space<vmem>>, vector<1x256xf32>
    %282 = vector.broadcast %281 : vector<1x256xf32> to vector<16x256xf32>
    %283 = arith.mulf %280, %282 : vector<16x256xf32>
    %284 = arith.addf %101, %132 : vector<16x256xf32>
    %285 = arith.addf %163, %190 : vector<16x256xf32>
    %286 = arith.addf %221, %252 : vector<16x256xf32>
    %287 = arith.addf %284, %285 : vector<16x256xf32>
    %288 = arith.addf %286, %283 : vector<16x256xf32>
    %289 = arith.addf %287, %288 : vector<16x256xf32>
    %c0_95 = arith.constant 0 : index
    %c0_96 = arith.constant 0 : index
    %290 = vector.load %arg11[%c0_95, %c0_96] : memref<16x1xf32, #tpu.memory_space<vmem>>, vector<16x1xf32>
    %291 = vector.broadcast %290 : vector<16x1xf32> to vector<16x256xf32>
    %292 = arith.addf %289, %291 : vector<16x256xf32>
    %c64_i32 = arith.constant 64 : i32
    %293 = tpu.dynamic_rotate %46 by %c64_i32 dim 1 : vector<16x256xf32>, i32 -> vector<16x256xf32>
    %c6_97 = arith.constant 6 : index
    %c0_98 = arith.constant 0 : index
    %294 = vector.load %arg20[%c6_97, %c0_98] : memref<44x256xf32, #tpu.memory_space<vmem>>, vector<1x256xf32>
    %295 = vector.broadcast %294 : vector<1x256xf32> to vector<16x256xf32>
    %296 = arith.mulf %293, %295 : vector<16x256xf32>
    %c32_i32 = arith.constant 32 : i32
    %297 = tpu.dynamic_rotate %46 by %c32_i32 dim 1 : vector<16x256xf32>, i32 -> vector<16x256xf32>
    %c7_99 = arith.constant 7 : index
    %c0_100 = arith.constant 0 : index
    %298 = vector.load %arg20[%c7_99, %c0_100] : memref<44x256xf32, #tpu.memory_space<vmem>>, vector<1x256xf32>
    %299 = vector.broadcast %298 : vector<1x256xf32> to vector<16x256xf32>
    %300 = arith.mulf %297, %299 : vector<16x256xf32>
    %c224_i32 = arith.constant 224 : i32
    %301 = tpu.dynamic_rotate %46 by %c224_i32 dim 1 : vector<16x256xf32>, i32 -> vector<16x256xf32>
    %c9_101 = arith.constant 9 : index
    %c0_102 = arith.constant 0 : index
    %302 = vector.load %arg20[%c9_101, %c0_102] : memref<44x256xf32, #tpu.memory_space<vmem>>, vector<1x256xf32>
    %303 = vector.broadcast %302 : vector<1x256xf32> to vector<16x256xf32>
    %304 = arith.mulf %301, %303 : vector<16x256xf32>
    %c192_i32 = arith.constant 192 : i32
    %305 = tpu.dynamic_rotate %46 by %c192_i32 dim 1 : vector<16x256xf32>, i32 -> vector<16x256xf32>
    %c10_103 = arith.constant 10 : index
    %c0_104 = arith.constant 0 : index
    %306 = vector.load %arg20[%c10_103, %c0_104] : memref<44x256xf32, #tpu.memory_space<vmem>>, vector<1x256xf32>
    %307 = vector.broadcast %306 : vector<1x256xf32> to vector<16x256xf32>
    %308 = arith.mulf %305, %307 : vector<16x256xf32>
    %c0_105 = arith.constant 0 : index
    %c0_106 = arith.constant 0 : index
    %309 = vector.load %arg8[%c0_105, %c0_106] : memref<16x25xf32, #tpu.memory_space<vmem>>, vector<16x1xf32>
    %310 = vector.broadcast %309 : vector<16x1xf32> to vector<16x256xf32>
    %311 = arith.mulf %310, %296 : vector<16x256xf32>
    %c0_107 = arith.constant 0 : index
    %c5_108 = arith.constant 5 : index
    %312 = vector.load %arg8[%c0_107, %c5_108] : memref<16x25xf32, #tpu.memory_space<vmem>>, vector<16x1xf32>
    %313 = vector.broadcast %312 : vector<16x1xf32> to vector<16x256xf32>
    %314 = arith.mulf %313, %300 : vector<16x256xf32>
    %c0_109 = arith.constant 0 : index
    %c10_110 = arith.constant 10 : index
    %315 = vector.load %arg8[%c0_109, %c10_110] : memref<16x25xf32, #tpu.memory_space<vmem>>, vector<16x1xf32>
    %316 = vector.broadcast %315 : vector<16x1xf32> to vector<16x256xf32>
    %317 = arith.mulf %316, %46 : vector<16x256xf32>
    %c0_111 = arith.constant 0 : index
    %c15_112 = arith.constant 15 : index
    %318 = vector.load %arg8[%c0_111, %c15_112] : memref<16x25xf32, #tpu.memory_space<vmem>>, vector<16x1xf32>
    %319 = vector.broadcast %318 : vector<16x1xf32> to vector<16x256xf32>
    %320 = arith.mulf %319, %304 : vector<16x256xf32>
    %c0_113 = arith.constant 0 : index
    %c20_114 = arith.constant 20 : index
    %321 = vector.load %arg8[%c0_113, %c20_114] : memref<16x25xf32, #tpu.memory_space<vmem>>, vector<16x1xf32>
    %322 = vector.broadcast %321 : vector<16x1xf32> to vector<16x256xf32>
    %323 = arith.mulf %322, %308 : vector<16x256xf32>
    %324 = arith.addf %311, %314 : vector<16x256xf32>
    %325 = arith.addf %317, %320 : vector<16x256xf32>
    %326 = arith.addf %324, %325 : vector<16x256xf32>
    %327 = arith.addf %326, %323 : vector<16x256xf32>
    %c4_i32 = arith.constant 4 : i32
    %328 = tpu.dynamic_rotate %327 by %c4_i32 dim 1 : vector<16x256xf32>, i32 -> vector<16x256xf32>
    %c11_115 = arith.constant 11 : index
    %c0_116 = arith.constant 0 : index
    %329 = vector.load %arg20[%c11_115, %c0_116] : memref<44x256xf32, #tpu.memory_space<vmem>>, vector<1x256xf32>
    %330 = vector.broadcast %329 : vector<1x256xf32> to vector<16x256xf32>
    %331 = arith.mulf %328, %330 : vector<16x256xf32>
    %c0_117 = arith.constant 0 : index
    %c1_118 = arith.constant 1 : index
    %332 = vector.load %arg8[%c0_117, %c1_118] : memref<16x25xf32, #tpu.memory_space<vmem>>, vector<16x1xf32>
    %333 = vector.broadcast %332 : vector<16x1xf32> to vector<16x256xf32>
    %334 = arith.mulf %333, %296 : vector<16x256xf32>
    %c0_119 = arith.constant 0 : index
    %c6_120 = arith.constant 6 : index
    %335 = vector.load %arg8[%c0_119, %c6_120] : memref<16x25xf32, #tpu.memory_space<vmem>>, vector<16x1xf32>
    %336 = vector.broadcast %335 : vector<16x1xf32> to vector<16x256xf32>
    %337 = arith.mulf %336, %300 : vector<16x256xf32>
    %c0_121 = arith.constant 0 : index
    %c11_122 = arith.constant 11 : index
    %338 = vector.load %arg8[%c0_121, %c11_122] : memref<16x25xf32, #tpu.memory_space<vmem>>, vector<16x1xf32>
    %339 = vector.broadcast %338 : vector<16x1xf32> to vector<16x256xf32>
    %340 = arith.mulf %339, %46 : vector<16x256xf32>
    %c0_123 = arith.constant 0 : index
    %c16_124 = arith.constant 16 : index
    %341 = vector.load %arg8[%c0_123, %c16_124] : memref<16x25xf32, #tpu.memory_space<vmem>>, vector<16x1xf32>
    %342 = vector.broadcast %341 : vector<16x1xf32> to vector<16x256xf32>
    %343 = arith.mulf %342, %304 : vector<16x256xf32>
    %c0_125 = arith.constant 0 : index
    %c21_126 = arith.constant 21 : index
    %344 = vector.load %arg8[%c0_125, %c21_126] : memref<16x25xf32, #tpu.memory_space<vmem>>, vector<16x1xf32>
    %345 = vector.broadcast %344 : vector<16x1xf32> to vector<16x256xf32>
    %346 = arith.mulf %345, %308 : vector<16x256xf32>
    %347 = arith.addf %334, %337 : vector<16x256xf32>
    %348 = arith.addf %340, %343 : vector<16x256xf32>
    %349 = arith.addf %347, %348 : vector<16x256xf32>
    %350 = arith.addf %349, %346 : vector<16x256xf32>
    %c2_i32 = arith.constant 2 : i32
    %351 = tpu.dynamic_rotate %350 by %c2_i32 dim 1 : vector<16x256xf32>, i32 -> vector<16x256xf32>
    %c12_127 = arith.constant 12 : index
    %c0_128 = arith.constant 0 : index
    %352 = vector.load %arg20[%c12_127, %c0_128] : memref<44x256xf32, #tpu.memory_space<vmem>>, vector<1x256xf32>
    %353 = vector.broadcast %352 : vector<1x256xf32> to vector<16x256xf32>
    %354 = arith.mulf %351, %353 : vector<16x256xf32>
    %c0_129 = arith.constant 0 : index
    %c2_130 = arith.constant 2 : index
    %355 = vector.load %arg8[%c0_129, %c2_130] : memref<16x25xf32, #tpu.memory_space<vmem>>, vector<16x1xf32>
    %356 = vector.broadcast %355 : vector<16x1xf32> to vector<16x256xf32>
    %357 = arith.mulf %356, %296 : vector<16x256xf32>
    %c0_131 = arith.constant 0 : index
    %c7_132 = arith.constant 7 : index
    %358 = vector.load %arg8[%c0_131, %c7_132] : memref<16x25xf32, #tpu.memory_space<vmem>>, vector<16x1xf32>
    %359 = vector.broadcast %358 : vector<16x1xf32> to vector<16x256xf32>
    %360 = arith.mulf %359, %300 : vector<16x256xf32>
    %c0_133 = arith.constant 0 : index
    %c12_134 = arith.constant 12 : index
    %361 = vector.load %arg8[%c0_133, %c12_134] : memref<16x25xf32, #tpu.memory_space<vmem>>, vector<16x1xf32>
    %362 = vector.broadcast %361 : vector<16x1xf32> to vector<16x256xf32>
    %363 = arith.mulf %362, %46 : vector<16x256xf32>
    %c0_135 = arith.constant 0 : index
    %c17_136 = arith.constant 17 : index
    %364 = vector.load %arg8[%c0_135, %c17_136] : memref<16x25xf32, #tpu.memory_space<vmem>>, vector<16x1xf32>
    %365 = vector.broadcast %364 : vector<16x1xf32> to vector<16x256xf32>
    %366 = arith.mulf %365, %304 : vector<16x256xf32>
    %c0_137 = arith.constant 0 : index
    %c22_138 = arith.constant 22 : index
    %367 = vector.load %arg8[%c0_137, %c22_138] : memref<16x25xf32, #tpu.memory_space<vmem>>, vector<16x1xf32>
    %368 = vector.broadcast %367 : vector<16x1xf32> to vector<16x256xf32>
    %369 = arith.mulf %368, %308 : vector<16x256xf32>
    %370 = arith.addf %357, %360 : vector<16x256xf32>
    %371 = arith.addf %363, %366 : vector<16x256xf32>
    %372 = arith.addf %370, %371 : vector<16x256xf32>
    %373 = arith.addf %372, %369 : vector<16x256xf32>
    %c0_139 = arith.constant 0 : index
    %c3_140 = arith.constant 3 : index
    %374 = vector.load %arg8[%c0_139, %c3_140] : memref<16x25xf32, #tpu.memory_space<vmem>>, vector<16x1xf32>
    %375 = vector.broadcast %374 : vector<16x1xf32> to vector<16x256xf32>
    %376 = arith.mulf %375, %296 : vector<16x256xf32>
    %c0_141 = arith.constant 0 : index
    %c8_142 = arith.constant 8 : index
    %377 = vector.load %arg8[%c0_141, %c8_142] : memref<16x25xf32, #tpu.memory_space<vmem>>, vector<16x1xf32>
    %378 = vector.broadcast %377 : vector<16x1xf32> to vector<16x256xf32>
    %379 = arith.mulf %378, %300 : vector<16x256xf32>
    %c0_143 = arith.constant 0 : index
    %c13_144 = arith.constant 13 : index
    %380 = vector.load %arg8[%c0_143, %c13_144] : memref<16x25xf32, #tpu.memory_space<vmem>>, vector<16x1xf32>
    %381 = vector.broadcast %380 : vector<16x1xf32> to vector<16x256xf32>
    %382 = arith.mulf %381, %46 : vector<16x256xf32>
    %c0_145 = arith.constant 0 : index
    %c18_146 = arith.constant 18 : index
    %383 = vector.load %arg8[%c0_145, %c18_146] : memref<16x25xf32, #tpu.memory_space<vmem>>, vector<16x1xf32>
    %384 = vector.broadcast %383 : vector<16x1xf32> to vector<16x256xf32>
    %385 = arith.mulf %384, %304 : vector<16x256xf32>
    %c0_147 = arith.constant 0 : index
    %c23_148 = arith.constant 23 : index
    %386 = vector.load %arg8[%c0_147, %c23_148] : memref<16x25xf32, #tpu.memory_space<vmem>>, vector<16x1xf32>
    %387 = vector.broadcast %386 : vector<16x1xf32> to vector<16x256xf32>
    %388 = arith.mulf %387, %308 : vector<16x256xf32>
    %389 = arith.addf %376, %379 : vector<16x256xf32>
    %390 = arith.addf %382, %385 : vector<16x256xf32>
    %391 = arith.addf %389, %390 : vector<16x256xf32>
    %392 = arith.addf %391, %388 : vector<16x256xf32>
    %c254_i32 = arith.constant 254 : i32
    %393 = tpu.dynamic_rotate %392 by %c254_i32 dim 1 : vector<16x256xf32>, i32 -> vector<16x256xf32>
    %c14_149 = arith.constant 14 : index
    %c0_150 = arith.constant 0 : index
    %394 = vector.load %arg20[%c14_149, %c0_150] : memref<44x256xf32, #tpu.memory_space<vmem>>, vector<1x256xf32>
    %395 = vector.broadcast %394 : vector<1x256xf32> to vector<16x256xf32>
    %396 = arith.mulf %393, %395 : vector<16x256xf32>
    %c0_151 = arith.constant 0 : index
    %c4_152 = arith.constant 4 : index
    %397 = vector.load %arg8[%c0_151, %c4_152] : memref<16x25xf32, #tpu.memory_space<vmem>>, vector<16x1xf32>
    %398 = vector.broadcast %397 : vector<16x1xf32> to vector<16x256xf32>
    %399 = arith.mulf %398, %296 : vector<16x256xf32>
    %c0_153 = arith.constant 0 : index
    %c9_154 = arith.constant 9 : index
    %400 = vector.load %arg8[%c0_153, %c9_154] : memref<16x25xf32, #tpu.memory_space<vmem>>, vector<16x1xf32>
    %401 = vector.broadcast %400 : vector<16x1xf32> to vector<16x256xf32>
    %402 = arith.mulf %401, %300 : vector<16x256xf32>
    %c0_155 = arith.constant 0 : index
    %c14_156 = arith.constant 14 : index
    %403 = vector.load %arg8[%c0_155, %c14_156] : memref<16x25xf32, #tpu.memory_space<vmem>>, vector<16x1xf32>
    %404 = vector.broadcast %403 : vector<16x1xf32> to vector<16x256xf32>
    %405 = arith.mulf %404, %46 : vector<16x256xf32>
    %c0_157 = arith.constant 0 : index
    %c19_158 = arith.constant 19 : index
    %406 = vector.load %arg8[%c0_157, %c19_158] : memref<16x25xf32, #tpu.memory_space<vmem>>, vector<16x1xf32>
    %407 = vector.broadcast %406 : vector<16x1xf32> to vector<16x256xf32>
    %408 = arith.mulf %407, %304 : vector<16x256xf32>
    %c0_159 = arith.constant 0 : index
    %c24_160 = arith.constant 24 : index
    %409 = vector.load %arg8[%c0_159, %c24_160] : memref<16x25xf32, #tpu.memory_space<vmem>>, vector<16x1xf32>
    %410 = vector.broadcast %409 : vector<16x1xf32> to vector<16x256xf32>
    %411 = arith.mulf %410, %308 : vector<16x256xf32>
    %412 = arith.addf %399, %402 : vector<16x256xf32>
    %413 = arith.addf %405, %408 : vector<16x256xf32>
    %414 = arith.addf %412, %413 : vector<16x256xf32>
    %415 = arith.addf %414, %411 : vector<16x256xf32>
    %c252_i32 = arith.constant 252 : i32
    %416 = tpu.dynamic_rotate %415 by %c252_i32 dim 1 : vector<16x256xf32>, i32 -> vector<16x256xf32>
    %c15_161 = arith.constant 15 : index
    %c0_162 = arith.constant 0 : index
    %417 = vector.load %arg20[%c15_161, %c0_162] : memref<44x256xf32, #tpu.memory_space<vmem>>, vector<1x256xf32>
    %418 = vector.broadcast %417 : vector<1x256xf32> to vector<16x256xf32>
    %419 = arith.mulf %416, %418 : vector<16x256xf32>
    %420 = arith.addf %331, %354 : vector<16x256xf32>
    %421 = arith.addf %373, %396 : vector<16x256xf32>
    %422 = arith.addf %420, %421 : vector<16x256xf32>
    %423 = arith.addf %422, %419 : vector<16x256xf32>
    %c0_163 = arith.constant 0 : index
    %c0_164 = arith.constant 0 : index
    %424 = vector.load %arg9[%c0_163, %c0_164] : memref<16x1xf32, #tpu.memory_space<vmem>>, vector<16x1xf32>
    %425 = vector.broadcast %424 : vector<16x1xf32> to vector<16x256xf32>
    %426 = arith.addf %423, %425 : vector<16x256xf32>
    %c16_i32 = arith.constant 16 : i32
    %427 = tpu.dynamic_rotate %46 by %c16_i32 dim 1 : vector<16x256xf32>, i32 -> vector<16x256xf32>
    %c0_165 = arith.constant 0 : index
    %c0_166 = arith.constant 0 : index
    %428 = vector.load %arg20[%c0_165, %c0_166] : memref<44x256xf32, #tpu.memory_space<vmem>>, vector<1x256xf32>
    %429 = vector.broadcast %428 : vector<1x256xf32> to vector<16x256xf32>
    %430 = arith.mulf %427, %429 : vector<16x256xf32>
    %c240_i32 = arith.constant 240 : i32
    %431 = tpu.dynamic_rotate %46 by %c240_i32 dim 1 : vector<16x256xf32>, i32 -> vector<16x256xf32>
    %c2_167 = arith.constant 2 : index
    %c0_168 = arith.constant 0 : index
    %432 = vector.load %arg20[%c2_167, %c0_168] : memref<44x256xf32, #tpu.memory_space<vmem>>, vector<1x256xf32>
    %433 = vector.broadcast %432 : vector<1x256xf32> to vector<16x256xf32>
    %434 = arith.mulf %431, %433 : vector<16x256xf32>
    %c0_169 = arith.constant 0 : index
    %c0_170 = arith.constant 0 : index
    %c0_171 = arith.constant 0 : index
    %435 = vector.load %arg6[%c0_169, %c0_170, %c0_171] : memref<9x16x16xf32, #tpu.memory_space<vmem>>, vector<1x16x16xf32>
    %436 = vector.shape_cast %435 : vector<1x16x16xf32> to vector<16x16xf32>
    %cst_172 = arith.constant dense<0.000000e+00> : vector<16x256xf32>
    %437 = tpu.matmul %436, %430, %cst_172 {dimension_numbers = #tpu.dot_dimension_numbers<[1], [0], [0], [1], [0, 0, 1, 1], [], []>} : vector<16x16xf32>, vector<16x256xf32>, vector<16x256xf32> -> vector<16x256xf32>
    %c3_173 = arith.constant 3 : index
    %c0_174 = arith.constant 0 : index
    %c0_175 = arith.constant 0 : index
    %438 = vector.load %arg6[%c3_173, %c0_174, %c0_175] : memref<9x16x16xf32, #tpu.memory_space<vmem>>, vector<1x16x16xf32>
    %439 = vector.shape_cast %438 : vector<1x16x16xf32> to vector<16x16xf32>
    %cst_176 = arith.constant dense<0.000000e+00> : vector<16x256xf32>
    %440 = tpu.matmul %439, %46, %cst_176 {dimension_numbers = #tpu.dot_dimension_numbers<[1], [0], [0], [1], [0, 0, 1, 1], [], []>} : vector<16x16xf32>, vector<16x256xf32>, vector<16x256xf32> -> vector<16x256xf32>
    %c6_177 = arith.constant 6 : index
    %c0_178 = arith.constant 0 : index
    %c0_179 = arith.constant 0 : index
    %441 = vector.load %arg6[%c6_177, %c0_178, %c0_179] : memref<9x16x16xf32, #tpu.memory_space<vmem>>, vector<1x16x16xf32>
    %442 = vector.shape_cast %441 : vector<1x16x16xf32> to vector<16x16xf32>
    %cst_180 = arith.constant dense<0.000000e+00> : vector<16x256xf32>
    %443 = tpu.matmul %442, %434, %cst_180 {dimension_numbers = #tpu.dot_dimension_numbers<[1], [0], [0], [1], [0, 0, 1, 1], [], []>} : vector<16x16xf32>, vector<16x256xf32>, vector<16x256xf32> -> vector<16x256xf32>
    %444 = arith.addf %437, %440 : vector<16x256xf32>
    %445 = arith.addf %444, %443 : vector<16x256xf32>
    %c1_i32 = arith.constant 1 : i32
    %446 = tpu.dynamic_rotate %445 by %c1_i32 dim 1 : vector<16x256xf32>, i32 -> vector<16x256xf32>
    %c3_181 = arith.constant 3 : index
    %c0_182 = arith.constant 0 : index
    %447 = vector.load %arg20[%c3_181, %c0_182] : memref<44x256xf32, #tpu.memory_space<vmem>>, vector<1x256xf32>
    %448 = vector.broadcast %447 : vector<1x256xf32> to vector<16x256xf32>
    %449 = arith.mulf %446, %448 : vector<16x256xf32>
    %c1_183 = arith.constant 1 : index
    %c0_184 = arith.constant 0 : index
    %c0_185 = arith.constant 0 : index
    %450 = vector.load %arg6[%c1_183, %c0_184, %c0_185] : memref<9x16x16xf32, #tpu.memory_space<vmem>>, vector<1x16x16xf32>
    %451 = vector.shape_cast %450 : vector<1x16x16xf32> to vector<16x16xf32>
    %cst_186 = arith.constant dense<0.000000e+00> : vector<16x256xf32>
    %452 = tpu.matmul %451, %430, %cst_186 {dimension_numbers = #tpu.dot_dimension_numbers<[1], [0], [0], [1], [0, 0, 1, 1], [], []>} : vector<16x16xf32>, vector<16x256xf32>, vector<16x256xf32> -> vector<16x256xf32>
    %c4_187 = arith.constant 4 : index
    %c0_188 = arith.constant 0 : index
    %c0_189 = arith.constant 0 : index
    %453 = vector.load %arg6[%c4_187, %c0_188, %c0_189] : memref<9x16x16xf32, #tpu.memory_space<vmem>>, vector<1x16x16xf32>
    %454 = vector.shape_cast %453 : vector<1x16x16xf32> to vector<16x16xf32>
    %cst_190 = arith.constant dense<0.000000e+00> : vector<16x256xf32>
    %455 = tpu.matmul %454, %46, %cst_190 {dimension_numbers = #tpu.dot_dimension_numbers<[1], [0], [0], [1], [0, 0, 1, 1], [], []>} : vector<16x16xf32>, vector<16x256xf32>, vector<16x256xf32> -> vector<16x256xf32>
    %c7_191 = arith.constant 7 : index
    %c0_192 = arith.constant 0 : index
    %c0_193 = arith.constant 0 : index
    %456 = vector.load %arg6[%c7_191, %c0_192, %c0_193] : memref<9x16x16xf32, #tpu.memory_space<vmem>>, vector<1x16x16xf32>
    %457 = vector.shape_cast %456 : vector<1x16x16xf32> to vector<16x16xf32>
    %cst_194 = arith.constant dense<0.000000e+00> : vector<16x256xf32>
    %458 = tpu.matmul %457, %434, %cst_194 {dimension_numbers = #tpu.dot_dimension_numbers<[1], [0], [0], [1], [0, 0, 1, 1], [], []>} : vector<16x16xf32>, vector<16x256xf32>, vector<16x256xf32> -> vector<16x256xf32>
    %459 = arith.addf %452, %455 : vector<16x256xf32>
    %460 = arith.addf %459, %458 : vector<16x256xf32>
    %c2_195 = arith.constant 2 : index
    %c0_196 = arith.constant 0 : index
    %c0_197 = arith.constant 0 : index
    %461 = vector.load %arg6[%c2_195, %c0_196, %c0_197] : memref<9x16x16xf32, #tpu.memory_space<vmem>>, vector<1x16x16xf32>
    %462 = vector.shape_cast %461 : vector<1x16x16xf32> to vector<16x16xf32>
    %cst_198 = arith.constant dense<0.000000e+00> : vector<16x256xf32>
    %463 = tpu.matmul %462, %430, %cst_198 {dimension_numbers = #tpu.dot_dimension_numbers<[1], [0], [0], [1], [0, 0, 1, 1], [], []>} : vector<16x16xf32>, vector<16x256xf32>, vector<16x256xf32> -> vector<16x256xf32>
    %c5_199 = arith.constant 5 : index
    %c0_200 = arith.constant 0 : index
    %c0_201 = arith.constant 0 : index
    %464 = vector.load %arg6[%c5_199, %c0_200, %c0_201] : memref<9x16x16xf32, #tpu.memory_space<vmem>>, vector<1x16x16xf32>
    %465 = vector.shape_cast %464 : vector<1x16x16xf32> to vector<16x16xf32>
    %cst_202 = arith.constant dense<0.000000e+00> : vector<16x256xf32>
    %466 = tpu.matmul %465, %46, %cst_202 {dimension_numbers = #tpu.dot_dimension_numbers<[1], [0], [0], [1], [0, 0, 1, 1], [], []>} : vector<16x16xf32>, vector<16x256xf32>, vector<16x256xf32> -> vector<16x256xf32>
    %c8_203 = arith.constant 8 : index
    %c0_204 = arith.constant 0 : index
    %c0_205 = arith.constant 0 : index
    %467 = vector.load %arg6[%c8_203, %c0_204, %c0_205] : memref<9x16x16xf32, #tpu.memory_space<vmem>>, vector<1x16x16xf32>
    %468 = vector.shape_cast %467 : vector<1x16x16xf32> to vector<16x16xf32>
    %cst_206 = arith.constant dense<0.000000e+00> : vector<16x256xf32>
    %469 = tpu.matmul %468, %434, %cst_206 {dimension_numbers = #tpu.dot_dimension_numbers<[1], [0], [0], [1], [0, 0, 1, 1], [], []>} : vector<16x16xf32>, vector<16x256xf32>, vector<16x256xf32> -> vector<16x256xf32>
    %470 = arith.addf %463, %466 : vector<16x256xf32>
    %471 = arith.addf %470, %469 : vector<16x256xf32>
    %c255_i32 = arith.constant 255 : i32
    %472 = tpu.dynamic_rotate %471 by %c255_i32 dim 1 : vector<16x256xf32>, i32 -> vector<16x256xf32>
    %c5_207 = arith.constant 5 : index
    %c0_208 = arith.constant 0 : index
    %473 = vector.load %arg20[%c5_207, %c0_208] : memref<44x256xf32, #tpu.memory_space<vmem>>, vector<1x256xf32>
    %474 = vector.broadcast %473 : vector<1x256xf32> to vector<16x256xf32>
    %475 = arith.mulf %472, %474 : vector<16x256xf32>
    %476 = arith.addf %449, %460 : vector<16x256xf32>
    %477 = arith.addf %476, %475 : vector<16x256xf32>
    %c0_209 = arith.constant 0 : index
    %c0_210 = arith.constant 0 : index
    %478 = vector.load %arg7[%c0_209, %c0_210] : memref<16x1xf32, #tpu.memory_space<vmem>>, vector<16x1xf32>
    %479 = vector.broadcast %478 : vector<16x1xf32> to vector<16x256xf32>
    %480 = arith.addf %477, %479 : vector<16x256xf32>
    %c0_211 = arith.constant 0 : index
    %c0_212 = arith.constant 0 : index
    %481 = vector.load %arg4[%c0_211, %c0_212] : memref<16x1xf32, #tpu.memory_space<vmem>>, vector<16x1xf32>
    %482 = vector.broadcast %481 : vector<16x1xf32> to vector<16x256xf32>
    %483 = arith.mulf %482, %46 : vector<16x256xf32>
    %c0_213 = arith.constant 0 : index
    %c0_214 = arith.constant 0 : index
    %484 = vector.load %arg5[%c0_213, %c0_214] : memref<16x1xf32, #tpu.memory_space<vmem>>, vector<16x1xf32>
    %485 = vector.broadcast %484 : vector<16x1xf32> to vector<16x256xf32>
    %486 = arith.addf %483, %485 : vector<16x256xf32>
    %487 = tpu.concatenate %486, %480, %426, %292 in 0 : vector<16x256xf32>, vector<16x256xf32>, vector<16x256xf32>, vector<16x256xf32> -> vector<64x256xf32>
    %c0_215 = arith.constant 0 : index
    %c0_216 = arith.constant 0 : index
    %488 = vector.load %arg12[%c0_215, %c0_216] : memref<16x64xf32, #tpu.memory_space<vmem>>, vector<16x64xf32>
    %cst_217 = arith.constant dense<0.000000e+00> : vector<16x256xf32>
    %489 = tpu.matmul %488, %487, %cst_217 {dimension_numbers = #tpu.dot_dimension_numbers<[1], [0], [0], [1], [0, 0, 1, 1], [], []>} : vector<16x64xf32>, vector<64x256xf32>, vector<16x256xf32> -> vector<16x256xf32>
    %c0_218 = arith.constant 0 : index
    %c0_219 = arith.constant 0 : index
    %490 = vector.load %arg13[%c0_218, %c0_219] : memref<16x1xf32, #tpu.memory_space<vmem>>, vector<16x1xf32>
    %491 = vector.broadcast %490 : vector<16x1xf32> to vector<16x256xf32>
    %492 = arith.addf %489, %491 : vector<16x256xf32>
    %cst_220 = arith.constant dense<0.000000e+00> : vector<256xf32>
    %493 = vector.multi_reduction <add>, %492, %cst_220 [0] : vector<16x256xf32> to vector<256xf32>
    %494 = vector.shape_cast %493 : vector<256xf32> to vector<1x256xf32>
    %cst_221 = arith.constant 6.250000e-02 : f32
    %495 = vector.broadcast %cst_221 : f32 to vector<1x256xf32>
    %496 = arith.mulf %494, %495 : vector<1x256xf32>
    %cst_222 = arith.constant dense<0xFF800000> : vector<256xf32>
    %497 = vector.multi_reduction <maximumf>, %492, %cst_222 [0] : vector<16x256xf32> to vector<256xf32>
    %498 = vector.shape_cast %497 : vector<256xf32> to vector<1x256xf32>
    %499 = tpu.concatenate %496, %498 in 0 : vector<1x256xf32>, vector<1x256xf32> -> vector<2x256xf32>
    %c48_i32_223 = arith.constant 48 : i32
    %500 = tpu.dynamic_rotate %499 by %c48_i32_223 dim 1 : vector<2x256xf32>, i32 -> vector<2x256xf32>
    %c30_224 = arith.constant 30 : index
    %c0_225 = arith.constant 0 : index
    %501 = vector.load %arg20[%c30_224, %c0_225] : memref<44x256xf32, #tpu.memory_space<vmem>>, vector<1x256xf32>
    %502 = vector.broadcast %501 : vector<1x256xf32> to vector<2x256xf32>
    %503 = arith.mulf %500, %502 : vector<2x256xf32>
    %c32_i32_226 = arith.constant 32 : i32
    %504 = tpu.dynamic_rotate %499 by %c32_i32_226 dim 1 : vector<2x256xf32>, i32 -> vector<2x256xf32>
    %c31_227 = arith.constant 31 : index
    %c0_228 = arith.constant 0 : index
    %505 = vector.load %arg20[%c31_227, %c0_228] : memref<44x256xf32, #tpu.memory_space<vmem>>, vector<1x256xf32>
    %506 = vector.broadcast %505 : vector<1x256xf32> to vector<2x256xf32>
    %507 = arith.mulf %504, %506 : vector<2x256xf32>
    %c16_i32_229 = arith.constant 16 : i32
    %508 = tpu.dynamic_rotate %499 by %c16_i32_229 dim 1 : vector<2x256xf32>, i32 -> vector<2x256xf32>
    %c32_230 = arith.constant 32 : index
    %c0_231 = arith.constant 0 : index
    %509 = vector.load %arg20[%c32_230, %c0_231] : memref<44x256xf32, #tpu.memory_space<vmem>>, vector<1x256xf32>
    %510 = vector.broadcast %509 : vector<1x256xf32> to vector<2x256xf32>
    %511 = arith.mulf %508, %510 : vector<2x256xf32>
    %c240_i32_232 = arith.constant 240 : i32
    %512 = tpu.dynamic_rotate %499 by %c240_i32_232 dim 1 : vector<2x256xf32>, i32 -> vector<2x256xf32>
    %c34_233 = arith.constant 34 : index
    %c0_234 = arith.constant 0 : index
    %513 = vector.load %arg20[%c34_233, %c0_234] : memref<44x256xf32, #tpu.memory_space<vmem>>, vector<1x256xf32>
    %514 = vector.broadcast %513 : vector<1x256xf32> to vector<2x256xf32>
    %515 = arith.mulf %512, %514 : vector<2x256xf32>
    %c224_i32_235 = arith.constant 224 : i32
    %516 = tpu.dynamic_rotate %499 by %c224_i32_235 dim 1 : vector<2x256xf32>, i32 -> vector<2x256xf32>
    %c35_236 = arith.constant 35 : index
    %c0_237 = arith.constant 0 : index
    %517 = vector.load %arg20[%c35_236, %c0_237] : memref<44x256xf32, #tpu.memory_space<vmem>>, vector<1x256xf32>
    %518 = vector.broadcast %517 : vector<1x256xf32> to vector<2x256xf32>
    %519 = arith.mulf %516, %518 : vector<2x256xf32>
    %c208_i32_238 = arith.constant 208 : i32
    %520 = tpu.dynamic_rotate %499 by %c208_i32_238 dim 1 : vector<2x256xf32>, i32 -> vector<2x256xf32>
    %c36_239 = arith.constant 36 : index
    %c0_240 = arith.constant 0 : index
    %521 = vector.load %arg20[%c36_239, %c0_240] : memref<44x256xf32, #tpu.memory_space<vmem>>, vector<1x256xf32>
    %522 = vector.broadcast %521 : vector<1x256xf32> to vector<2x256xf32>
    %523 = arith.mulf %520, %522 : vector<2x256xf32>
    %524 = tpu.concatenate %503, %507, %511, %499, %515, %519, %523 in 0 : vector<2x256xf32>, vector<2x256xf32>, vector<2x256xf32>, vector<2x256xf32>, vector<2x256xf32>, vector<2x256xf32>, vector<2x256xf32> -> vector<14x256xf32>
    %c0_241 = arith.constant 0 : index
    %c0_242 = arith.constant 0 : index
    %525 = vector.load %arg14[%c0_241, %c0_242] : memref<28x14xf32, #tpu.memory_space<vmem>>, vector<28x14xf32>
    %cst_243 = arith.constant dense<0.000000e+00> : vector<28x256xf32>
    %526 = tpu.matmul %525, %524, %cst_243 {dimension_numbers = #tpu.dot_dimension_numbers<[1], [0], [0], [1], [0, 0, 1, 1], [], []>} : vector<28x14xf32>, vector<14x256xf32>, vector<28x256xf32> -> vector<28x256xf32>
    %527 = vector.extract_strided_slice %526 {offsets = [0, 0], sizes = [4, 256], strides = [1, 1]} : vector<28x256xf32> to vector<4x256xf32>
    %c3_i32_244 = arith.constant 3 : i32
    %528 = tpu.dynamic_rotate %527 by %c3_i32_244 dim 1 : vector<4x256xf32>, i32 -> vector<4x256xf32>
    %c37_245 = arith.constant 37 : index
    %c0_246 = arith.constant 0 : index
    %529 = vector.load %arg20[%c37_245, %c0_246] : memref<44x256xf32, #tpu.memory_space<vmem>>, vector<1x256xf32>
    %530 = vector.broadcast %529 : vector<1x256xf32> to vector<4x256xf32>
    %531 = arith.mulf %528, %530 : vector<4x256xf32>
    %532 = vector.extract_strided_slice %526 {offsets = [4, 0], sizes = [4, 256], strides = [1, 1]} : vector<28x256xf32> to vector<4x256xf32>
    %c2_i32_247 = arith.constant 2 : i32
    %533 = tpu.dynamic_rotate %532 by %c2_i32_247 dim 1 : vector<4x256xf32>, i32 -> vector<4x256xf32>
    %c38_248 = arith.constant 38 : index
    %c0_249 = arith.constant 0 : index
    %534 = vector.load %arg20[%c38_248, %c0_249] : memref<44x256xf32, #tpu.memory_space<vmem>>, vector<1x256xf32>
    %535 = vector.broadcast %534 : vector<1x256xf32> to vector<4x256xf32>
    %536 = arith.mulf %533, %535 : vector<4x256xf32>
    %537 = vector.extract_strided_slice %526 {offsets = [8, 0], sizes = [4, 256], strides = [1, 1]} : vector<28x256xf32> to vector<4x256xf32>
    %c1_i32_250 = arith.constant 1 : i32
    %538 = tpu.dynamic_rotate %537 by %c1_i32_250 dim 1 : vector<4x256xf32>, i32 -> vector<4x256xf32>
    %c39_251 = arith.constant 39 : index
    %c0_252 = arith.constant 0 : index
    %539 = vector.load %arg20[%c39_251, %c0_252] : memref<44x256xf32, #tpu.memory_space<vmem>>, vector<1x256xf32>
    %540 = vector.broadcast %539 : vector<1x256xf32> to vector<4x256xf32>
    %541 = arith.mulf %538, %540 : vector<4x256xf32>
    %542 = vector.extract_strided_slice %526 {offsets = [12, 0], sizes = [4, 256], strides = [1, 1]} : vector<28x256xf32> to vector<4x256xf32>
    %543 = vector.extract_strided_slice %526 {offsets = [16, 0], sizes = [4, 256], strides = [1, 1]} : vector<28x256xf32> to vector<4x256xf32>
    %c255_i32_253 = arith.constant 255 : i32
    %544 = tpu.dynamic_rotate %543 by %c255_i32_253 dim 1 : vector<4x256xf32>, i32 -> vector<4x256xf32>
    %c41_254 = arith.constant 41 : index
    %c0_255 = arith.constant 0 : index
    %545 = vector.load %arg20[%c41_254, %c0_255] : memref<44x256xf32, #tpu.memory_space<vmem>>, vector<1x256xf32>
    %546 = vector.broadcast %545 : vector<1x256xf32> to vector<4x256xf32>
    %547 = arith.mulf %544, %546 : vector<4x256xf32>
    %548 = vector.extract_strided_slice %526 {offsets = [20, 0], sizes = [4, 256], strides = [1, 1]} : vector<28x256xf32> to vector<4x256xf32>
    %c254_i32_256 = arith.constant 254 : i32
    %549 = tpu.dynamic_rotate %548 by %c254_i32_256 dim 1 : vector<4x256xf32>, i32 -> vector<4x256xf32>
    %c42_257 = arith.constant 42 : index
    %c0_258 = arith.constant 0 : index
    %550 = vector.load %arg20[%c42_257, %c0_258] : memref<44x256xf32, #tpu.memory_space<vmem>>, vector<1x256xf32>
    %551 = vector.broadcast %550 : vector<1x256xf32> to vector<4x256xf32>
    %552 = arith.mulf %549, %551 : vector<4x256xf32>
    %553 = vector.extract_strided_slice %526 {offsets = [24, 0], sizes = [4, 256], strides = [1, 1]} : vector<28x256xf32> to vector<4x256xf32>
    %c253_i32_259 = arith.constant 253 : i32
    %554 = tpu.dynamic_rotate %553 by %c253_i32_259 dim 1 : vector<4x256xf32>, i32 -> vector<4x256xf32>
    %c43_260 = arith.constant 43 : index
    %c0_261 = arith.constant 0 : index
    %555 = vector.load %arg20[%c43_260, %c0_261] : memref<44x256xf32, #tpu.memory_space<vmem>>, vector<1x256xf32>
    %556 = vector.broadcast %555 : vector<1x256xf32> to vector<4x256xf32>
    %557 = arith.mulf %554, %556 : vector<4x256xf32>
    %558 = arith.addf %531, %536 : vector<4x256xf32>
    %559 = arith.addf %541, %542 : vector<4x256xf32>
    %560 = arith.addf %547, %552 : vector<4x256xf32>
    %561 = arith.addf %558, %559 : vector<4x256xf32>
    %562 = arith.addf %560, %557 : vector<4x256xf32>
    %563 = arith.addf %561, %562 : vector<4x256xf32>
    %c0_262 = arith.constant 0 : index
    %c0_263 = arith.constant 0 : index
    %564 = vector.load %arg15[%c0_262, %c0_263] : memref<4x1xf32, #tpu.memory_space<vmem>>, vector<4x1xf32>
    %565 = vector.broadcast %564 : vector<4x1xf32> to vector<4x256xf32>
    %566 = arith.addf %563, %565 : vector<4x256xf32>
    %567 = arith.negf %566 : vector<4x256xf32>
    %568 = math.exp %567 : vector<4x256xf32>
    %cst_264 = arith.constant 1.000000e+00 : f32
    %569 = vector.broadcast %cst_264 : f32 to vector<4x256xf32>
    %570 = arith.addf %569, %568 : vector<4x256xf32>
    %571 = arith.divf %569, %570 : vector<4x256xf32>
    %572 = vector.extract_strided_slice %571 {offsets = [0, 0], sizes = [1, 256], strides = [1, 1]} : vector<4x256xf32> to vector<1x256xf32>
    %573 = vector.broadcast %572 : vector<1x256xf32> to vector<16x256xf32>
    %574 = arith.mulf %486, %573 : vector<16x256xf32>
    %575 = vector.extract_strided_slice %571 {offsets = [1, 0], sizes = [1, 256], strides = [1, 1]} : vector<4x256xf32> to vector<1x256xf32>
    %576 = vector.broadcast %575 : vector<1x256xf32> to vector<16x256xf32>
    %577 = arith.mulf %480, %576 : vector<16x256xf32>
    %578 = arith.addf %574, %577 : vector<16x256xf32>
    %579 = vector.extract_strided_slice %571 {offsets = [2, 0], sizes = [1, 256], strides = [1, 1]} : vector<4x256xf32> to vector<1x256xf32>
    %580 = vector.broadcast %579 : vector<1x256xf32> to vector<16x256xf32>
    %581 = arith.mulf %426, %580 : vector<16x256xf32>
    %582 = arith.addf %578, %581 : vector<16x256xf32>
    %583 = vector.extract_strided_slice %571 {offsets = [3, 0], sizes = [1, 256], strides = [1, 1]} : vector<4x256xf32> to vector<1x256xf32>
    %584 = vector.broadcast %583 : vector<1x256xf32> to vector<16x256xf32>
    %585 = arith.mulf %292, %584 : vector<16x256xf32>
    %586 = arith.addf %582, %585 : vector<16x256xf32>
    %c0_265 = arith.constant 0 : index
    %c0_266 = arith.constant 0 : index
    %587 = vector.load %arg16[%c0_265, %c0_266] : memref<16x16xf32, #tpu.memory_space<vmem>>, vector<16x16xf32>
    %cst_267 = arith.constant dense<0.000000e+00> : vector<16x256xf32>
    %588 = tpu.matmul %587, %586, %cst_267 {dimension_numbers = #tpu.dot_dimension_numbers<[1], [0], [0], [1], [0, 0, 1, 1], [], []>} : vector<16x16xf32>, vector<16x256xf32>, vector<16x256xf32> -> vector<16x256xf32>
    %c0_268 = arith.constant 0 : index
    %c0_269 = arith.constant 0 : index
    %589 = vector.load %arg17[%c0_268, %c0_269] : memref<16x1xf32, #tpu.memory_space<vmem>>, vector<16x1xf32>
    %590 = vector.broadcast %589 : vector<16x1xf32> to vector<16x256xf32>
    %591 = arith.addf %588, %590 : vector<16x256xf32>
    %592 = arith.mulf %46, %591 : vector<16x256xf32>
    %c0_270 = arith.constant 0 : index
    %c0_271 = arith.constant 0 : index
    %593 = vector.load %arg18[%c0_270, %c0_271] : memref<16x16xf32, #tpu.memory_space<vmem>>, vector<16x16xf32>
    %cst_272 = arith.constant dense<0.000000e+00> : vector<16x256xf32>
    %594 = tpu.matmul %593, %592, %cst_272 {dimension_numbers = #tpu.dot_dimension_numbers<[1], [0], [0], [1], [0, 0, 1, 1], [], []>} : vector<16x16xf32>, vector<16x256xf32>, vector<16x256xf32> -> vector<16x256xf32>
    %c0_273 = arith.constant 0 : index
    %c0_274 = arith.constant 0 : index
    %595 = vector.load %arg19[%c0_273, %c0_274] : memref<16x1xf32, #tpu.memory_space<vmem>>, vector<16x1xf32>
    %596 = vector.broadcast %595 : vector<16x1xf32> to vector<16x256xf32>
    %597 = arith.addf %594, %596 : vector<16x256xf32>
    %c0_275 = arith.constant 0 : index
    %c0_276 = arith.constant 0 : index
    %c0_277 = arith.constant 0 : index
    %598 = vector.load %arg21[%c0_275, %c0_276, %c0_277] : memref<1x16x256xf32, #tpu.memory_space<vmem>>, vector<1x16x256xf32>
    %599 = vector.shape_cast %598 : vector<1x16x256xf32> to vector<16x256xf32>
    %600 = vector.shape_cast %597 : vector<16x256xf32> to vector<1x16x256xf32>
    tpu.vector_store %arg21[%c0_275, %c0_276, %c0_277], %600 {strides = array<i32>} : memref<1x16x256xf32, #tpu.memory_space<vmem>>, vector<1x16x256xf32>,
    return
  }
  func.func @transform_0(%arg0: i32) -> (i32, i32, i32) {
    %c0_i32 = arith.constant 0 : i32
    %c0_i32_0 = arith.constant 0 : i32
    %c0_i32_1 = arith.constant 0 : i32
    return %arg0, %c0_i32, %c0_i32_0 : i32, i32, i32
  }
  func.func @transform_1(%arg0: i32) -> (i32, i32) {
    %c0_i32 = arith.constant 0 : i32
    %c0_i32_0 = arith.constant 0 : i32
    %c0_i32_1 = arith.constant 0 : i32
    return %c0_i32, %c0_i32_0 : i32, i32
  }
  func.func @transform_2(%arg0: i32) -> (i32, i32) {
    %c0_i32 = arith.constant 0 : i32
    %c0_i32_0 = arith.constant 0 : i32
    %c0_i32_1 = arith.constant 0 : i32
    return %c0_i32, %c0_i32_0 : i32, i32
  }
  func.func @transform_3(%arg0: i32) -> (i32, i32) {
    %c0_i32 = arith.constant 0 : i32
    %c0_i32_0 = arith.constant 0 : i32
    %c0_i32_1 = arith.constant 0 : i32
    return %c0_i32, %c0_i32_0 : i32, i32
  }
  func.func @transform_4(%arg0: i32) -> (i32, i32) {
    %c0_i32 = arith.constant 0 : i32
    %c0_i32_0 = arith.constant 0 : i32
    %c0_i32_1 = arith.constant 0 : i32
    return %c0_i32, %c0_i32_0 : i32, i32
  }
  func.func @transform_5(%arg0: i32) -> (i32, i32, i32) {
    %c0_i32 = arith.constant 0 : i32
    %c0_i32_0 = arith.constant 0 : i32
    %c0_i32_1 = arith.constant 0 : i32
    %c0_i32_2 = arith.constant 0 : i32
    return %c0_i32, %c0_i32_0, %c0_i32_1 : i32, i32, i32
  }
  func.func @transform_6(%arg0: i32) -> (i32, i32) {
    %c0_i32 = arith.constant 0 : i32
    %c0_i32_0 = arith.constant 0 : i32
    %c0_i32_1 = arith.constant 0 : i32
    return %c0_i32, %c0_i32_0 : i32, i32
  }
  func.func @transform_7(%arg0: i32) -> (i32, i32) {
    %c0_i32 = arith.constant 0 : i32
    %c0_i32_0 = arith.constant 0 : i32
    %c0_i32_1 = arith.constant 0 : i32
    return %c0_i32, %c0_i32_0 : i32, i32
  }
  func.func @transform_8(%arg0: i32) -> (i32, i32) {
    %c0_i32 = arith.constant 0 : i32
    %c0_i32_0 = arith.constant 0 : i32
    %c0_i32_1 = arith.constant 0 : i32
    return %c0_i32, %c0_i32_0 : i32, i32
  }
  func.func @transform_9(%arg0: i32) -> (i32, i32) {
    %c0_i32 = arith.constant 0 : i32
    %c0_i32_0 = arith.constant 0 : i32
    %c0_i32_1 = arith.constant 0 : i32
    return %c0_i32, %c0_i32_0 : i32, i32
  }
  func.func @transform_10(%arg0: i32) -> (i32, i32) {
    %c0_i32 = arith.constant 0 : i32
    %c0_i32_0 = arith.constant 0 : i32
    %c0_i32_1 = arith.constant 0 : i32
    return %c0_i32, %c0_i32_0 : i32, i32
  }
  func.func @transform_11(%arg0: i32) -> (i32, i32) {
    %c0_i32 = arith.constant 0 : i32
    %c0_i32_0 = arith.constant 0 : i32
    %c0_i32_1 = arith.constant 0 : i32
    return %c0_i32, %c0_i32_0 : i32, i32
  }
  func.func @transform_12(%arg0: i32) -> (i32, i32) {
    %c0_i32 = arith.constant 0 : i32
    %c0_i32_0 = arith.constant 0 : i32
    %c0_i32_1 = arith.constant 0 : i32
    return %c0_i32, %c0_i32_0 : i32, i32
  }
  func.func @transform_13(%arg0: i32) -> (i32, i32) {
    %c0_i32 = arith.constant 0 : i32
    %c0_i32_0 = arith.constant 0 : i32
    %c0_i32_1 = arith.constant 0 : i32
    return %c0_i32, %c0_i32_0 : i32, i32
  }
  func.func @transform_14(%arg0: i32) -> (i32, i32) {
    %c0_i32 = arith.constant 0 : i32
    %c0_i32_0 = arith.constant 0 : i32
    %c0_i32_1 = arith.constant 0 : i32
    return %c0_i32, %c0_i32_0 : i32, i32
  }
  func.func @transform_15(%arg0: i32) -> (i32, i32) {
    %c0_i32 = arith.constant 0 : i32
    %c0_i32_0 = arith.constant 0 : i32
    %c0_i32_1 = arith.constant 0 : i32
    return %c0_i32, %c0_i32_0 : i32, i32
  }
  func.func @transform_16(%arg0: i32) -> (i32, i32) {
    %c0_i32 = arith.constant 0 : i32
    %c0_i32_0 = arith.constant 0 : i32
    %c0_i32_1 = arith.constant 0 : i32
    return %c0_i32, %c0_i32_0 : i32, i32
  }
  func.func @transform_17(%arg0: i32) -> (i32, i32) {
    %c0_i32 = arith.constant 0 : i32
    %c0_i32_0 = arith.constant 0 : i32
    %c0_i32_1 = arith.constant 0 : i32
    return %c0_i32, %c0_i32_0 : i32, i32
  }
  func.func @transform_18(%arg0: i32) -> (i32, i32) {
    %c0_i32 = arith.constant 0 : i32
    %c0_i32_0 = arith.constant 0 : i32
    %c0_i32_1 = arith.constant 0 : i32
    return %c0_i32, %c0_i32_0 : i32, i32
  }
  func.func @transform_19(%arg0: i32) -> (i32, i32) {
    %c0_i32 = arith.constant 0 : i32
    %c0_i32_0 = arith.constant 0 : i32
    %c0_i32_1 = arith.constant 0 : i32
    return %c0_i32, %c0_i32_0 : i32, i32
  }
  func.func @transform_20(%arg0: i32) -> (i32, i32, i32) {
    %c0_i32 = arith.constant 0 : i32
    %c0_i32_0 = arith.constant 0 : i32
    %c0_i32_1 = arith.constant 0 : i32
    return %arg0, %c0_i32, %c0_i32_0 : i32, i32, i32
  }
}

</mosaic_0001>

<llo_original>
// kernel: cisb_forward.1
$region0: #{cisb_forward.1}
  #allocation0 [shape = 'u32[]', space=smem, size = 0x4, offset = 0x4, fixed_abs, tag = 'smem constant byte address 0x4 - core index']
  #allocation1 [shape = 'u32[144,128]{1,0:T(1,128)}', space=vmem, size = 0x12000, scoped, tag = 'internal scratch']
  %s0 = inlined_call_operand.vmem [shape: f32[2,16,256], index: 0, kind: input, shape index: {}]
  %s1 = inlined_call_operand.vmem [shape: f32[16,16], index: 1, kind: input, shape index: {}]
  %s2 = inlined_call_operand.vmem [shape: f32[16,1], index: 2, kind: input, shape index: {}]
  %s3 = inlined_call_operand.vmem [shape: f32[16,1], index: 3, kind: input, shape index: {}]
  %s4 = inlined_call_operand.vmem [shape: f32[16,1], index: 4, kind: input, shape index: {}]
  %s5 = inlined_call_operand.vmem [shape: f32[9,16,16], index: 5, kind: input, shape index: {}]
  %s6 = inlined_call_operand.vmem [shape: f32[16,1], index: 6, kind: input, shape index: {}]
  %s7 = inlined_call_operand.vmem [shape: f32[16,25], index: 7, kind: input, shape index: {}]
  %s8 = inlined_call_operand.vmem [shape: f32[16,1], index: 8, kind: input, shape index: {}]
  %s9 = inlined_call_operand.vmem [shape: f32[16,49], index: 9, kind: input, shape index: {}]
  %s10 = inlined_call_operand.vmem [shape: f32[16,1], index: 10, kind: input, shape index: {}]
  %s11 = inlined_call_operand.vmem [shape: f32[16,64], index: 11, kind: input, shape index: {}]
  %s12 = inlined_call_operand.vmem [shape: f32[16,1], index: 12, kind: input, shape index: {}]
  %s13 = inlined_call_operand.vmem [shape: f32[28,14], index: 13, kind: input, shape index: {}]
  %s14 = inlined_call_operand.vmem [shape: f32[4,1], index: 14, kind: input, shape index: {}]
  %s15 = inlined_call_operand.vmem [shape: f32[16,16], index: 15, kind: input, shape index: {}]
  %s16 = inlined_call_operand.vmem [shape: f32[16,1], index: 16, kind: input, shape index: {}]
  %s17 = inlined_call_operand.vmem [shape: f32[16,16], index: 17, kind: input, shape index: {}]
  %s18 = inlined_call_operand.vmem [shape: f32[16,1], index: 18, kind: input, shape index: {}]
  %s19 = inlined_call_operand.vmem [shape: f32[44,256], index: 19, kind: input, shape index: {}]
  %s20 = inlined_call_operand.vmem [shape: f32[2,16,256], index: 20, kind: output, shape index: {}]
  %s21 = sld [smem:[#allocation0]]
  $region113: #{cisb_forward.1} parent=0
    _
  %s23 = ssub.s32 1, %s21
  %s24 = scalar_select 0, %s23, %s21
  loop: start=0, step=1, limit=4
  $region2: #{cisb_forward.1} parent=0 // loop_pre_header
    _
  $region3: #{cisb_forward.1} parent=0 // loop_header
    %s26 = sphi 0, %s30
    %p27 = scmp.ge.s32.totalorder %s26, 4
    %s36 = sphi 0, %s38
    %s39 = sphi 0, %s36
    %s40 = sphi 0, %s39
    %s56 = sphi 0, %s40
    %s60 = sphi 0, %s60
    %s62 = sphi 0, %s60
    %s63 = sphi 0, %s62
    %s77 = sphi 0, %s63
    %s81 = sphi 0, %s81
    %s83 = sphi 0, %s81
    %s84 = sphi 0, %s83
    %s98 = sphi 0, %s84
    %s102 = sphi 0, %s102
    %s104 = sphi 0, %s102
    %s105 = sphi 0, %s104
    %s119 = sphi 0, %s105
    %s123 = sphi 0, %s123
    %s125 = sphi 0, %s123
    %s126 = sphi 0, %s125
    %s140 = sphi 0, %s126
    %s144 = sphi 0, %s144
    %s146 = sphi 0, %s144
    %s147 = sphi 0, %s146
    %s161 = sphi 0, %s147
    %s165 = sphi 0, %s165
    %s167 = sphi 0, %s165
    %s168 = sphi 0, %s167
    %s182 = sphi 0, %s168
    %s186 = sphi 0, %s186
    %s188 = sphi 0, %s186
    %s189 = sphi 0, %s188
    %s203 = sphi 0, %s189
    %s207 = sphi 0, %s207
    %s209 = sphi 0, %s207
    %s210 = sphi 0, %s209
    %s224 = sphi 0, %s210
    %s228 = sphi 0, %s228
    %s230 = sphi 0, %s228
    %s231 = sphi 0, %s230
    %s245 = sphi 0, %s231
    %s249 = sphi 0, %s249
    %s251 = sphi 0, %s249
    %s252 = sphi 0, %s251
    %s266 = sphi 0, %s252
    %s270 = sphi 0, %s270
    %s272 = sphi 0, %s270
    %s273 = sphi 0, %s272
    %s287 = sphi 0, %s273
    %s291 = sphi 0, %s291
    %s293 = sphi 0, %s291
    %s294 = sphi 0, %s293
    %s308 = sphi 0, %s294
    %s312 = sphi 0, %s312
    %s314 = sphi 0, %s312
    %s315 = sphi 0, %s314
    %s329 = sphi 0, %s315
    %s333 = sphi 0, %s333
    %s335 = sphi 0, %s333
    %s336 = sphi 0, %s335
    %s350 = sphi 0, %s336
    %s354 = sphi 0, %s354
    %s356 = sphi 0, %s354
    %s357 = sphi 0, %s356
    %s371 = sphi 0, %s357
    %s375 = sphi 0, %s375
    %s377 = sphi 0, %s375
    %s378 = sphi 0, %s377
    %s392 = sphi 0, %s378
    %s396 = sphi 0, %s396
    %s398 = sphi 0, %s396
    %s399 = sphi 0, %s398
    %s413 = sphi 0, %s399
    %s417 = sphi 0, %s417
    %s419 = sphi 0, %s417
    %s420 = sphi 0, %s419
    %s434 = sphi 0, %s420
    %s438 = sphi 0, %s438
    %s440 = sphi 0, %s438
    %s441 = sphi 0, %s440
    %s455 = sphi 0, %s441
    %s461 = sphi 0, %s463
    %s464 = sphi 0, %s461
    %s465 = sphi 0, %s464
    %s481 = sphi 0, %s465
  $region4: #{cisb_forward.1} parent=0 // loop_header_branch
    %29 = sbr.rel (%p27) target = $region8
  $region5: #{cisb_forward.1} parent=0 // loop_body
    %s31 = ssub.s32 %s26, 1
    %s32 = ssub.s32 %s26, 2
    %s33 = sadd.s32 %s26, 1
    %s34 = ssub.s32 %s26, %s33
    %p35 = scmp.eq.s32.totalorder %s34, 0
    %s37 = sadd.s32 %s36, 1
    %s38 = scalar_select %p35, %s36, %s37
    %p41 = pneg %p35
    %p42 = scmp.eq.s32.totalorder %s26, 1
    %p43 = por %p41, %p42
    %p44 = scmp.ne.s32.totalorder %s36, %s39
    %p45 = scmp.eq.s32.totalorder %s26, 0
    %p46 = por %p44, %p45
    %p47 = scmp.ne.s32.totalorder %s36, %s39
    %p48 = scmp.eq.s32.totalorder %s31, 1
    %p49 = por %p47, %p48
    %p50 = scmp.ne.s32.totalorder %s39, %s40
    %p51 = scmp.eq.s32.totalorder %s31, 0
    %p52 = por %p50, %p51
    %p53 = scmp.ne.s32.totalorder %s39, %s40
    %p54 = scmp.eq.s32.totalorder %s32, 1
    %p55 = por %p53, %p54
    %p57 = scmp.ne.s32.totalorder %s40, %s56
    %p58 = scmp.eq.s32.totalorder %s32, 0
    %p59 = por %p57, %p58
    %s61 = sadd.s32 %s60, 1
    %p64 = scmp.eq.s32.totalorder %s26, 1
    %p65 = scmp.ne.s32.totalorder %s60, %s62
    %p66 = scmp.eq.s32.totalorder %s26, 0
    %p67 = por %p65, %p66
    %p68 = scmp.ne.s32.totalorder %s60, %s62
    %p69 = scmp.eq.s32.totalorder %s31, 1
    %p70 = por %p68, %p69
    %p71 = scmp.ne.s32.totalorder %s62, %s63
    %p72 = scmp.eq.s32.totalorder %s31, 0
    %p73 = por %p71, %p72
    %p74 = scmp.ne.s32.totalorder %s62, %s63
    %p75 = scmp.eq.s32.totalorder %s32, 1
    %p76 = por %p74, %p75
    %p78 = scmp.ne.s32.totalorder %s63, %s77
    %p79 = scmp.eq.s32.totalorder %s32, 0
    %p80 = por %p78, %p79
    %s82 = sadd.s32 %s81, 1
    %p85 = scmp.eq.s32.totalorder %s26, 1
    %p86 = scmp.ne.s32.totalorder %s81, %s83
    %p87 = scmp.eq.s32.totalorder %s26, 0
    %p88 = por %p86, %p87
    %p89 = scmp.ne.s32.totalorder %s81, %s83
    %p90 = scmp.eq.s32.totalorder %s31, 1
    %p91 = por %p89, %p90
    %p92 = scmp.ne.s32.totalorder %s83, %s84
    %p93 = scmp.eq.s32.totalorder %s31, 0
    %p94 = por %p92, %p93
    %p95 = scmp.ne.s32.totalorder %s83, %s84
    %p96 = scmp.eq.s32.totalorder %s32, 1
    %p97 = por %p95, %p96
    %p99 = scmp.ne.s32.totalorder %s84, %s98
    %p100 = scmp.eq.s32.totalorder %s32, 0
    %p101 = por %p99, %p100
    %s103 = sadd.s32 %s102, 1
    %p106 = scmp.eq.s32.totalorder %s26, 1
    %p107 = scmp.ne.s32.totalorder %s102, %s104
    %p108 = scmp.eq.s32.totalorder %s26, 0
    %p109 = por %p107, %p108
    %p110 = scmp.ne.s32.totalorder %s102, %s104
    %p111 = scmp.eq.s32.totalorder %s31, 1
    %p112 = por %p110, %p111
    %p113 = scmp.ne.s32.totalorder %s104, %s105
    %p114 = scmp.eq.s32.totalorder %s31, 0
    %p115 = por %p113, %p114
    %p116 = scmp.ne.s32.totalorder %s104, %s105
    %p117 = scmp.eq.s32.totalorder %s32, 1
    %p118 = por %p116, %p117
    %p120 = scmp.ne.s32.totalorder %s105, %s119
    %p121 = scmp.eq.s32.totalorder %s32, 0
    %p122 = por %p120, %p121
    %s124 = sadd.s32 %s123, 1
    %p127 = scmp.eq.s32.totalorder %s26, 1
    %p128 = scmp.ne.s32.totalorder %s123, %s125
    %p129 = scmp.eq.s32.totalorder %s26, 0
    %p130 = por %p128, %p129
    %p131 = scmp.ne.s32.totalorder %s123, %s125
    %p132 = scmp.eq.s32.totalorder %s31, 1
    %p133 = por %p131, %p132
    %p134 = scmp.ne.s32.totalorder %s125, %s126
    %p135 = scmp.eq.s32.totalorder %s31, 0
    %p136 = por %p134, %p135
    %p137 = scmp.ne.s32.totalorder %s125, %s126
    %p138 = scmp.eq.s32.totalorder %s32, 1
    %p139 = por %p137, %p138
    %p141 = scmp.ne.s32.totalorder %s126, %s140
    %p142 = scmp.eq.s32.totalorder %s32, 0
    %p143 = por %p141, %p142
    %s145 = sadd.s32 %s144, 1
    %p148 = scmp.eq.s32.totalorder %s26, 1
    %p149 = scmp.ne.s32.totalorder %s144, %s146
    %p150 = scmp.eq.s32.totalorder %s26, 0
    %p151 = por %p149, %p150
    %p152 = scmp.ne.s32.totalorder %s144, %s146
    %p153 = scmp.eq.s32.totalorder %s31, 1
    %p154 = por %p152, %p153
    %p155 = scmp.ne.s32.totalorder %s146, %s147
    %p156 = scmp.eq.s32.totalorder %s31, 0
    %p157 = por %p155, %p156
    %p158 = scmp.ne.s32.totalorder %s146, %s147
    %p159 = scmp.eq.s32.totalorder %s32, 1
    %p160 = por %p158, %p159
    %p162 = scmp.ne.s32.totalorder %s147, %s161
    %p163 = scmp.eq.s32.totalorder %s32, 0
    %p164 = por %p162, %p163
    %s166 = sadd.s32 %s165, 1
    %p169 = scmp.eq.s32.totalorder %s26, 1
    %p170 = scmp.ne.s32.totalorder %s165, %s167
    %p171 = scmp.eq.s32.totalorder %s26, 0
    %p172 = por %p170, %p171
    %p173 = scmp.ne.s32.totalorder %s165, %s167
    %p174 = scmp.eq.s32.totalorder %s31, 1
    %p175 = por %p173, %p174
    %p176 = scmp.ne.s32.totalorder %s167, %s168
    %p177 = scmp.eq.s32.totalorder %s31, 0
    %p178 = por %p176, %p177
    %p179 = scmp.ne.s32.totalorder %s167, %s168
    %p180 = scmp.eq.s32.totalorder %s32, 1
    %p181 = por %p179, %p180
    %p183 = scmp.ne.s32.totalorder %s168, %s182
    %p184 = scmp.eq.s32.totalorder %s32, 0
    %p185 = por %p183, %p184
    %s187 = sadd.s32 %s186, 1
    %p190 = scmp.eq.s32.totalorder %s26, 1
    %p191 = scmp.ne.s32.totalorder %s186, %s188
    %p192 = scmp.eq.s32.totalorder %s26, 0
    %p193 = por %p191, %p192
    %p194 = scmp.ne.s32.totalorder %s186, %s188
    %p195 = scmp.eq.s32.totalorder %s31, 1
    %p196 = por %p194, %p195
    %p197 = scmp.ne.s32.totalorder %s188, %s189
    %p198 = scmp.eq.s32.totalorder %s31, 0
    %p199 = por %p197, %p198
    %p200 = scmp.ne.s32.totalorder %s188, %s189
    %p201 = scmp.eq.s32.totalorder %s32, 1
    %p202 = por %p200, %p201
    %p204 = scmp.ne.s32.totalorder %s189, %s203
    %p205 = scmp.eq.s32.totalorder %s32, 0
    %p206 = por %p204, %p205
    %s208 = sadd.s32 %s207, 1
    %p211 = scmp.eq.s32.totalorder %s26, 1
    %p212 = scmp.ne.s32.totalorder %s207, %s209
    %p213 = scmp.eq.s32.totalorder %s26, 0
    %p214 = por %p212, %p213
    %p215 = scmp.ne.s32.totalorder %s207, %s209
    %p216 = scmp.eq.s32.totalorder %s31, 1
    %p217 = por %p215, %p216
    %p218 = scmp.ne.s32.totalorder %s209, %s210
    %p219 = scmp.eq.s32.totalorder %s31, 0
    %p220 = por %p218, %p219
    %p221 = scmp.ne.s32.totalorder %s209, %s210
    %p222 = scmp.eq.s32.totalorder %s32, 1
    %p223 = por %p221, %p222
    %p225 = scmp.ne.s32.totalorder %s210, %s224
    %p226 = scmp.eq.s32.totalorder %s32, 0
    %p227 = por %p225, %p226
    %s229 = sadd.s32 %s228, 1
    %p232 = scmp.eq.s32.totalorder %s26, 1
    %p233 = scmp.ne.s32.totalorder %s228, %s230
    %p234 = scmp.eq.s32.totalorder %s26, 0
    %p235 = por %p233, %p234
    %p236 = scmp.ne.s32.totalorder %s228, %s230
    %p237 = scmp.eq.s32.totalorder %s31, 1
    %p238 = por %p236, %p237
    %p239 = scmp.ne.s32.totalorder %s230, %s231
    %p240 = scmp.eq.s32.totalorder %s31, 0
    %p241 = por %p239, %p240
    %p242 = scmp.ne.s32.totalorder %s230, %s231
    %p243 = scmp.eq.s32.totalorder %s32, 1
    %p244 = por %p242, %p243
    %p246 = scmp.ne.s32.totalorder %s231, %s245
    %p247 = scmp.eq.s32.totalorder %s32, 0
    %p248 = por %p246, %p247
    %s250 = sadd.s32 %s249, 1
    %p253 = scmp.eq.s32.totalorder %s26, 1
    %p254 = scmp.ne.s32.totalorder %s249, %s251
    %p255 = scmp.eq.s32.totalorder %s26, 0
    %p256 = por %p254, %p255
    %p257 = scmp.ne.s32.totalorder %s249, %s251
    %p258 = scmp.eq.s32.totalorder %s31, 1
    %p259 = por %p257, %p258
    %p260 = scmp.ne.s32.totalorder %s251, %s252
    %p261 = scmp.eq.s32.totalorder %s31, 0
    %p262 = por %p260, %p261
    %p263 = scmp.ne.s32.totalorder %s251, %s252
    %p264 = scmp.eq.s32.totalorder %s32, 1
    %p265 = por %p263, %p264
    %p267 = scmp.ne.s32.totalorder %s252, %s266
    %p268 = scmp.eq.s32.totalorder %s32, 0
    %p269 = por %p267, %p268
    %s271 = sadd.s32 %s270, 1
    %p274 = scmp.eq.s32.totalorder %s26, 1
    %p275 = scmp.ne.s32.totalorder %s270, %s272
    %p276 = scmp.eq.s32.totalorder %s26, 0
    %p277 = por %p275, %p276
    %p278 = scmp.ne.s32.totalorder %s270, %s272
    %p279 = scmp.eq.s32.totalorder %s31, 1
    %p280 = por %p278, %p279
    %p281 = scmp.ne.s32.totalorder %s272, %s273
    %p282 = scmp.eq.s32.totalorder %s31, 0
    %p283 = por %p281, %p282
    %p284 = scmp.ne.s32.totalorder %s272, %s273
    %p285 = scmp.eq.s32.totalorder %s32, 1
    %p286 = por %p284, %p285
    %p288 = scmp.ne.s32.totalorder %s273, %s287
    %p289 = scmp.eq.s32.totalorder %s32, 0
    %p290 = por %p288, %p289
    %s292 = sadd.s32 %s291, 1
    %p295 = scmp.eq.s32.totalorder %s26, 1
    %p296 = scmp.ne.s32.totalorder %s291, %s293
    %p297 = scmp.eq.s32.totalorder %s26, 0
    %p298 = por %p296, %p297
    %p299 = scmp.ne.s32.totalorder %s291, %s293
    %p300 = scmp.eq.s32.totalorder %s31, 1
    %p301 = por %p299, %p300
    %p302 = scmp.ne.s32.totalorder %s293, %s294
    %p303 = scmp.eq.s32.totalorder %s31, 0
    %p304 = por %p302, %p303
    %p305 = scmp.ne.s32.totalorder %s293, %s294
    %p306 = scmp.eq.s32.totalorder %s32, 1
    %p307 = por %p305, %p306
    %p309 = scmp.ne.s32.totalorder %s294, %s308
    %p310 = scmp.eq.s32.totalorder %s32, 0
    %p311 = por %p309, %p310
    %s313 = sadd.s32 %s312, 1
    %p316 = scmp.eq.s32.totalorder %s26, 1
    %p317 = scmp.ne.s32.totalorder %s312, %s314
    %p318 = scmp.eq.s32.totalorder %s26, 0
    %p319 = por %p317, %p318
    %p320 = scmp.ne.s32.totalorder %s312, %s314
    %p321 = scmp.eq.s32.totalorder %s31, 1
    %p322 = por %p320, %p321
    %p323 = scmp.ne.s32.totalorder %s314, %s315
    %p324 = scmp.eq.s32.totalorder %s31, 0
    %p325 = por %p323, %p324
    %p326 = scmp.ne.s32.totalorder %s314, %s315
    %p327 = scmp.eq.s32.totalorder %s32, 1
    %p328 = por %p326, %p327
    %p330 = scmp.ne.s32.totalorder %s315, %s329
    %p331 = scmp.eq.s32.totalorder %s32, 0
    %p332 = por %p330, %p331
    %s334 = sadd.s32 %s333, 1
    %p337 = scmp.eq.s32.totalorder %s26, 1
    %p338 = scmp.ne.s32.totalorder %s333, %s335
    %p339 = scmp.eq.s32.totalorder %s26, 0
    %p340 = por %p338, %p339
    %p341 = scmp.ne.s32.totalorder %s333, %s335
    %p342 = scmp.eq.s32.totalorder %s31, 1
    %p343 = por %p341, %p342
    %p344 = scmp.ne.s32.totalorder %s335, %s336
    %p345 = scmp.eq.s32.totalorder %s31, 0
    %p346 = por %p344, %p345
    %p347 = scmp.ne.s32.totalorder %s335, %s336
    %p348 = scmp.eq.s32.totalorder %s32, 1
    %p349 = por %p347, %p348
    %p351 = scmp.ne.s32.totalorder %s336, %s350
    %p352 = scmp.eq.s32.totalorder %s32, 0
    %p353 = por %p351, %p352
    %s355 = sadd.s32 %s354, 1
    %p358 = scmp.eq.s32.totalorder %s26, 1
    %p359 = scmp.ne.s32.totalorder %s354, %s356
    %p360 = scmp.eq.s32.totalorder %s26, 0
    %p361 = por %p359, %p360
    %p362 = scmp.ne.s32.totalorder %s354, %s356
    %p363 = scmp.eq.s32.totalorder %s31, 1
    %p364 = por %p362, %p363
    %p365 = scmp.ne.s32.totalorder %s356, %s357
    %p366 = scmp.eq.s32.totalorder %s31, 0
    %p367 = por %p365, %p366
    %p368 = scmp.ne.s32.totalorder %s356, %s357
    %p369 = scmp.eq.s32.totalorder %s32, 1
    %p370 = por %p368, %p369
    %p372 = scmp.ne.s32.totalorder %s357, %s371
    %p373 = scmp.eq.s32.totalorder %s32, 0
    %p374 = por %p372, %p373
    %s376 = sadd.s32 %s375, 1
    %p379 = scmp.eq.s32.totalorder %s26, 1
    %p380 = scmp.ne.s32.totalorder %s375, %s377
    %p381 = scmp.eq.s32.totalorder %s26, 0
    %p382 = por %p380, %p381
    %p383 = scmp.ne.s32.totalorder %s375, %s377
    %p384 = scmp.eq.s32.totalorder %s31, 1
    %p385 = por %p383, %p384
    %p386 = scmp.ne.s32.totalorder %s377, %s378
    %p387 = scmp.eq.s32.totalorder %s31, 0
    %p388 = por %p386, %p387
    %p389 = scmp.ne.s32.totalorder %s377, %s378
    %p390 = scmp.eq.s32.totalorder %s32, 1
    %p391 = por %p389, %p390
    %p393 = scmp.ne.s32.totalorder %s378, %s392
    %p394 = scmp.eq.s32.totalorder %s32, 0
    %p395 = por %p393, %p394
    %s397 = sadd.s32 %s396, 1
    %p400 = scmp.eq.s32.totalorder %s26, 1
    %p401 = scmp.ne.s32.totalorder %s396, %s398
    %p402 = scmp.eq.s32.totalorder %s26, 0
    %p403 = por %p401, %p402
    %p404 = scmp.ne.s32.totalorder %s396, %s398
    %p405 = scmp.eq.s32.totalorder %s31, 1
    %p406 = por %p404, %p405
    %p407 = scmp.ne.s32.totalorder %s398, %s399
    %p408 = scmp.eq.s32.totalorder %s31, 0
    %p409 = por %p407, %p408
    %p410 = scmp.ne.s32.totalorder %s398, %s399
    %p411 = scmp.eq.s32.totalorder %s32, 1
    %p412 = por %p410, %p411
    %p414 = scmp.ne.s32.totalorder %s399, %s413
    %p415 = scmp.eq.s32.totalorder %s32, 0
    %p416 = por %p414, %p415
    %s418 = sadd.s32 %s417, 1
    %p421 = scmp.eq.s32.totalorder %s26, 1
    %p422 = scmp.ne.s32.totalorder %s417, %s419
    %p423 = scmp.eq.s32.totalorder %s26, 0
    %p424 = por %p422, %p423
    %p425 = scmp.ne.s32.totalorder %s417, %s419
    %p426 = scmp.eq.s32.totalorder %s31, 1
    %p427 = por %p425, %p426
    %p428 = scmp.ne.s32.totalorder %s419, %s420
    %p429 = scmp.eq.s32.totalorder %s31, 0
    %p430 = por %p428, %p429
    %p431 = scmp.ne.s32.totalorder %s419, %s420
    %p432 = scmp.eq.s32.totalorder %s32, 1
    %p433 = por %p431, %p432
    %p435 = scmp.ne.s32.totalorder %s420, %s434
    %p436 = scmp.eq.s32.totalorder %s32, 0
    %p437 = por %p435, %p436
    %s439 = sadd.s32 %s438, 1
    %p442 = scmp.eq.s32.totalorder %s26, 1
    %p443 = scmp.ne.s32.totalorder %s438, %s440
    %p444 = scmp.eq.s32.totalorder %s26, 0
    %p445 = por %p443, %p444
    %p446 = scmp.ne.s32.totalorder %s438, %s440
    %p447 = scmp.eq.s32.totalorder %s31, 1
    %p448 = por %p446, %p447
    %p449 = scmp.ne.s32.totalorder %s440, %s441
    %p450 = scmp.eq.s32.totalorder %s31, 0
    %p451 = por %p449, %p450
    %p452 = scmp.ne.s32.totalorder %s440, %s441
    %p453 = scmp.eq.s32.totalorder %s32, 1
    %p454 = por %p452, %p453
    %p456 = scmp.ne.s32.totalorder %s441, %s455
    %p457 = scmp.eq.s32.totalorder %s32, 0
    %p458 = por %p456, %p457
    %s459 = ssub.s32 %s26, %s33
    %p460 = scmp.eq.s32.totalorder %s459, 0
    %s462 = sadd.s32 %s461, 1
    %s463 = scalar_select %p460, %s461, %s462
    %p466 = pneg %p460
    %p467 = scmp.eq.s32.totalorder %s26, 1
    %p468 = por %p466, %p467
    %p469 = scmp.ne.s32.totalorder %s461, %s464
    %p470 = scmp.eq.s32.totalorder %s26, 0
    %p471 = por %p469, %p470
    %p472 = scmp.ne.s32.totalorder %s461, %s464
    %p473 = scmp.eq.s32.totalorder %s31, 1
    %p474 = por %p472, %p473
    %p475 = scmp.ne.s32.totalorder %s464, %s465
    %p476 = scmp.eq.s32.totalorder %s31, 0
    %p477 = por %p475, %p476
    %p478 = scmp.ne.s32.totalorder %s464, %s465
    %p479 = scmp.eq.s32.totalorder %s32, 1
    %p480 = por %p478, %p479
    %p482 = scmp.ne.s32.totalorder %s465, %s481
    %p483 = scmp.eq.s32.totalorder %s32, 0
    %p484 = por %p482, %p483
    %p485 = scmp.le.s32.totalorder 1, %s26
    %p486 = scmp.lt.s32.totalorder %s26, 3
    %p487 = pnand %p485, %p486
    %p488 = pneg %p487
    // Predicated region
    $region9: #{cisb_forward.1} parent=5 // pred_check
      _
    $region10: #{cisb_forward.1} parent=5 // pred_check_branch
      %490 = sbr.rel (%p487) target = $region12
    $region11: #{cisb_forward.1} parent=5 // pred_region
      %s491 = ssub.s32 %s26, 1
      // Predicated region
      $region13: #{cisb_forward.1} parent=11 // pred_check
        %p492 = pneg %p73
      $region14: #{cisb_forward.1} parent=11 // pred_check_branch
        %494 = sbr.rel (%p492) target = $region16
      $region15: #{cisb_forward.1} parent=11 // pred_region
        _
      $region16: #{cisb_forward.1} parent=11 // pred_fallthru
        _
      // Predicated region
      $region17: #{cisb_forward.1} parent=11 // pred_check
        %p495 = pneg %p94
      $region18: #{cisb_forward.1} parent=11 // pred_check_branch
        %497 = sbr.rel (%p495) target = $region20
      $region19: #{cisb_forward.1} parent=11 // pred_region
        _
      $region20: #{cisb_forward.1} parent=11 // pred_fallthru
        _
      // Predicated region
      $region21: #{cisb_forward.1} parent=11 // pred_check
        %p498 = pneg %p115
      $region22: #{cisb_forward.1} parent=11 // pred_check_branch
        %500 = sbr.rel (%p498) target = $region24
      $region23: #{cisb_forward.1} parent=11 // pred_region
        _
      $region24: #{cisb_forward.1} parent=11 // pred_fallthru
        _
      // Predicated region
      $region25: #{cisb_forward.1} parent=11 // pred_check
        %p501 = pneg %p136
      $region26: #{cisb_forward.1} parent=11 // pred_check_branch
        %503 = sbr.rel (%p501) target = $region28
      $region27: #{cisb_forward.1} parent=11 // pred_region
        _
      $region28: #{cisb_forward.1} parent=11 // pred_fallthru
        _
      // Predicated region
      $region29: #{cisb_forward.1} parent=11 // pred_check
        %p504 = pneg %p157
      $region30: #{cisb_forward.1} parent=11 // pred_check_branch
        %506 = sbr.rel (%p504) target = $region32
      $region31: #{cisb_forward.1} parent=11 // pred_region
        _
      $region32: #{cisb_forward.1} parent=11 // pred_fallthru
        _
      // Predicated region
      $region33: #{cisb_forward.1} parent=11 // pred_check
        %p507 = pneg %p178
      $region34: #{cisb_forward.1} parent=11 // pred_check_branch
        %509 = sbr.rel (%p507) target = $region36
      $region35: #{cisb_forward.1} parent=11 // pred_region
        _
      $region36: #{cisb_forward.1} parent=11 // pred_fallthru
        _
      // Predicated region
      $region37: #{cisb_forward.1} parent=11 // pred_check
        %p510 = pneg %p199
      $region38: #{cisb_forward.1} parent=11 // pred_check_branch
        %512 = sbr.rel (%p510) target = $region40
      $region39: #{cisb_forward.1} parent=11 // pred_region
        _
      $region40: #{cisb_forward.1} parent=11 // pred_fallthru
        _
      // Predicated region
      $region41: #{cisb_forward.1} parent=11 // pred_check
        %p513 = pneg %p220
      $region42: #{cisb_forward.1} parent=11 // pred_check_branch
        %515 = sbr.rel (%p513) target = $region44
      $region43: #{cisb_forward.1} parent=11 // pred_region
        _
      $region44: #{cisb_forward.1} parent=11 // pred_fallthru
        _
      // Predicated region
      $region45: #{cisb_forward.1} parent=11 // pred_check
        %p516 = pneg %p241
      $region46: #{cisb_forward.1} parent=11 // pred_check_branch
        %518 = sbr.rel (%p516) target = $region48
      $region47: #{cisb_forward.1} parent=11 // pred_region
        _
      $region48: #{cisb_forward.1} parent=11 // pred_fallthru
        _
      // Predicated region
      $region49: #{cisb_forward.1} parent=11 // pred_check
        %p519 = pneg %p262
      $region50: #{cisb_forward.1} parent=11 // pred_check_branch
        %521 = sbr.rel (%p519) target = $region52
      $region51: #{cisb_forward.1} parent=11 // pred_region
        _
      $region52: #{cisb_forward.1} parent=11 // pred_fallthru
        _
      // Predicated region
      $region53: #{cisb_forward.1} parent=11 // pred_check
        %p522 = pneg %p283
      $region54: #{cisb_forward.1} parent=11 // pred_check_branch
        %524 = sbr.rel (%p522) target = $region56
      $region55: #{cisb_forward.1} parent=11 // pred_region
        _
      $region56: #{cisb_forward.1} parent=11 // pred_fallthru
        _
      // Predicated region
      $region57: #{cisb_forward.1} parent=11 // pred_check
        %p525 = pneg %p304
      $region58: #{cisb_forward.1} parent=11 // pred_check_branch
        %527 = sbr.rel (%p525) target = $region60
      $region59: #{cisb_forward.1} parent=11 // pred_region
        _
      $region60: #{cisb_forward.1} parent=11 // pred_fallthru
        _
      // Predicated region
      $region61: #{cisb_forward.1} parent=11 // pred_check
        %p528 = pneg %p325
      $region62: #{cisb_forward.1} parent=11 // pred_check_branch
        %530 = sbr.rel (%p528) target = $region64
      $region63: #{cisb_forward.1} parent=11 // pred_region
        _
      $region64: #{cisb_forward.1} parent=11 // pred_fallthru
        _
      // Predicated region
      $region65: #{cisb_forward.1} parent=11 // pred_check
        %p531 = pneg %p346
      $region66: #{cisb_forward.1} parent=11 // pred_check_branch
        %533 = sbr.rel (%p531) target = $region68
      $region67: #{cisb_forward.1} parent=11 // pred_region
        _
      $region68: #{cisb_forward.1} parent=11 // pred_fallthru
        _
      // Predicated region
      $region69: #{cisb_forward.1} parent=11 // pred_check
        %p534 = pneg %p367
      $region70: #{cisb_forward.1} parent=11 // pred_check_branch
        %536 = sbr.rel (%p534) target = $region72
      $region71: #{cisb_forward.1} parent=11 // pred_region
        _
      $region72: #{cisb_forward.1} parent=11 // pred_fallthru
        _
      // Predicated region
      $region73: #{cisb_forward.1} parent=11 // pred_check
        %p537 = pneg %p388
      $region74: #{cisb_forward.1} parent=11 // pred_check_branch
        %539 = sbr.rel (%p537) target = $region76
      $region75: #{cisb_forward.1} parent=11 // pred_region
        _
      $region76: #{cisb_forward.1} parent=11 // pred_fallthru
        _
      // Predicated region
      $region77: #{cisb_forward.1} parent=11 // pred_check
        %p540 = pneg %p409
      $region78: #{cisb_forward.1} parent=11 // pred_check_branch
        %542 = sbr.rel (%p540) target = $region80
      $region79: #{cisb_forward.1} parent=11 // pred_region
        _
      $region80: #{cisb_forward.1} parent=11 // pred_fallthru
        _
      // Predicated region
      $region81: #{cisb_forward.1} parent=11 // pred_check
        %p543 = pneg %p430
      $region82: #{cisb_forward.1} parent=11 // pred_check_branch
        %545 = sbr.rel (%p543) target = $region84
      $region83: #{cisb_forward.1} parent=11 // pred_region
        _
      $region84: #{cisb_forward.1} parent=11 // pred_fallthru
        _
      // Predicated region
      $region85: #{cisb_forward.1} parent=11 // pred_check
        %p546 = pneg %p451
      $region86: #{cisb_forward.1} parent=11 // pred_check_branch
        %548 = sbr.rel (%p546) target = $region88
      $region87: #{cisb_forward.1} parent=11 // pred_region
        _
      $region88: #{cisb_forward.1} parent=11 // pred_fallthru
        _
    $region12: #{cisb_forward.1} parent=5 // pred_fallthru
      _
    %p549 = scmp.lt.s32.totalorder %s26, 2
    // Predicated region
    $region89: #{cisb_forward.1} parent=5 // pred_check
      %p550 = pneg %p549
    $region90: #{cisb_forward.1} parent=5 // pred_check_branch
      %552 = sbr.rel (%p550) target = $region92
    $region91: #{cisb_forward.1} parent=5 // pred_region
      // Predicated region
      $region93: #{cisb_forward.1} parent=91 // pred_check
        %p553 = pneg %p46
      $region94: #{cisb_forward.1} parent=91 // pred_check_branch
        %555 = sbr.rel (%p553) target = $region96
      $region95: #{cisb_forward.1} parent=91 // pred_region
        %p556 = scmp.lt.s32.totalorder %s26, 1
        %s557 = scalar_select %p556, %s26, 1
        %s558 = smul.addr %s557, 4
        %s559 = smul.addr %s558, 8
        %s560 = scalar_lea.vmem %s0, %s559
      $region96: #{cisb_forward.1} parent=91 // pred_fallthru
        _
    $region92: #{cisb_forward.1} parent=5 // pred_fallthru
      _
    %p561 = scmp.le.s32.totalorder 1, %s26
    %p562 = scmp.lt.s32.totalorder %s26, 3
    %p563 = pnand %p561, %p562
    %p564 = pneg %p563
    // Predicated region
    $region97: #{cisb_forward.1} parent=5 // pred_check
      _
    $region98: #{cisb_forward.1} parent=5 // pred_check_branch
      %566 = sbr.rel (%p563) target = $region100
    $region99: #{cisb_forward.1} parent=5 // pred_region
      %s567 = ssub.s32 %s26, 1
      %p568 = scmp.lt.s32.totalorder %s31, 1
      %s569 = scalar_select %p568, %s31, 1
      %s570 = smul.addr %s569, 4
      %s571 = smul.addr %s570, 8
      %s572 = scalar_lea.vmem %s0, %s571
      %p573 = pneg %p52
      %p574 = pneg %p49
      %p575 = pneg %p73
      %p576 = pneg %p70
      %p577 = pneg %p94
      %p578 = pneg %p91
      %p579 = pneg %p115
      %p580 = pneg %p112
      %p581 = pneg %p136
      %p582 = pneg %p133
      %p583 = pneg %p157
      %p584 = pneg %p154
      %p585 = pneg %p178
      %p586 = pneg %p175
      %p587 = pneg %p199
      %p588 = pneg %p196
      %p589 = pneg %p220
      %p590 = pneg %p217
      %p591 = pneg %p241
      %p592 = pneg %p238
      %p593 = pneg %p262
      %p594 = pneg %p259
      %p595 = pneg %p283
      %p596 = pneg %p280
      %p597 = pneg %p304
      %p598 = pneg %p301
      %p599 = pneg %p325
      %p600 = pneg %p322
      %p601 = pneg %p346
      %p602 = pneg %p343
      %p603 = pneg %p367
      %p604 = pneg %p364
      %p605 = pneg %p388
      %p606 = pneg %p385
      %p607 = pneg %p409
      %p608 = pneg %p406
      %p609 = pneg %p430
      %p610 = pneg %p427
      %p611 = pneg %p451
      %p612 = pneg %p448
      %p613 = pneg %p477
      %p614 = pneg %p474
      %p615 = scmp.lt.s32.totalorder %s31, 1
      %s616 = scalar_select %p615, %s31, 1
      %s617 = smul.addr %s616, 4
      %s618 = smul.addr %s617, 8
      %s619 = scalar_lea.vmem %s20, %s618
      %p620 = scmp.lt.s32.totalorder %s31, 1
      %s621 = scalar_select %p620, %s31, 1
      %s622 = smul.addr %s621, 4
      %s623 = smul.addr %s622, 8
      %s624 = scalar_lea.vmem %s0, %s623
      %p625 = scmp.lt.s32.totalorder %s31, 1
      %s626 = scalar_select %p625, %s31, 1
      %s627 = smul.addr %s626, 4
      %s628 = smul.addr %s627, 8
      %s629 = scalar_lea.vmem %s20, %s628
      %v630 = vld [vmem:[%s1] sm:$0xff]
      %v631 = vld [vmem:[%s1 + $0x8] sm:$0xff]
      %v632 = vld [vmem:[%s624] sm:$0xff]
      %v633 = vld [vmem:[%s624 + $0x8] sm:$0xff]
      %v634 = vld [vmem:[%s624 + $0x10] sm:$0xff]
      %v635 = vld [vmem:[%s624 + $0x18] sm:$0xff]
      %v636 = vld [vmem:[%s2] sm:$0xff]
      %v637 = vld [vmem:[%s2 + $0x8] sm:$0xff]
      %639 = vset.pattern.permute.xlu0 0
      %640 = vperm.xlu0 %639, %v636
      %v641 = vpop.permute.xlu0 %640
      %644 = vset.pattern.permute.xlu0 0
      %645 = vperm.xlu0 %644, %v637
      %v646 = vpop.permute.xlu0 %645
      %vm648 = vcmask 130048
      %v650 = vsel %vm648, %v630, 0
      %v653 = vsel %vm648, %v631, 0
      %655 = vmatprep.subr.mxu0 0.0
      %656 = vmatpush1.msra.mxu0 0.0
      %657 = vmatprep.subr.mxu0 0.0
      %658 = vmatpush1.msra.mxu0 0.0
      %659 = vmatprep.subr.mxu0 0.0
      %660 = vmatpush1.msra.mxu0 0.0
      %661 = vmatprep.subr.mxu0 0.0
      %662 = vmatpush1.msra.mxu0 0.0
      %663 = vmatprep.subr.mxu0 0.0
      %664 = vmatpush1.msra.mxu0 0.0
      %665 = vmatprep.subr.mxu0 0.0
      %666 = vmatpush1.msra.mxu0 0.0
      %667 = vmatprep.subr.mxu0 0.0
      %668 = vmatpush1.msra.mxu0 0.0
      %669 = vmatprep.subr.mxu0 0.0
      %670 = vmatpush1.msra.mxu0 0.0
      %671 = vmatprep.subr.mxu0 0.0
      %672 = vmatpush1.msra.mxu0 0.0
      %673 = vmatprep.subr.mxu0 0.0
      %674 = vmatpush1.msra.mxu0 0.0
      %675 = vmatprep.subr.mxu0 0.0
      %676 = vmatpush1.msra.mxu0 0.0
      %677 = vmatprep.subr.mxu0 0.0
      %678 = vmatpush1.msra.mxu0 0.0
      %679 = vmatprep.subr.mxu0 0.0
      %680 = vmatpush1.msra.mxu0 0.0
      %681 = vmatprep.subr.mxu0 0.0
      %682 = vmatpush1.msra.mxu0 0.0
      %683 = vmatprep.subr.mxu0 %v635
      %684 = vmatpush1.msra.mxu0 %v634
      %685 = vmatprep.subr.mxu0 %v633
      %686 = vmatpush1.msra.mxu0 %v632
      %687 = vmatprep.subr.mxu0 0.0
      %688 = vmatpush2.msra.mxu0 0.0
      %689 = vmatprep.subr.mxu0 0.0
      %690 = vmatpush2.msra.mxu0 0.0
      %691 = vmatprep.subr.mxu0 0.0
      %692 = vmatpush2.msra.mxu0 0.0
      %693 = vmatprep.subr.mxu0 0.0
      %694 = vmatpush2.msra.mxu0 0.0
      %695 = vmatprep.subr.mxu0 0.0
      %696 = vmatpush2.msra.mxu0 0.0
      %697 = vmatprep.subr.mxu0 0.0
      %698 = vmatpush2.msra.mxu0 0.0
      %699 = vmatprep.subr.mxu0 0.0
      %700 = vmatpush2.msra.mxu0 0.0
      %701 = vmatprep.subr.mxu0 0.0
      %702 = vmatpush2.msra.mxu0 0.0
      %703 = vmatprep.subr.mxu0 0.0
      %704 = vmatpush2.msra.mxu0 0.0
      %705 = vmatprep.subr.mxu0 0.0
      %706 = vmatpush2.msra.mxu0 0.0
      %707 = vmatprep.subr.mxu0 0.0
      %708 = vmatpush2.msra.mxu0 0.0
      %709 = vmatprep.subr.mxu0 0.0
      %710 = vmatpush2.msra.mxu0 0.0
      %711 = vmatprep.subr.mxu0 0.0
      %712 = vmatpush2.msra.mxu0 0.0
      %713 = vmatprep.subr.mxu0 0.0
      %714 = vmatpush2.msra.mxu0 0.0
      %715 = vmatprep.subr.mxu0 0.0
      %716 = vmatpush2.msra.mxu0 0.0
      %717 = vmatprep.subr.mxu0 0.0
      %718 = vmatpush2.msra.mxu0 0.0
      %719 = vmatprep.mubr.f32.mxu0 0.0
      %720 = vmatmul.mubr.f32.gmra.mxu0 %v650
      %v721 = vpop.f32.mrf.mxu0
      %v722 = vadd.f32 %v641, %v721
      %v723 = vpop.f32.mrf.mxu0
      %v724 = vadd.f32 %v641, %v723
      %725 = vmatprep.mubr.f32.mxu0 0.0
      %726 = vmatmul.mubr.f32.gmra.mxu0 %v653
      %v727 = vpop.f32.mrf.mxu0
      %v728 = vadd.f32 %v646, %v727
      %v729 = vpop.f32.mrf.mxu0
      %v730 = vadd.f32 %v646, %v729
      %731 = vdwg.mxu0
      %v732 = vmul.f32 %v722, 0.5
      %v733 = vmul.f32 %v724, 0.5
      %v734 = vmul.f32 %v728, 0.5
      %v735 = vmul.f32 %v730, 0.5
      %v736 = vmul.f32 %v722, 0.70710677
      %v737 = vmul.f32 %v724, 0.70710677
      %v738 = vmul.f32 %v728, 0.70710677
      %v739 = vmul.f32 %v730, 0.70710677
      %vm740 = vcmp.ge.f32.partialorder %v736, 0.0
      %vm741 = vcmp.ge.f32.partialorder %v737, 0.0
      %vm742 = vcmp.ge.f32.partialorder %v738, 0.0
      %vm743 = vcmp.ge.f32.partialorder %v739, 0.0
      %v744 = vsel %vm740, 1.0, -1.0
      %v745 = vsel %vm741, 1.0, -1.0
      %v746 = vsel %vm742, 1.0, -1.0
      %v747 = vsel %vm743, 1.0, -1.0
      %v748 = vand.u32 2147483647, %v736
      %v749 = vand.u32 2147483647, %v737
      %v750 = vand.u32 2147483647, %v738
      %v751 = vand.u32 2147483647, %v739
      %v752 = vmul.f32 %v748, 0.3275911
      %v753 = vmul.f32 %v749, 0.3275911
      %v754 = vmul.f32 %v750, 0.3275911
      %v755 = vmul.f32 %v751, 0.3275911
      %v756 = vadd.f32 %v752, 1.0
      %v757 = vadd.f32 %v753, 1.0
      %v758 = vadd.f32 %v754, 1.0
      %v759 = vadd.f32 %v755, 1.0
      %v760 = vrcp.pop %v756
      %v761 = vrcp.pop %v757
      %v762 = vrcp.pop %v758
      %v763 = vrcp.pop %v759
      %v764 = vmul.f32 %v760, 1.0614054
      %v765 = vmul.f32 %v761, 1.0614054
      %v766 = vmul.f32 %v762, 1.0614054
      %v767 = vmul.f32 %v763, 1.0614054
      %v768 = vadd.f32 %v764, -1.4531521
      %v769 = vadd.f32 %v765, -1.4531521
      %v770 = vadd.f32 %v766, -1.4531521
      %v771 = vadd.f32 %v767, -1.4531521
      %v772 = vmul.f32 %v768, %v760
      %v773 = vmul.f32 %v769, %v761
      %v774 = vmul.f32 %v770, %v762
      %v775 = vmul.f32 %v771, %v763
      %v776 = vadd.f32 %v772, 1.4214138
      %v777 = vadd.f32 %v773, 1.4214138
      %v778 = vadd.f32 %v774, 1.4214138
      %v779 = vadd.f32 %v775, 1.4214138
      %v780 = vmul.f32 %v776, %v760
      %v781 = vmul.f32 %v777, %v761
      %v782 = vmul.f32 %v778, %v762
      %v783 = vmul.f32 %v779, %v763
      %v784 = vadd.f32 %v780, -0.28449672
      %v785 = vadd.f32 %v781, -0.28449672
      %v786 = vadd.f32 %v782, -0.28449672
      %v787 = vadd.f32 %v783, -0.28449672
      %v788 = vmul.f32 %v784, %v760
      %v789 = vmul.f32 %v785, %v761
      %v790 = vmul.f32 %v786, %v762
      %v791 = vmul.f32 %v787, %v763
      %v792 = vadd.f32 %v788, 0.2548296
      %v793 = vadd.f32 %v789, 0.2548296
      %v794 = vadd.f32 %v790, 0.2548296
      %v795 = vadd.f32 %v791, 0.2548296
      %v796 = vmul.f32 %v792, %v760
      %v797 = vmul.f32 %v793, %v761
      %v798 = vmul.f32 %v794, %v762
      %v799 = vmul.f32 %v795, %v763
      %v800 = vsub.f32 0.0, %v748
      %v801 = vsub.f32 0.0, %v749
      %v802 = vsub.f32 0.0, %v750
      %v803 = vsub.f32 0.0, %v751
      %v804 = vmul.f32 %v800, %v748
      %v805 = vmul.f32 %v801, %v749
      %v806 = vmul.f32 %v802, %v750
      %v807 = vmul.f32 %v803, %v751
      %v808 = vmul.f32 %v804, 1.442695
      %v809 = vpow.pop %v808
      %v810 = vmul.f32 %v805, 1.442695
      %v811 = vpow.pop %v810
      %v812 = vmul.f32 %v806, 1.442695
      %v813 = vpow.pop %v812
      %v814 = vmul.f32 %v807, 1.442695
      %v815 = vpow.pop %v814
      %v816 = vmul.f32 %v796, %v809
      %v817 = vmul.f32 %v797, %v811
      %v818 = vmul.f32 %v798, %v813
      %v819 = vmul.f32 %v799, %v815
      %v820 = vsub.f32 1.0, %v816
      %v821 = vsub.f32 1.0, %v817
      %v822 = vsub.f32 1.0, %v818
      %v823 = vsub.f32 1.0, %v819
      %v824 = vmul.f32 %v744, %v820
      %v825 = vmul.f32 %v745, %v821
      %v826 = vmul.f32 %v746, %v822
      %v827 = vmul.f32 %v747, %v823
      %v828 = vadd.f32 %v824, 1.0
      %v829 = vadd.f32 %v825, 1.0
      %v830 = vadd.f32 %v826, 1.0
      %v831 = vadd.f32 %v827, 1.0
      %v832 = vmul.f32 %v732, %v828
      %v833 = vmul.f32 %v733, %v829
      %v834 = vmul.f32 %v734, %v830
      %v835 = vmul.f32 %v735, %v831
      %836 = vrot.lane.b32.xlu0 %v832, 16
      %v837 = vpop.permute.xlu0 %836
      %838 = vrot.lane.b32.xlu0 %v834, 16
      %v839 = vpop.permute.xlu0 %838
      %840 = vrot.lane.b32.xlu0 %v833, 16
      %v841 = vpop.permute.xlu0 %840
      %842 = vrot.lane.b32.xlu0 %v835, 16
      %v843 = vpop.permute.xlu0 %842
      %v844 = vlaneseq
      %v845 = vand.u32 %v844, 127
      %vm846 = vcmp.lt.s32.totalorder %v845, 16
      %v847 = vsel %vm846, %v837, %v841
      %v848 = vsel %vm846, %v839, %v843
      %v849 = vsel %vm846, %v841, %v837
      %v850 = vsel %vm846, %v843, %v839
      %s851 = scalar_lea.vmem %s19, 32
      %v852 = vld [vmem:[%s851] ss:$8 sm:$0x3]
      %v854 = vlaneseq
      %v855 = vshrl.u32 %v854, 7
      %v856 = vsub.s32 0, %v855
      %v857 = vrot.slane %v852, %v856
      %v858 = vlaneseq
      %v859 = vshrl.u32 %v858, 7
      %v860 = vsub.s32 1, %v859
      %v861 = vrot.slane %v852, %v860
      %v864 = vmul.f32 %v847, %v857
      %v865 = vmul.f32 %v849, %v861
      %v866 = vmul.f32 %v848, %v857
      %v867 = vmul.f32 %v850, %v861
      %868 = vrot.lane.b32.xlu0 %v832, 96
      %v869 = vpop.permute.xlu0 %868
      %870 = vrot.lane.b32.xlu0 %v834, 96
      %v871 = vpop.permute.xlu0 %870
      %872 = vrot.lane.b32.xlu0 %v833, 96
      %v873 = vpop.permute.xlu0 %872
      %874 = vrot.lane.b32.xlu0 %v835, 96
      %v875 = vpop.permute.xlu0 %874
      %vm876 = vcmp.lt.s32.totalorder %v845, 96
      %v877 = vsel %vm876, %v869, %v873
      %v878 = vsel %vm876, %v871, %v875
      %v879 = vsel %vm876, %v873, %v869
      %v880 = vsel %vm876, %v875, %v871
      %s881 = scalar_lea.vmem %s19, 33
      %v882 = vld [vmem:[%s881] ss:$8 sm:$0x3]
      %v884 = vlaneseq
      %v885 = vshrl.u32 %v884, 7
      %v886 = vsub.s32 0, %v885
      %v887 = vrot.slane %v882, %v886
      %v888 = vlaneseq
      %v889 = vshrl.u32 %v888, 7
      %v890 = vsub.s32 1, %v889
      %v891 = vrot.slane %v882, %v890
      %v894 = vmul.f32 %v879, %v887
      %v895 = vmul.f32 %v877, %v891
      %v896 = vmul.f32 %v880, %v887
      %v897 = vmul.f32 %v878, %v891
      %898 = vrot.lane.b32.xlu0 %v832, 48
      %v899 = vpop.permute.xlu0 %898
      %900 = vrot.lane.b32.xlu0 %v834, 48
      %v901 = vpop.permute.xlu0 %900
      %902 = vrot.lane.b32.xlu0 %v833, 48
      %v903 = vpop.permute.xlu0 %902
      %904 = vrot.lane.b32.xlu0 %v835, 48
      %v905 = vpop.permute.xlu0 %904
      %vm906 = vcmp.lt.s32.totalorder %v845, 48
      %v907 = vsel %vm906, %v899, %v903
      %v908 = vsel %vm906, %v901, %v905
      %v909 = vsel %vm906, %v903, %v899
      %v910 = vsel %vm906, %v905, %v901
      %s911 = scalar_lea.vmem %s19, 34
      %v912 = vld [vmem:[%s911] ss:$8 sm:$0x3]
      %v914 = vlaneseq
      %v915 = vshrl.u32 %v914, 7
      %v916 = vsub.s32 0, %v915
      %v917 = vrot.slane %v912, %v916
      %v918 = vlaneseq
      %v919 = vshrl.u32 %v918, 7
      %v920 = vsub.s32 1, %v919
      %v921 = vrot.slane %v912, %v920
      %v924 = vmul.f32 %v909, %v917
      %v925 = vmul.f32 %v907, %v921
      %v926 = vmul.f32 %v910, %v917
      %v927 = vmul.f32 %v908, %v921
      %928 = vrot.lane.b32.xlu0 %v832, 80
      %v929 = vpop.permute.xlu0 %928
      %930 = vrot.lane.b32.xlu0 %v834, 80
      %v931 = vpop.permute.xlu0 %930
      %932 = vrot.lane.b32.xlu0 %v833, 80
      %v933 = vpop.permute.xlu0 %932
      %934 = vrot.lane.b32.xlu0 %v835, 80
      %v935 = vpop.permute.xlu0 %934
      %vm936 = vcmp.lt.s32.totalorder %v845, 80
      %v937 = vsel %vm936, %v929, %v933
      %v938 = vsel %vm936, %v931, %v935
      %v939 = vsel %vm936, %v933, %v929
      %v940 = vsel %vm936, %v935, %v931
      %s941 = scalar_lea.vmem %s19, 36
      %v942 = vld [vmem:[%s941] ss:$8 sm:$0x3]
      %v944 = vlaneseq
      %v945 = vshrl.u32 %v944, 7
      %v946 = vsub.s32 0, %v945
      %v947 = vrot.slane %v942, %v946
      %v948 = vlaneseq
      %v949 = vshrl.u32 %v948, 7
      %v950 = vsub.s32 1, %v949
      %v951 = vrot.slane %v942, %v950
      %v954 = vmul.f32 %v937, %v947
      %v955 = vmul.f32 %v939, %v951
      %v956 = vmul.f32 %v938, %v947
      %v957 = vmul.f32 %v940, %v951
      %958 = vrot.lane.b32.xlu0 %v832, 32
      %v959 = vpop.permute.xlu0 %958
      %960 = vrot.lane.b32.xlu0 %v834, 32
      %v961 = vpop.permute.xlu0 %960
      %962 = vrot.lane.b32.xlu0 %v833, 32
      %v963 = vpop.permute.xlu0 %962
      %964 = vrot.lane.b32.xlu0 %v835, 32
      %v965 = vpop.permute.xlu0 %964
      %vm966 = vcmp.lt.s32.totalorder %v845, 32
      %v967 = vsel %vm966, %v959, %v963
      %v968 = vsel %vm966, %v961, %v965
      %v969 = vsel %vm966, %v963, %v959
      %v970 = vsel %vm966, %v965, %v961
      %s971 = scalar_lea.vmem %s19, 37
      %v972 = vld [vmem:[%s971] ss:$8 sm:$0x3]
      %v974 = vlaneseq
      %v975 = vshrl.u32 %v974, 7
      %v976 = vsub.s32 0, %v975
      %v977 = vrot.slane %v972, %v976
      %v978 = vlaneseq
      %v979 = vshrl.u32 %v978, 7
      %v980 = vsub.s32 1, %v979
      %v981 = vrot.slane %v972, %v980
      %v984 = vmul.f32 %v967, %v977
      %v985 = vmul.f32 %v969, %v981
      %v986 = vmul.f32 %v968, %v977
      %v987 = vmul.f32 %v970, %v981
      %988 = vrot.lane.b32.xlu0 %v832, 112
      %v989 = vpop.permute.xlu0 %988
      %990 = vrot.lane.b32.xlu0 %v834, 112
      %v991 = vpop.permute.xlu0 %990
      %992 = vrot.lane.b32.xlu0 %v833, 112
      %v993 = vpop.permute.xlu0 %992
      %994 = vrot.lane.b32.xlu0 %v835, 112
      %v995 = vpop.permute.xlu0 %994
      %vm996 = vcmp.lt.s32.totalorder %v845, 112
      %v997 = vsel %vm996, %v989, %v993
      %v998 = vsel %vm996, %v991, %v995
      %v999 = vsel %vm996, %v993, %v989
      %v1000 = vsel %vm996, %v995, %v991
      %s1001 = scalar_lea.vmem %s19, 38
      %v1002 = vld [vmem:[%s1001] ss:$8 sm:$0x3]
      %v1004 = vlaneseq
      %v1005 = vshrl.u32 %v1004, 7
      %v1006 = vsub.s32 0, %v1005
      %v1007 = vrot.slane %v1002, %v1006
      %v1008 = vlaneseq
      %v1009 = vshrl.u32 %v1008, 7
      %v1010 = vsub.s32 1, %v1009
      %v1011 = vrot.slane %v1002, %v1010
      %v1014 = vmul.f32 %v999, %v1007
      %v1015 = vmul.f32 %v997, %v1011
      %v1016 = vmul.f32 %v1000, %v1007
      %v1017 = vmul.f32 %v998, %v1011
      %v1018 = vld [vmem:[%s9] sm:$0xff]
      %v1019 = vld [vmem:[%s9 + $0x8] sm:$0xff]
      %1021 = vset.pattern.permute.xlu0 0
      %1022 = vperm.xlu0 %1021, %v1018
      %v1023 = vpop.permute.xlu0 %1022
      %1026 = vset.pattern.permute.xlu0 0
      %1027 = vperm.xlu0 %1026, %v1019
      %v1028 = vpop.permute.xlu0 %1027
      %v1030 = vmul.f32 %v1023, %v864
      %v1031 = vmul.f32 %v1023, %v865
      %v1032 = vmul.f32 %v1028, %v866
      %v1033 = vmul.f32 %v1028, %v867
      %1034 = vset.pattern.permute.xlu0 7
      %1035 = vperm.xlu0 %1034, %v1018
      %v1036 = vpop.permute.xlu0 %1035
      %1038 = vset.pattern.permute.xlu0 7
      %1039 = vperm.xlu0 %1038, %v1019
      %v1040 = vpop.permute.xlu0 %1039
      %v1042 = vmul.f32 %v1036, %v894
      %v1043 = vmul.f32 %v1036, %v895
      %v1044 = vmul.f32 %v1040, %v896
      %v1045 = vmul.f32 %v1040, %v897
      %1046 = vset.pattern.permute.xlu0 14
      %1047 = vperm.xlu0 %1046, %v1018
      %v1048 = vpop.permute.xlu0 %1047
      %1050 = vset.pattern.permute.xlu0 14
      %1051 = vperm.xlu0 %1050, %v1019
      %v1052 = vpop.permute.xlu0 %1051
      %v1054 = vmul.f32 %v1048, %v924
      %v1055 = vmul.f32 %v1048, %v925
      %v1056 = vmul.f32 %v1052, %v926
      %v1057 = vmul.f32 %v1052, %v927
      %1058 = vset.pattern.permute.xlu0 21
      %1059 = vperm.xlu0 %1058, %v1018
      %v1060 = vpop.permute.xlu0 %1059
      %1062 = vset.pattern.permute.xlu0 21
      %1063 = vperm.xlu0 %1062, %v1019
      %v1064 = vpop.permute.xlu0 %1063
      %v1066 = vmul.f32 %v1060, %v832
      %v1067 = vmul.f32 %v1060, %v833
      %v1068 = vmul.f32 %v1064, %v834
      %v1069 = vmul.f32 %v1064, %v835
      %1070 = vset.pattern.permute.xlu0 28
      %1071 = vperm.xlu0 %1070, %v1018
      %v1072 = vpop.permute.xlu0 %1071
      %1074 = vset.pattern.permute.xlu0 28
      %1075 = vperm.xlu0 %1074, %v1019
      %v1076 = vpop.permute.xlu0 %1075
      %v1078 = vmul.f32 %v1072, %v954
      %v1079 = vmul.f32 %v1072, %v955
      %v1080 = vmul.f32 %v1076, %v956
      %v1081 = vmul.f32 %v1076, %v957
      %1082 = vset.pattern.permute.xlu0 35
      %1083 = vperm.xlu0 %1082, %v1018
      %v1084 = vpop.permute.xlu0 %1083
      %1086 = vset.pattern.permute.xlu0 35
      %1087 = vperm.xlu0 %1086, %v1019
      %v1088 = vpop.permute.xlu0 %1087
      %v1090 = vmul.f32 %v1084, %v984
      %v1091 = vmul.f32 %v1084, %v985
      %v1092 = vmul.f32 %v1088, %v986
      %v1093 = vmul.f32 %v1088, %v987
      %1094 = vset.pattern.permute.xlu0 42
      %1095 = vperm.xlu0 %1094, %v1018
      %v1096 = vpop.permute.xlu0 %1095
      %1098 = vset.pattern.permute.xlu0 42
      %1099 = vperm.xlu0 %1098, %v1019
      %v1100 = vpop.permute.xlu0 %1099
      %v1102 = vmul.f32 %v1096, %v1014
      %v1103 = vmul.f32 %v1096, %v1015
      %v1104 = vmul.f32 %v1100, %v1016
      %v1105 = vmul.f32 %v1100, %v1017
      %v1106 = vadd.f32 %v1030, %v1042
      %v1107 = vadd.f32 %v1031, %v1043
      %v1108 = vadd.f32 %v1032, %v1044
      %v1109 = vadd.f32 %v1033, %v1045
      %v1110 = vadd.f32 %v1054, %v1066
      %v1111 = vadd.f32 %v1055, %v1067
      %v1112 = vadd.f32 %v1056, %v1068
      %v1113 = vadd.f32 %v1057, %v1069
      %v1114 = vadd.f32 %v1078, %v1090
      %v1115 = vadd.f32 %v1079, %v1091
      %v1116 = vadd.f32 %v1080, %v1092
      %v1117 = vadd.f32 %v1081, %v1093
      %v1118 = vadd.f32 %v1106, %v1110
      %v1119 = vadd.f32 %v1107, %v1111
      %v1120 = vadd.f32 %v1108, %v1112
      %v1121 = vadd.f32 %v1109, %v1113
      %v1122 = vadd.f32 %v1114, %v1102
      %v1123 = vadd.f32 %v1115, %v1103
      %v1124 = vadd.f32 %v1116, %v1104
      %v1125 = vadd.f32 %v1117, %v1105
      %v1126 = vadd.f32 %v1118, %v1122
      %v1127 = vadd.f32 %v1119, %v1123
      %v1128 = vadd.f32 %v1120, %v1124
      %v1129 = vadd.f32 %v1121, %v1125
      %1130 = vrot.lane.b32.xlu0 %v1126, 9
      %v1131 = vpop.permute.xlu0 %1130
      %1132 = vrot.lane.b32.xlu0 %v1128, 9
      %v1133 = vpop.permute.xlu0 %1132
      %1134 = vrot.lane.b32.xlu0 %v1127, 9
      %v1135 = vpop.permute.xlu0 %1134
      %1136 = vrot.lane.b32.xlu0 %v1129, 9
      %v1137 = vpop.permute.xlu0 %1136
      %vm1138 = vcmp.lt.s32.totalorder %v845, 9
      %v1139 = vsel %vm1138, %v1131, %v1135
      %v1140 = vsel %vm1138, %v1133, %v1137
      %v1141 = vsel %vm1138, %v1135, %v1131
      %v1142 = vsel %vm1138, %v1137, %v1133
      %s1143 = scalar_lea.vmem %s19, 39
      %v1144 = vld [vmem:[%s1143] ss:$8 sm:$0x3]
      %v1146 = vlaneseq
      %v1147 = vshrl.u32 %v1146, 7
      %v1148 = vsub.s32 0, %v1147
      %v1149 = vrot.slane %v1144, %v1148
      %v1150 = vlaneseq
      %v1151 = vshrl.u32 %v1150, 7
      %v1152 = vsub.s32 1, %v1151
      %v1153 = vrot.slane %v1144, %v1152
      %v1156 = vmul.f32 %v1141, %v1149
      %v1157 = vmul.f32 %v1139, %v1153
      %v1158 = vmul.f32 %v1142, %v1149
      %v1159 = vmul.f32 %v1140, %v1153
      %1160 = vset.pattern.permute.xlu0 1
      %1161 = vperm.xlu0 %1160, %v1018
      %v1162 = vpop.permute.xlu0 %1161
      %1164 = vset.pattern.permute.xlu0 1
      %1165 = vperm.xlu0 %1164, %v1019
      %v1166 = vpop.permute.xlu0 %1165
      %v1168 = vmul.f32 %v1162, %v864
      %v1169 = vmul.f32 %v1162, %v865
      %v1170 = vmul.f32 %v1166, %v866
      %v1171 = vmul.f32 %v1166, %v867
      %1172 = vset.pattern.permute.xlu0 8
      %1173 = vperm.xlu0 %1172, %v1018
      %v1174 = vpop.permute.xlu0 %1173
      %1176 = vset.pattern.permute.xlu0 8
      %1177 = vperm.xlu0 %1176, %v1019
      %v1178 = vpop.permute.xlu0 %1177
      %v1180 = vmul.f32 %v1174, %v894
      %v1181 = vmul.f32 %v1174, %v895
      %v1182 = vmul.f32 %v1178, %v896
      %v1183 = vmul.f32 %v1178, %v897
      %1184 = vset.pattern.permute.xlu0 15
      %1185 = vperm.xlu0 %1184, %v1018
      %v1186 = vpop.permute.xlu0 %1185
      %1188 = vset.pattern.permute.xlu0 15
      %1189 = vperm.xlu0 %1188, %v1019
      %v1190 = vpop.permute.xlu0 %1189
      %v1192 = vmul.f32 %v1186, %v924
      %v1193 = vmul.f32 %v1186, %v925
      %v1194 = vmul.f32 %v1190, %v926
      %v1195 = vmul.f32 %v1190, %v927
      %1196 = vset.pattern.permute.xlu0 22
      %1197 = vperm.xlu0 %1196, %v1018
      %v1198 = vpop.permute.xlu0 %1197
      %1200 = vset.pattern.permute.xlu0 22
      %1201 = vperm.xlu0 %1200, %v1019
      %v1202 = vpop.permute.xlu0 %1201
      %v1204 = vmul.f32 %v1198, %v832
      %v1205 = vmul.f32 %v1198, %v833
      %v1206 = vmul.f32 %v1202, %v834
      %v1207 = vmul.f32 %v1202, %v835
      %1208 = vset.pattern.permute.xlu0 29
      %1209 = vperm.xlu0 %1208, %v1018
      %v1210 = vpop.permute.xlu0 %1209
      %1212 = vset.pattern.permute.xlu0 29
      %1213 = vperm.xlu0 %1212, %v1019
      %v1214 = vpop.permute.xlu0 %1213
      %v1216 = vmul.f32 %v1210, %v954
      %v1217 = vmul.f32 %v1210, %v955
      %v1218 = vmul.f32 %v1214, %v956
      %v1219 = vmul.f32 %v1214, %v957
      %1220 = vset.pattern.permute.xlu0 36
      %1221 = vperm.xlu0 %1220, %v1018
      %v1222 = vpop.permute.xlu0 %1221
      %1224 = vset.pattern.permute.xlu0 36
      %1225 = vperm.xlu0 %1224, %v1019
      %v1226 = vpop.permute.xlu0 %1225
      %v1228 = vmul.f32 %v1222, %v984
      %v1229 = vmul.f32 %v1222, %v985
      %v1230 = vmul.f32 %v1226, %v986
      %v1231 = vmul.f32 %v1226, %v987
      %1232 = vset.pattern.permute.xlu0 43
      %1233 = vperm.xlu0 %1232, %v1018
      %v1234 = vpop.permute.xlu0 %1233
      %1236 = vset.pattern.permute.xlu0 43
      %1237 = vperm.xlu0 %1236, %v1019
      %v1238 = vpop.permute.xlu0 %1237
      %v1240 = vmul.f32 %v1234, %v1014
      %v1241 = vmul.f32 %v1234, %v1015
      %v1242 = vmul.f32 %v1238, %v1016
      %v1243 = vmul.f32 %v1238, %v1017
      %v1244 = vadd.f32 %v1168, %v1180
      %v1245 = vadd.f32 %v1169, %v1181
      %v1246 = vadd.f32 %v1170, %v1182
      %v1247 = vadd.f32 %v1171, %v1183
      %v1248 = vadd.f32 %v1192, %v1204
      %v1249 = vadd.f32 %v1193, %v1205
      %v1250 = vadd.f32 %v1194, %v1206
      %v1251 = vadd.f32 %v1195, %v1207
      %v1252 = vadd.f32 %v1216, %v1228
      %v1253 = vadd.f32 %v1217, %v1229
      %v1254 = vadd.f32 %v1218, %v1230
      %v1255 = vadd.f32 %v1219, %v1231
      %v1256 = vadd.f32 %v1244, %v1248
      %v1257 = vadd.f32 %v1245, %v1249
      %v1258 = vadd.f32 %v1246, %v1250
      %v1259 = vadd.f32 %v1247, %v1251
      %v1260 = vadd.f32 %v1252, %v1240
      %v1261 = vadd.f32 %v1253, %v1241
      %v1262 = vadd.f32 %v1254, %v1242
      %v1263 = vadd.f32 %v1255, %v1243
      %v1264 = vadd.f32 %v1256, %v1260
      %v1265 = vadd.f32 %v1257, %v1261
      %v1266 = vadd.f32 %v1258, %v1262
      %v1267 = vadd.f32 %v1259, %v1263
      %1268 = vrot.lane.b32.xlu0 %v1264, 6
      %v1269 = vpop.permute.xlu0 %1268
      %1270 = vrot.lane.b32.xlu0 %v1266, 6
      %v1271 = vpop.permute.xlu0 %1270
      %1272 = vrot.lane.b32.xlu0 %v1265, 6
      %v1273 = vpop.permute.xlu0 %1272
      %1274 = vrot.lane.b32.xlu0 %v1267, 6
      %v1275 = vpop.permute.xlu0 %1274
      %vm1276 = vcmp.lt.s32.totalorder %v845, 6
      %v1277 = vsel %vm1276, %v1269, %v1273
      %v1278 = vsel %vm1276, %v1271, %v1275
      %v1279 = vsel %vm1276, %v1273, %v1269
      %v1280 = vsel %vm1276, %v1275, %v1271
      %s1281 = scalar_lea.vmem %s19, 48
      %v1282 = vld [vmem:[%s1281] ss:$8 sm:$0x3]
      %v1284 = vlaneseq
      %v1285 = vshrl.u32 %v1284, 7
      %v1286 = vsub.s32 0, %v1285
      %v1287 = vrot.slane %v1282, %v1286
      %v1288 = vlaneseq
      %v1289 = vshrl.u32 %v1288, 7
      %v1290 = vsub.s32 1, %v1289
      %v1291 = vrot.slane %v1282, %v1290
      %v1294 = vmul.f32 %v1279, %v1287
      %v1295 = vmul.f32 %v1277, %v1291
      %v1296 = vmul.f32 %v1280, %v1287
      %v1297 = vmul.f32 %v1278, %v1291
      %1298 = vset.pattern.permute.xlu0 2
      %1299 = vperm.xlu0 %1298, %v1018
      %v1300 = vpop.permute.xlu0 %1299
      %1302 = vset.pattern.permute.xlu0 2
      %1303 = vperm.xlu0 %1302, %v1019
      %v1304 = vpop.permute.xlu0 %1303
      %v1306 = vmul.f32 %v1300, %v864
      %v1307 = vmul.f32 %v1300, %v865
      %v1308 = vmul.f32 %v1304, %v866
      %v1309 = vmul.f32 %v1304, %v867
      %1310 = vset.pattern.permute.xlu0 9
      %1311 = vperm.xlu0 %1310, %v1018
      %v1312 = vpop.permute.xlu0 %1311
      %1314 = vset.pattern.permute.xlu0 9
      %1315 = vperm.xlu0 %1314, %v1019
      %v1316 = vpop.permute.xlu0 %1315
      %v1318 = vmul.f32 %v1312, %v894
      %v1319 = vmul.f32 %v1312, %v895
      %v1320 = vmul.f32 %v1316, %v896
      %v1321 = vmul.f32 %v1316, %v897
      %1322 = vset.pattern.permute.xlu0 16
      %1323 = vperm.xlu0 %1322, %v1018
      %v1324 = vpop.permute.xlu0 %1323
      %1326 = vset.pattern.permute.xlu0 16
      %1327 = vperm.xlu0 %1326, %v1019
      %v1328 = vpop.permute.xlu0 %1327
      %v1330 = vmul.f32 %v1324, %v924
      %v1331 = vmul.f32 %v1324, %v925
      %v1332 = vmul.f32 %v1328, %v926
      %v1333 = vmul.f32 %v1328, %v927
      %1334 = vset.pattern.permute.xlu0 23
      %1335 = vperm.xlu0 %1334, %v1018
      %v1336 = vpop.permute.xlu0 %1335
      %1338 = vset.pattern.permute.xlu0 23
      %1339 = vperm.xlu0 %1338, %v1019
      %v1340 = vpop.permute.xlu0 %1339
      %v1342 = vmul.f32 %v1336, %v832
      %v1343 = vmul.f32 %v1336, %v833
      %v1344 = vmul.f32 %v1340, %v834
      %v1345 = vmul.f32 %v1340, %v835
      %1346 = vset.pattern.permute.xlu0 30
      %1347 = vperm.xlu0 %1346, %v1018
      %v1348 = vpop.permute.xlu0 %1347
      %1350 = vset.pattern.permute.xlu0 30
      %1351 = vperm.xlu0 %1350, %v1019
      %v1352 = vpop.permute.xlu0 %1351
      %v1354 = vmul.f32 %v1348, %v954
      %v1355 = vmul.f32 %v1348, %v955
      %v1356 = vmul.f32 %v1352, %v956
      %v1357 = vmul.f32 %v1352, %v957
      %1358 = vset.pattern.permute.xlu0 37
      %1359 = vperm.xlu0 %1358, %v1018
      %v1360 = vpop.permute.xlu0 %1359
      %1362 = vset.pattern.permute.xlu0 37
      %1363 = vperm.xlu0 %1362, %v1019
      %v1364 = vpop.permute.xlu0 %1363
      %v1366 = vmul.f32 %v1360, %v984
      %v1367 = vmul.f32 %v1360, %v985
      %v1368 = vmul.f32 %v1364, %v986
      %v1369 = vmul.f32 %v1364, %v987
      %1370 = vset.pattern.permute.xlu0 44
      %1371 = vperm.xlu0 %1370, %v1018
      %v1372 = vpop.permute.xlu0 %1371
      %1374 = vset.pattern.permute.xlu0 44
      %1375 = vperm.xlu0 %1374, %v1019
      %v1376 = vpop.permute.xlu0 %1375
      %v1378 = vmul.f32 %v1372, %v1014
      %v1379 = vmul.f32 %v1372, %v1015
      %v1380 = vmul.f32 %v1376, %v1016
      %v1381 = vmul.f32 %v1376, %v1017
      %v1382 = vadd.f32 %v1306, %v1318
      %v1383 = vadd.f32 %v1307, %v1319
      %v1384 = vadd.f32 %v1308, %v1320
      %v1385 = vadd.f32 %v1309, %v1321
      %v1386 = vadd.f32 %v1330, %v1342
      %v1387 = vadd.f32 %v1331, %v1343
      %v1388 = vadd.f32 %v1332, %v1344
      %v1389 = vadd.f32 %v1333, %v1345
      %v1390 = vadd.f32 %v1354, %v1366
      %v1391 = vadd.f32 %v1355, %v1367
      %v1392 = vadd.f32 %v1356, %v1368
      %v1393 = vadd.f32 %v1357, %v1369
      %v1394 = vadd.f32 %v1382, %v1386
      %v1395 = vadd.f32 %v1383, %v1387
      %v1396 = vadd.f32 %v1384, %v1388
      %v1397 = vadd.f32 %v1385, %v1389
      %v1398 = vadd.f32 %v1390, %v1378
      %v1399 = vadd.f32 %v1391, %v1379
      %v1400 = vadd.f32 %v1392, %v1380
      %v1401 = vadd.f32 %v1393, %v1381
      %v1402 = vadd.f32 %v1394, %v1398
      %v1403 = vadd.f32 %v1395, %v1399
      %v1404 = vadd.f32 %v1396, %v1400
      %v1405 = vadd.f32 %v1397, %v1401
      %1406 = vrot.lane.b32.xlu0 %v1402, 3
      %v1407 = vpop.permute.xlu0 %1406
      %1408 = vrot.lane.b32.xlu0 %v1404, 3
      %v1409 = vpop.permute.xlu0 %1408
      %1410 = vrot.lane.b32.xlu0 %v1403, 3
      %v1411 = vpop.permute.xlu0 %1410
      %1412 = vrot.lane.b32.xlu0 %v1405, 3
      %v1413 = vpop.permute.xlu0 %1412
      %vm1414 = vcmp.lt.s32.totalorder %v845, 3
      %v1415 = vsel %vm1414, %v1407, %v1411
      %v1416 = vsel %vm1414, %v1409, %v1413
      %v1417 = vsel %vm1414, %v1411, %v1407
      %v1418 = vsel %vm1414, %v1413, %v1409
      %s1419 = scalar_lea.vmem %s19, 49
      %v1420 = vld [vmem:[%s1419] ss:$8 sm:$0x3]
      %v1422 = vlaneseq
      %v1423 = vshrl.u32 %v1422, 7
      %v1424 = vsub.s32 0, %v1423
      %v1425 = vrot.slane %v1420, %v1424
      %v1426 = vlaneseq
      %v1427 = vshrl.u32 %v1426, 7
      %v1428 = vsub.s32 1, %v1427
      %v1429 = vrot.slane %v1420, %v1428
      %v1432 = vmul.f32 %v1417, %v1425
      %v1433 = vmul.f32 %v1415, %v1429
      %v1434 = vmul.f32 %v1418, %v1425
      %v1435 = vmul.f32 %v1416, %v1429
      %1436 = vset.pattern.permute.xlu0 3
      %1437 = vperm.xlu0 %1436, %v1018
      %v1438 = vpop.permute.xlu0 %1437
      %1440 = vset.pattern.permute.xlu0 3
      %1441 = vperm.xlu0 %1440, %v1019
      %v1442 = vpop.permute.xlu0 %1441
      %v1444 = vmul.f32 %v1438, %v864
      %v1445 = vmul.f32 %v1438, %v865
      %v1446 = vmul.f32 %v1442, %v866
      %v1447 = vmul.f32 %v1442, %v867
      %1448 = vset.pattern.permute.xlu0 10
      %1449 = vperm.xlu0 %1448, %v1018
      %v1450 = vpop.permute.xlu0 %1449
      %1452 = vset.pattern.permute.xlu0 10
      %1453 = vperm.xlu0 %1452, %v1019
      %v1454 = vpop.permute.xlu0 %1453
      %v1456 = vmul.f32 %v1450, %v894
      %v1457 = vmul.f32 %v1450, %v895
      %v1458 = vmul.f32 %v1454, %v896
      %v1459 = vmul.f32 %v1454, %v897
      %1460 = vset.pattern.permute.xlu0 17
      %1461 = vperm.xlu0 %1460, %v1018
      %v1462 = vpop.permute.xlu0 %1461
      %1464 = vset.pattern.permute.xlu0 17
      %1465 = vperm.xlu0 %1464, %v1019
      %v1466 = vpop.permute.xlu0 %1465
      %v1468 = vmul.f32 %v1462, %v924
      %v1469 = vmul.f32 %v1462, %v925
      %v1470 = vmul.f32 %v1466, %v926
      %v1471 = vmul.f32 %v1466, %v927
      %1472 = vset.pattern.permute.xlu0 24
      %1473 = vperm.xlu0 %1472, %v1018
      %v1474 = vpop.permute.xlu0 %1473
      %1476 = vset.pattern.permute.xlu0 24
      %1477 = vperm.xlu0 %1476, %v1019
      %v1478 = vpop.permute.xlu0 %1477
      %v1480 = vmul.f32 %v1474, %v832
      %v1481 = vmul.f32 %v1474, %v833
      %v1482 = vmul.f32 %v1478, %v834
      %v1483 = vmul.f32 %v1478, %v835
      %1484 = vset.pattern.permute.xlu0 31
      %1485 = vperm.xlu0 %1484, %v1018
      %v1486 = vpop.permute.xlu0 %1485
      %1488 = vset.pattern.permute.xlu0 31
      %1489 = vperm.xlu0 %1488, %v1019
      %v1490 = vpop.permute.xlu0 %1489
      %v1492 = vmul.f32 %v1486, %v954
      %v1493 = vmul.f32 %v1486, %v955
      %v1494 = vmul.f32 %v1490, %v956
      %v1495 = vmul.f32 %v1490, %v957
      %1496 = vset.pattern.permute.xlu0 38
      %1497 = vperm.xlu0 %1496, %v1018
      %v1498 = vpop.permute.xlu0 %1497
      %1500 = vset.pattern.permute.xlu0 38
      %1501 = vperm.xlu0 %1500, %v1019
      %v1502 = vpop.permute.xlu0 %1501
      %v1504 = vmul.f32 %v1498, %v984
      %v1505 = vmul.f32 %v1498, %v985
      %v1506 = vmul.f32 %v1502, %v986
      %v1507 = vmul.f32 %v1502, %v987
      %1508 = vset.pattern.permute.xlu0 45
      %1509 = vperm.xlu0 %1508, %v1018
      %v1510 = vpop.permute.xlu0 %1509
      %1512 = vset.pattern.permute.xlu0 45
      %1513 = vperm.xlu0 %1512, %v1019
      %v1514 = vpop.permute.xlu0 %1513
      %v1516 = vmul.f32 %v1510, %v1014
      %v1517 = vmul.f32 %v1510, %v1015
      %v1518 = vmul.f32 %v1514, %v1016
      %v1519 = vmul.f32 %v1514, %v1017
      %v1520 = vadd.f32 %v1444, %v1456
      %v1521 = vadd.f32 %v1445, %v1457
      %v1522 = vadd.f32 %v1446, %v1458
      %v1523 = vadd.f32 %v1447, %v1459
      %v1524 = vadd.f32 %v1468, %v1480
      %v1525 = vadd.f32 %v1469, %v1481
      %v1526 = vadd.f32 %v1470, %v1482
      %v1527 = vadd.f32 %v1471, %v1483
      %v1528 = vadd.f32 %v1492, %v1504
      %v1529 = vadd.f32 %v1493, %v1505
      %v1530 = vadd.f32 %v1494, %v1506
      %v1531 = vadd.f32 %v1495, %v1507
      %v1532 = vadd.f32 %v1520, %v1524
      %v1533 = vadd.f32 %v1521, %v1525
      %v1534 = vadd.f32 %v1522, %v1526
      %v1535 = vadd.f32 %v1523, %v1527
      %v1536 = vadd.f32 %v1528, %v1516
      %v1537 = vadd.f32 %v1529, %v1517
      %v1538 = vadd.f32 %v1530, %v1518
      %v1539 = vadd.f32 %v1531, %v1519
      %v1540 = vadd.f32 %v1532, %v1536
      %v1541 = vadd.f32 %v1533, %v1537
      %v1542 = vadd.f32 %v1534, %v1538
      %v1543 = vadd.f32 %v1535, %v1539
      %1544 = vset.pattern.permute.xlu0 4
      %1545 = vperm.xlu0 %1544, %v1018
      %v1546 = vpop.permute.xlu0 %1545
      %1548 = vset.pattern.permute.xlu0 4
      %1549 = vperm.xlu0 %1548, %v1019
      %v1550 = vpop.permute.xlu0 %1549
      %v1552 = vmul.f32 %v1546, %v864
      %v1553 = vmul.f32 %v1546, %v865
      %v1554 = vmul.f32 %v1550, %v866
      %v1555 = vmul.f32 %v1550, %v867
      %1556 = vset.pattern.permute.xlu0 11
      %1557 = vperm.xlu0 %1556, %v1018
      %v1558 = vpop.permute.xlu0 %1557
      %1560 = vset.pattern.permute.xlu0 11
      %1561 = vperm.xlu0 %1560, %v1019
      %v1562 = vpop.permute.xlu0 %1561
      %v1564 = vmul.f32 %v1558, %v894
      %v1565 = vmul.f32 %v1558, %v895
      %v1566 = vmul.f32 %v1562, %v896
      %v1567 = vmul.f32 %v1562, %v897
      %1568 = vset.pattern.permute.xlu0 18
      %1569 = vperm.xlu0 %1568, %v1018
      %v1570 = vpop.permute.xlu0 %1569
      %1572 = vset.pattern.permute.xlu0 18
      %1573 = vperm.xlu0 %1572, %v1019
      %v1574 = vpop.permute.xlu0 %1573
      %v1576 = vmul.f32 %v1570, %v924
      %v1577 = vmul.f32 %v1570, %v925
      %v1578 = vmul.f32 %v1574, %v926
      %v1579 = vmul.f32 %v1574, %v927
      %1580 = vset.pattern.permute.xlu0 25
      %1581 = vperm.xlu0 %1580, %v1018
      %v1582 = vpop.permute.xlu0 %1581
      %1584 = vset.pattern.permute.xlu0 25
      %1585 = vperm.xlu0 %1584, %v1019
      %v1586 = vpop.permute.xlu0 %1585
      %v1588 = vmul.f32 %v1582, %v832
      %v1589 = vmul.f32 %v1582, %v833
      %v1590 = vmul.f32 %v1586, %v834
      %v1591 = vmul.f32 %v1586, %v835
      %1592 = vset.pattern.permute.xlu0 32
      %1593 = vperm.xlu0 %1592, %v1018
      %v1594 = vpop.permute.xlu0 %1593
      %1596 = vset.pattern.permute.xlu0 32
      %1597 = vperm.xlu0 %1596, %v1019
      %v1598 = vpop.permute.xlu0 %1597
      %v1600 = vmul.f32 %v1594, %v954
      %v1601 = vmul.f32 %v1594, %v955
      %v1602 = vmul.f32 %v1598, %v956
      %v1603 = vmul.f32 %v1598, %v957
      %1604 = vset.pattern.permute.xlu0 39
      %1605 = vperm.xlu0 %1604, %v1018
      %v1606 = vpop.permute.xlu0 %1605
      %1608 = vset.pattern.permute.xlu0 39
      %1609 = vperm.xlu0 %1608, %v1019
      %v1610 = vpop.permute.xlu0 %1609
      %v1612 = vmul.f32 %v1606, %v984
      %v1613 = vmul.f32 %v1606, %v985
      %v1614 = vmul.f32 %v1610, %v986
      %v1615 = vmul.f32 %v1610, %v987
      %1616 = vset.pattern.permute.xlu0 46
      %1617 = vperm.xlu0 %1616, %v1018
      %v1618 = vpop.permute.xlu0 %1617
      %1620 = vset.pattern.permute.xlu0 46
      %1621 = vperm.xlu0 %1620, %v1019
      %v1622 = vpop.permute.xlu0 %1621
      %v1624 = vmul.f32 %v1618, %v1014
      %v1625 = vmul.f32 %v1618, %v1015
      %v1626 = vmul.f32 %v1622, %v1016
      %v1627 = vmul.f32 %v1622, %v1017
      %v1628 = vadd.f32 %v1552, %v1564
      %v1629 = vadd.f32 %v1553, %v1565
      %v1630 = vadd.f32 %v1554, %v1566
      %v1631 = vadd.f32 %v1555, %v1567
      %v1632 = vadd.f32 %v1576, %v1588
      %v1633 = vadd.f32 %v1577, %v1589
      %v1634 = vadd.f32 %v1578, %v1590
      %v1635 = vadd.f32 %v1579, %v1591
      %v1636 = vadd.f32 %v1600, %v1612
      %v1637 = vadd.f32 %v1601, %v1613
      %v1638 = vadd.f32 %v1602, %v1614
      %v1639 = vadd.f32 %v1603, %v1615
      %v1640 = vadd.f32 %v1628, %v1632
      %v1641 = vadd.f32 %v1629, %v1633
      %v1642 = vadd.f32 %v1630, %v1634
      %v1643 = vadd.f32 %v1631, %v1635
      %v1644 = vadd.f32 %v1636, %v1624
      %v1645 = vadd.f32 %v1637, %v1625
      %v1646 = vadd.f32 %v1638, %v1626
      %v1647 = vadd.f32 %v1639, %v1627
      %v1648 = vadd.f32 %v1640, %v1644
      %v1649 = vadd.f32 %v1641, %v1645
      %v1650 = vadd.f32 %v1642, %v1646
      %v1651 = vadd.f32 %v1643, %v1647
      %1652 = vrot.lane.b32.xlu0 %v1648, 125
      %v1653 = vpop.permute.xlu0 %1652
      %1654 = vrot.lane.b32.xlu0 %v1650, 125
      %v1655 = vpop.permute.xlu0 %1654
      %1656 = vrot.lane.b32.xlu0 %v1649, 125
      %v1657 = vpop.permute.xlu0 %1656
      %1658 = vrot.lane.b32.xlu0 %v1651, 125
      %v1659 = vpop.permute.xlu0 %1658
      %vm1660 = vcmp.lt.s32.totalorder %v845, 125
      %v1661 = vsel %vm1660, %v1653, %v1657
      %v1662 = vsel %vm1660, %v1655, %v1659
      %v1663 = vsel %vm1660, %v1657, %v1653
      %v1664 = vsel %vm1660, %v1659, %v1655
      %s1665 = scalar_lea.vmem %s19, 51
      %v1666 = vld [vmem:[%s1665] ss:$8 sm:$0x3]
      %v1668 = vlaneseq
      %v1669 = vshrl.u32 %v1668, 7
      %v1670 = vsub.s32 0, %v1669
      %v1671 = vrot.slane %v1666, %v1670
      %v1672 = vlaneseq
      %v1673 = vshrl.u32 %v1672, 7
      %v1674 = vsub.s32 1, %v1673
      %v1675 = vrot.slane %v1666, %v1674
      %v1678 = vmul.f32 %v1661, %v1671
      %v1679 = vmul.f32 %v1663, %v1675
      %v1680 = vmul.f32 %v1662, %v1671
      %v1681 = vmul.f32 %v1664, %v1675
      %1682 = vset.pattern.permute.xlu0 5
      %1683 = vperm.xlu0 %1682, %v1018
      %v1684 = vpop.permute.xlu0 %1683
      %1686 = vset.pattern.permute.xlu0 5
      %1687 = vperm.xlu0 %1686, %v1019
      %v1688 = vpop.permute.xlu0 %1687
      %v1690 = vmul.f32 %v1684, %v864
      %v1691 = vmul.f32 %v1684, %v865
      %v1692 = vmul.f32 %v1688, %v866
      %v1693 = vmul.f32 %v1688, %v867
      %1694 = vset.pattern.permute.xlu0 12
      %1695 = vperm.xlu0 %1694, %v1018
      %v1696 = vpop.permute.xlu0 %1695
      %1698 = vset.pattern.permute.xlu0 12
      %1699 = vperm.xlu0 %1698, %v1019
      %v1700 = vpop.permute.xlu0 %1699
      %v1702 = vmul.f32 %v1696, %v894
      %v1703 = vmul.f32 %v1696, %v895
      %v1704 = vmul.f32 %v1700, %v896
      %v1705 = vmul.f32 %v1700, %v897
      %1706 = vset.pattern.permute.xlu0 19
      %1707 = vperm.xlu0 %1706, %v1018
      %v1708 = vpop.permute.xlu0 %1707
      %1710 = vset.pattern.permute.xlu0 19
      %1711 = vperm.xlu0 %1710, %v1019
      %v1712 = vpop.permute.xlu0 %1711
      %v1714 = vmul.f32 %v1708, %v924
      %v1715 = vmul.f32 %v1708, %v925
      %v1716 = vmul.f32 %v1712, %v926
      %v1717 = vmul.f32 %v1712, %v927
      %1718 = vset.pattern.permute.xlu0 26
      %1719 = vperm.xlu0 %1718, %v1018
      %v1720 = vpop.permute.xlu0 %1719
      %1722 = vset.pattern.permute.xlu0 26
      %1723 = vperm.xlu0 %1722, %v1019
      %v1724 = vpop.permute.xlu0 %1723
      %v1726 = vmul.f32 %v1720, %v832
      %v1727 = vmul.f32 %v1720, %v833
      %v1728 = vmul.f32 %v1724, %v834
      %v1729 = vmul.f32 %v1724, %v835
      %1730 = vset.pattern.permute.xlu0 33
      %1731 = vperm.xlu0 %1730, %v1018
      %v1732 = vpop.permute.xlu0 %1731
      %1734 = vset.pattern.permute.xlu0 33
      %1735 = vperm.xlu0 %1734, %v1019
      %v1736 = vpop.permute.xlu0 %1735
      %v1738 = vmul.f32 %v1732, %v954
      %v1739 = vmul.f32 %v1732, %v955
      %v1740 = vmul.f32 %v1736, %v956
      %v1741 = vmul.f32 %v1736, %v957
      %1742 = vset.pattern.permute.xlu0 40
      %1743 = vperm.xlu0 %1742, %v1018
      %v1744 = vpop.permute.xlu0 %1743
      %1746 = vset.pattern.permute.xlu0 40
      %1747 = vperm.xlu0 %1746, %v1019
      %v1748 = vpop.permute.xlu0 %1747
      %v1750 = vmul.f32 %v1744, %v984
      %v1751 = vmul.f32 %v1744, %v985
      %v1752 = vmul.f32 %v1748, %v986
      %v1753 = vmul.f32 %v1748, %v987
      %1754 = vset.pattern.permute.xlu0 47
      %1755 = vperm.xlu0 %1754, %v1018
      %v1756 = vpop.permute.xlu0 %1755
      %1758 = vset.pattern.permute.xlu0 47
      %1759 = vperm.xlu0 %1758, %v1019
      %v1760 = vpop.permute.xlu0 %1759
      %v1762 = vmul.f32 %v1756, %v1014
      %v1763 = vmul.f32 %v1756, %v1015
      %v1764 = vmul.f32 %v1760, %v1016
      %v1765 = vmul.f32 %v1760, %v1017
      %v1766 = vadd.f32 %v1690, %v1702
      %v1767 = vadd.f32 %v1691, %v1703
      %v1768 = vadd.f32 %v1692, %v1704
      %v1769 = vadd.f32 %v1693, %v1705
      %v1770 = vadd.f32 %v1714, %v1726
      %v1771 = vadd.f32 %v1715, %v1727
      %v1772 = vadd.f32 %v1716, %v1728
      %v1773 = vadd.f32 %v1717, %v1729
      %v1774 = vadd.f32 %v1738, %v1750
      %v1775 = vadd.f32 %v1739, %v1751
      %v1776 = vadd.f32 %v1740, %v1752
      %v1777 = vadd.f32 %v1741, %v1753
      %v1778 = vadd.f32 %v1766, %v1770
      %v1779 = vadd.f32 %v1767, %v1771
      %v1780 = vadd.f32 %v1768, %v1772
      %v1781 = vadd.f32 %v1769, %v1773
      %v1782 = vadd.f32 %v1774, %v1762
      %v1783 = vadd.f32 %v1775, %v1763
      %v1784 = vadd.f32 %v1776, %v1764
      %v1785 = vadd.f32 %v1777, %v1765
      %v1786 = vadd.f32 %v1778, %v1782
      %v1787 = vadd.f32 %v1779, %v1783
      %v1788 = vadd.f32 %v1780, %v1784
      %v1789 = vadd.f32 %v1781, %v1785
      %1790 = vrot.lane.b32.xlu0 %v1786, 122
      %v1791 = vpop.permute.xlu0 %1790
      %1792 = vrot.lane.b32.xlu0 %v1788, 122
      %v1793 = vpop.permute.xlu0 %1792
      %1794 = vrot.lane.b32.xlu0 %v1787, 122
      %v1795 = vpop.permute.xlu0 %1794
      %1796 = vrot.lane.b32.xlu0 %v1789, 122
      %v1797 = vpop.permute.xlu0 %1796
      %vm1798 = vcmp.lt.s32.totalorder %v845, 122
      %v1799 = vsel %vm1798, %v1791, %v1795
      %v1800 = vsel %vm1798, %v1793, %v1797
      %v1801 = vsel %vm1798, %v1795, %v1791
      %v1802 = vsel %vm1798, %v1797, %v1793
      %s1803 = scalar_lea.vmem %s19, 52
      %v1804 = vld [vmem:[%s1803] ss:$8 sm:$0x3]
      %v1806 = vlaneseq
      %v1807 = vshrl.u32 %v1806, 7
      %v1808 = vsub.s32 0, %v1807
      %v1809 = vrot.slane %v1804, %v1808
      %v1810 = vlaneseq
      %v1811 = vshrl.u32 %v1810, 7
      %v1812 = vsub.s32 1, %v1811
      %v1813 = vrot.slane %v1804, %v1812
      %v1816 = vmul.f32 %v1799, %v1809
      %v1817 = vmul.f32 %v1801, %v1813
      %v1818 = vmul.f32 %v1800, %v1809
      %v1819 = vmul.f32 %v1802, %v1813
      %1820 = vset.pattern.permute.xlu0 6
      %1821 = vperm.xlu0 %1820, %v1018
      %v1822 = vpop.permute.xlu0 %1821
      %1824 = vset.pattern.permute.xlu0 6
      %1825 = vperm.xlu0 %1824, %v1019
      %v1826 = vpop.permute.xlu0 %1825
      %v1828 = vmul.f32 %v1822, %v864
      %v1829 = vmul.f32 %v1822, %v865
      %v1830 = vmul.f32 %v1826, %v866
      %v1831 = vmul.f32 %v1826, %v867
      %1832 = vset.pattern.permute.xlu0 13
      %1833 = vperm.xlu0 %1832, %v1018
      %v1834 = vpop.permute.xlu0 %1833
      %1836 = vset.pattern.permute.xlu0 13
      %1837 = vperm.xlu0 %1836, %v1019
      %v1838 = vpop.permute.xlu0 %1837
      %v1840 = vmul.f32 %v1834, %v894
      %v1841 = vmul.f32 %v1834, %v895
      %v1842 = vmul.f32 %v1838, %v896
      %v1843 = vmul.f32 %v1838, %v897
      %1844 = vset.pattern.permute.xlu0 20
      %1845 = vperm.xlu0 %1844, %v1018
      %v1846 = vpop.permute.xlu0 %1845
      %1848 = vset.pattern.permute.xlu0 20
      %1849 = vperm.xlu0 %1848, %v1019
      %v1850 = vpop.permute.xlu0 %1849
      %v1852 = vmul.f32 %v1846, %v924
      %v1853 = vmul.f32 %v1846, %v925
      %v1854 = vmul.f32 %v1850, %v926
      %v1855 = vmul.f32 %v1850, %v927
      %1856 = vset.pattern.permute.xlu0 27
      %1857 = vperm.xlu0 %1856, %v1018
      %v1858 = vpop.permute.xlu0 %1857
      %1860 = vset.pattern.permute.xlu0 27
      %1861 = vperm.xlu0 %1860, %v1019
      %v1862 = vpop.permute.xlu0 %1861
      %v1864 = vmul.f32 %v1858, %v832
      %v1865 = vmul.f32 %v1858, %v833
      %v1866 = vmul.f32 %v1862, %v834
      %v1867 = vmul.f32 %v1862, %v835
      %1868 = vset.pattern.permute.xlu0 34
      %1869 = vperm.xlu0 %1868, %v1018
      %v1870 = vpop.permute.xlu0 %1869
      %1872 = vset.pattern.permute.xlu0 34
      %1873 = vperm.xlu0 %1872, %v1019
      %v1874 = vpop.permute.xlu0 %1873
      %v1876 = vmul.f32 %v1870, %v954
      %v1877 = vmul.f32 %v1870, %v955
      %v1878 = vmul.f32 %v1874, %v956
      %v1879 = vmul.f32 %v1874, %v957
      %1880 = vset.pattern.permute.xlu0 41
      %1881 = vperm.xlu0 %1880, %v1018
      %v1882 = vpop.permute.xlu0 %1881
      %1884 = vset.pattern.permute.xlu0 41
      %1885 = vperm.xlu0 %1884, %v1019
      %v1886 = vpop.permute.xlu0 %1885
      %v1888 = vmul.f32 %v1882, %v984
      %v1889 = vmul.f32 %v1882, %v985
      %v1890 = vmul.f32 %v1886, %v986
      %v1891 = vmul.f32 %v1886, %v987
      %1892 = vset.pattern.permute.xlu0 48
      %1893 = vperm.xlu0 %1892, %v1018
      %v1894 = vpop.permute.xlu0 %1893
      %1896 = vset.pattern.permute.xlu0 48
      %1897 = vperm.xlu0 %1896, %v1019
      %v1898 = vpop.permute.xlu0 %1897
      %v1900 = vmul.f32 %v1894, %v1014
      %v1901 = vmul.f32 %v1894, %v1015
      %v1902 = vmul.f32 %v1898, %v1016
      %v1903 = vmul.f32 %v1898, %v1017
      %v1904 = vadd.f32 %v1828, %v1840
      %v1905 = vadd.f32 %v1829, %v1841
      %v1906 = vadd.f32 %v1830, %v1842
      %v1907 = vadd.f32 %v1831, %v1843
      %v1908 = vadd.f32 %v1852, %v1864
      %v1909 = vadd.f32 %v1853, %v1865
      %v1910 = vadd.f32 %v1854, %v1866
      %v1911 = vadd.f32 %v1855, %v1867
      %v1912 = vadd.f32 %v1876, %v1888
      %v1913 = vadd.f32 %v1877, %v1889
      %v1914 = vadd.f32 %v1878, %v1890
      %v1915 = vadd.f32 %v1879, %v1891
      %v1916 = vadd.f32 %v1904, %v1908
      %v1917 = vadd.f32 %v1905, %v1909
      %v1918 = vadd.f32 %v1906, %v1910
      %v1919 = vadd.f32 %v1907, %v1911
      %v1920 = vadd.f32 %v1912, %v1900
      %v1921 = vadd.f32 %v1913, %v1901
      %v1922 = vadd.f32 %v1914, %v1902
      %v1923 = vadd.f32 %v1915, %v1903
      %v1924 = vadd.f32 %v1916, %v1920
      %v1925 = vadd.f32 %v1917, %v1921
      %v1926 = vadd.f32 %v1918, %v1922
      %v1927 = vadd.f32 %v1919, %v1923
      %1928 = vrot.lane.b32.xlu0 %v1924, 119
      %v1929 = vpop.permute.xlu0 %1928
      %1930 = vrot.lane.b32.xlu0 %v1926, 119
      %v1931 = vpop.permute.xlu0 %1930
      %1932 = vrot.lane.b32.xlu0 %v1925, 119
      %v1933 = vpop.permute.xlu0 %1932
      %1934 = vrot.lane.b32.xlu0 %v1927, 119
      %v1935 = vpop.permute.xlu0 %1934
      %vm1936 = vcmp.lt.s32.totalorder %v845, 119
      %v1937 = vsel %vm1936, %v1929, %v1933
      %v1938 = vsel %vm1936, %v1931, %v1935
      %v1939 = vsel %vm1936, %v1933, %v1929
      %v1940 = vsel %vm1936, %v1935, %v1931
      %s1941 = scalar_lea.vmem %s19, 53
      %v1942 = vld [vmem:[%s1941] ss:$8 sm:$0x3]
      %v1944 = vlaneseq
      %v1945 = vshrl.u32 %v1944, 7
      %v1946 = vsub.s32 0, %v1945
      %v1947 = vrot.slane %v1942, %v1946
      %v1948 = vlaneseq
      %v1949 = vshrl.u32 %v1948, 7
      %v1950 = vsub.s32 1, %v1949
      %v1951 = vrot.slane %v1942, %v1950
      %v1954 = vmul.f32 %v1937, %v1947
      %v1955 = vmul.f32 %v1939, %v1951
      %v1956 = vmul.f32 %v1938, %v1947
      %v1957 = vmul.f32 %v1940, %v1951
      %v1958 = vadd.f32 %v1156, %v1294
      %v1959 = vadd.f32 %v1157, %v1295
      %v1960 = vadd.f32 %v1158, %v1296
      %v1961 = vadd.f32 %v1159, %v1297
      %v1962 = vadd.f32 %v1432, %v1540
      %v1963 = vadd.f32 %v1433, %v1541
      %v1964 = vadd.f32 %v1434, %v1542
      %v1965 = vadd.f32 %v1435, %v1543
      %v1966 = vadd.f32 %v1678, %v1816
      %v1967 = vadd.f32 %v1679, %v1817
      %v1968 = vadd.f32 %v1680, %v1818
      %v1969 = vadd.f32 %v1681, %v1819
      %v1970 = vadd.f32 %v1958, %v1962
      %v1971 = vadd.f32 %v1959, %v1963
      %v1972 = vadd.f32 %v1960, %v1964
      %v1973 = vadd.f32 %v1961, %v1965
      %v1974 = vadd.f32 %v1966, %v1954
      %v1975 = vadd.f32 %v1967, %v1955
      %v1976 = vadd.f32 %v1968, %v1956
      %v1977 = vadd.f32 %v1969, %v1957
      %v1978 = vadd.f32 %v1970, %v1974
      %v1979 = vadd.f32 %v1971, %v1975
      %v1980 = vadd.f32 %v1972, %v1976
      %v1981 = vadd.f32 %v1973, %v1977
      %v1982 = vld [vmem:[%s10] sm:$0xff]
      %v1983 = vld [vmem:[%s10 + $0x8] sm:$0xff]
      %1985 = vset.pattern.permute.xlu0 0
      %1986 = vperm.xlu0 %1985, %v1982
      %v1987 = vpop.permute.xlu0 %1986
      %1990 = vset.pattern.permute.xlu0 0
      %1991 = vperm.xlu0 %1990, %v1983
      %v1992 = vpop.permute.xlu0 %1991
      %v1994 = vadd.f32 %v1978, %v1987
      %v1995 = vadd.f32 %v1979, %v1987
      %v1996 = vadd.f32 %v1980, %v1992
      %v1997 = vadd.f32 %v1981, %v1992
      %1998 = vrot.lane.b32.xlu0 %v832, 64
      %v1999 = vpop.permute.xlu0 %1998
      %2000 = vrot.lane.b32.xlu0 %v834, 64
      %v2001 = vpop.permute.xlu0 %2000
      %2002 = vrot.lane.b32.xlu0 %v833, 64
      %v2003 = vpop.permute.xlu0 %2002
      %2004 = vrot.lane.b32.xlu0 %v835, 64
      %v2005 = vpop.permute.xlu0 %2004
      %vm2006 = vcmp.lt.s32.totalorder %v845, 64
      %v2007 = vsel %vm2006, %v1999, %v2003
      %v2008 = vsel %vm2006, %v2001, %v2005
      %v2009 = vsel %vm2006, %v2003, %v1999
      %v2010 = vsel %vm2006, %v2005, %v2001
      %s2011 = scalar_lea.vmem %s19, 6
      %v2012 = vld [vmem:[%s2011] ss:$8 sm:$0x3]
      %v2014 = vlaneseq
      %v2015 = vshrl.u32 %v2014, 7
      %v2016 = vsub.s32 0, %v2015
      %v2017 = vrot.slane %v2012, %v2016
      %v2018 = vlaneseq
      %v2019 = vshrl.u32 %v2018, 7
      %v2020 = vsub.s32 1, %v2019
      %v2021 = vrot.slane %v2012, %v2020
      %v2024 = vmul.f32 %v2009, %v2017
      %v2025 = vmul.f32 %v2007, %v2021
      %v2026 = vmul.f32 %v2010, %v2017
      %v2027 = vmul.f32 %v2008, %v2021
      %s2028 = scalar_lea.vmem %s19, 7
      %v2029 = vld [vmem:[%s2028] ss:$8 sm:$0x3]
      %v2031 = vlaneseq
      %v2032 = vshrl.u32 %v2031, 7
      %v2033 = vsub.s32 0, %v2032
      %v2034 = vrot.slane %v2029, %v2033
      %v2035 = vlaneseq
      %v2036 = vshrl.u32 %v2035, 7
      %v2037 = vsub.s32 1, %v2036
      %v2038 = vrot.slane %v2029, %v2037
      %v2041 = vmul.f32 %v969, %v2034
      %v2042 = vmul.f32 %v967, %v2038
      %v2043 = vmul.f32 %v970, %v2034
      %v2044 = vmul.f32 %v968, %v2038
      %s2045 = scalar_lea.vmem %s19, 17
      %v2046 = vld [vmem:[%s2045] ss:$8 sm:$0x3]
      %v2048 = vlaneseq
      %v2049 = vshrl.u32 %v2048, 7
      %v2050 = vsub.s32 0, %v2049
      %v2051 = vrot.slane %v2046, %v2050
      %v2052 = vlaneseq
      %v2053 = vshrl.u32 %v2052, 7
      %v2054 = vsub.s32 1, %v2053
      %v2055 = vrot.slane %v2046, %v2054
      %v2058 = vmul.f32 %v877, %v2051
      %v2059 = vmul.f32 %v879, %v2055
      %v2060 = vmul.f32 %v878, %v2051
      %v2061 = vmul.f32 %v880, %v2055
      %s2062 = scalar_lea.vmem %s19, 18
      %v2063 = vld [vmem:[%s2062] ss:$8 sm:$0x3]
      %v2065 = vlaneseq
      %v2066 = vshrl.u32 %v2065, 7
      %v2067 = vsub.s32 0, %v2066
      %v2068 = vrot.slane %v2063, %v2067
      %v2069 = vlaneseq
      %v2070 = vshrl.u32 %v2069, 7
      %v2071 = vsub.s32 1, %v2070
      %v2072 = vrot.slane %v2063, %v2071
      %v2075 = vmul.f32 %v2007, %v2068
      %v2076 = vmul.f32 %v2009, %v2072
      %v2077 = vmul.f32 %v2008, %v2068
      %v2078 = vmul.f32 %v2010, %v2072
      %v2079 = vld [vmem:[%s7] sm:$0xff]
      %v2080 = vld [vmem:[%s7 + $0x8] sm:$0xff]
      %2082 = vset.pattern.permute.xlu0 0
      %2083 = vperm.xlu0 %2082, %v2079
      %v2084 = vpop.permute.xlu0 %2083
      %2087 = vset.pattern.permute.xlu0 0
      %2088 = vperm.xlu0 %2087, %v2080
      %v2089 = vpop.permute.xlu0 %2088
      %v2091 = vmul.f32 %v2084, %v2024
      %v2092 = vmul.f32 %v2084, %v2025
      %v2093 = vmul.f32 %v2089, %v2026
      %v2094 = vmul.f32 %v2089, %v2027
      %2095 = vset.pattern.permute.xlu0 5
      %2096 = vperm.xlu0 %2095, %v2079
      %v2097 = vpop.permute.xlu0 %2096
      %2099 = vset.pattern.permute.xlu0 5
      %2100 = vperm.xlu0 %2099, %v2080
      %v2101 = vpop.permute.xlu0 %2100
      %v2103 = vmul.f32 %v2097, %v2041
      %v2104 = vmul.f32 %v2097, %v2042
      %v2105 = vmul.f32 %v2101, %v2043
      %v2106 = vmul.f32 %v2101, %v2044
      %2107 = vset.pattern.permute.xlu0 10
      %2108 = vperm.xlu0 %2107, %v2079
      %v2109 = vpop.permute.xlu0 %2108
      %2111 = vset.pattern.permute.xlu0 10
      %2112 = vperm.xlu0 %2111, %v2080
      %v2113 = vpop.permute.xlu0 %2112
      %v2115 = vmul.f32 %v2109, %v832
      %v2116 = vmul.f32 %v2109, %v833
      %v2117 = vmul.f32 %v2113, %v834
      %v2118 = vmul.f32 %v2113, %v835
      %2119 = vset.pattern.permute.xlu0 15
      %2120 = vperm.xlu0 %2119, %v2079
      %v2121 = vpop.permute.xlu0 %2120
      %2123 = vset.pattern.permute.xlu0 15
      %2124 = vperm.xlu0 %2123, %v2080
      %v2125 = vpop.permute.xlu0 %2124
      %v2127 = vmul.f32 %v2121, %v2058
      %v2128 = vmul.f32 %v2121, %v2059
      %v2129 = vmul.f32 %v2125, %v2060
      %v2130 = vmul.f32 %v2125, %v2061
      %2131 = vset.pattern.permute.xlu0 20
      %2132 = vperm.xlu0 %2131, %v2079
      %v2133 = vpop.permute.xlu0 %2132
      %2135 = vset.pattern.permute.xlu0 20
      %2136 = vperm.xlu0 %2135, %v2080
      %v2137 = vpop.permute.xlu0 %2136
      %v2139 = vmul.f32 %v2133, %v2075
      %v2140 = vmul.f32 %v2133, %v2076
      %v2141 = vmul.f32 %v2137, %v2077
      %v2142 = vmul.f32 %v2137, %v2078
      %v2143 = vadd.f32 %v2091, %v2103
      %v2144 = vadd.f32 %v2092, %v2104
      %v2145 = vadd.f32 %v2093, %v2105
      %v2146 = vadd.f32 %v2094, %v2106
      %v2147 = vadd.f32 %v2115, %v2127
      %v2148 = vadd.f32 %v2116, %v2128
      %v2149 = vadd.f32 %v2117, %v2129
      %v2150 = vadd.f32 %v2118, %v2130
      %v2151 = vadd.f32 %v2143, %v2147
      %v2152 = vadd.f32 %v2144, %v2148
      %v2153 = vadd.f32 %v2145, %v2149
      %v2154 = vadd.f32 %v2146, %v2150
      %v2155 = vadd.f32 %v2151, %v2139
      %v2156 = vadd.f32 %v2152, %v2140
      %v2157 = vadd.f32 %v2153, %v2141
      %v2158 = vadd.f32 %v2154, %v2142
      %2159 = vrot.lane.b32.xlu0 %v2155, 4
      %v2160 = vpop.permute.xlu0 %2159
      %2161 = vrot.lane.b32.xlu0 %v2157, 4
      %v2162 = vpop.permute.xlu0 %2161
      %2163 = vrot.lane.b32.xlu0 %v2156, 4
      %v2164 = vpop.permute.xlu0 %2163
      %2165 = vrot.lane.b32.xlu0 %v2158, 4
      %v2166 = vpop.permute.xlu0 %2165
      %vm2167 = vcmp.lt.s32.totalorder %v845, 4
      %v2168 = vsel %vm2167, %v2160, %v2164
      %v2169 = vsel %vm2167, %v2162, %v2166
      %v2170 = vsel %vm2167, %v2164, %v2160
      %v2171 = vsel %vm2167, %v2166, %v2162
      %s2172 = scalar_lea.vmem %s19, 19
      %v2173 = vld [vmem:[%s2172] ss:$8 sm:$0x3]
      %v2175 = vlaneseq
      %v2176 = vshrl.u32 %v2175, 7
      %v2177 = vsub.s32 0, %v2176
      %v2178 = vrot.slane %v2173, %v2177
      %v2179 = vlaneseq
      %v2180 = vshrl.u32 %v2179, 7
      %v2181 = vsub.s32 1, %v2180
      %v2182 = vrot.slane %v2173, %v2181
      %v2185 = vmul.f32 %v2170, %v2178
      %v2186 = vmul.f32 %v2168, %v2182
      %v2187 = vmul.f32 %v2171, %v2178
      %v2188 = vmul.f32 %v2169, %v2182
      %2189 = vset.pattern.permute.xlu0 1
      %2190 = vperm.xlu0 %2189, %v2079
      %v2191 = vpop.permute.xlu0 %2190
      %2193 = vset.pattern.permute.xlu0 1
      %2194 = vperm.xlu0 %2193, %v2080
      %v2195 = vpop.permute.xlu0 %2194
      %v2197 = vmul.f32 %v2191, %v2024
      %v2198 = vmul.f32 %v2191, %v2025
      %v2199 = vmul.f32 %v2195, %v2026
      %v2200 = vmul.f32 %v2195, %v2027
      %2201 = vset.pattern.permute.xlu0 6
      %2202 = vperm.xlu0 %2201, %v2079
      %v2203 = vpop.permute.xlu0 %2202
      %2205 = vset.pattern.permute.xlu0 6
      %2206 = vperm.xlu0 %2205, %v2080
      %v2207 = vpop.permute.xlu0 %2206
      %v2209 = vmul.f32 %v2203, %v2041
      %v2210 = vmul.f32 %v2203, %v2042
      %v2211 = vmul.f32 %v2207, %v2043
      %v2212 = vmul.f32 %v2207, %v2044
      %2213 = vset.pattern.permute.xlu0 11
      %2214 = vperm.xlu0 %2213, %v2079
      %v2215 = vpop.permute.xlu0 %2214
      %2217 = vset.pattern.permute.xlu0 11
      %2218 = vperm.xlu0 %2217, %v2080
      %v2219 = vpop.permute.xlu0 %2218
      %v2221 = vmul.f32 %v2215, %v832
      %v2222 = vmul.f32 %v2215, %v833
      %v2223 = vmul.f32 %v2219, %v834
      %v2224 = vmul.f32 %v2219, %v835
      %2225 = vset.pattern.permute.xlu0 16
      %2226 = vperm.xlu0 %2225, %v2079
      %v2227 = vpop.permute.xlu0 %2226
      %2229 = vset.pattern.permute.xlu0 16
      %2230 = vperm.xlu0 %2229, %v2080
      %v2231 = vpop.permute.xlu0 %2230
      %v2233 = vmul.f32 %v2227, %v2058
      %v2234 = vmul.f32 %v2227, %v2059
      %v2235 = vmul.f32 %v2231, %v2060
      %v2236 = vmul.f32 %v2231, %v2061
      %2237 = vset.pattern.permute.xlu0 21
      %2238 = vperm.xlu0 %2237, %v2079
      %v2239 = vpop.permute.xlu0 %2238
      %2241 = vset.pattern.permute.xlu0 21
      %2242 = vperm.xlu0 %2241, %v2080
      %v2243 = vpop.permute.xlu0 %2242
      %v2245 = vmul.f32 %v2239, %v2075
      %v2246 = vmul.f32 %v2239, %v2076
      %v2247 = vmul.f32 %v2243, %v2077
      %v2248 = vmul.f32 %v2243, %v2078
      %v2249 = vadd.f32 %v2197, %v2209
      %v2250 = vadd.f32 %v2198, %v2210
      %v2251 = vadd.f32 %v2199, %v2211
      %v2252 = vadd.f32 %v2200, %v2212
      %v2253 = vadd.f32 %v2221, %v2233
      %v2254 = vadd.f32 %v2222, %v2234
      %v2255 = vadd.f32 %v2223, %v2235
      %v2256 = vadd.f32 %v2224, %v2236
      %v2257 = vadd.f32 %v2249, %v2253
      %v2258 = vadd.f32 %v2250, %v2254
      %v2259 = vadd.f32 %v2251, %v2255
      %v2260 = vadd.f32 %v2252, %v2256
      %v2261 = vadd.f32 %v2257, %v2245
      %v2262 = vadd.f32 %v2258, %v2246
      %v2263 = vadd.f32 %v2259, %v2247
      %v2264 = vadd.f32 %v2260, %v2248
      %2265 = vrot.lane.b32.xlu0 %v2261, 2
      %v2266 = vpop.permute.xlu0 %2265
      %2267 = vrot.lane.b32.xlu0 %v2263, 2
      %v2268 = vpop.permute.xlu0 %2267
      %2269 = vrot.lane.b32.xlu0 %v2262, 2
      %v2270 = vpop.permute.xlu0 %2269
      %2271 = vrot.lane.b32.xlu0 %v2264, 2
      %v2272 = vpop.permute.xlu0 %2271
      %vm2273 = vcmp.lt.s32.totalorder %v845, 2
      %v2274 = vsel %vm2273, %v2266, %v2270
      %v2275 = vsel %vm2273, %v2268, %v2272
      %v2276 = vsel %vm2273, %v2270, %v2266
      %v2277 = vsel %vm2273, %v2272, %v2268
      %s2278 = scalar_lea.vmem %s19, 20
      %v2279 = vld [vmem:[%s2278] ss:$8 sm:$0x3]
      %v2281 = vlaneseq
      %v2282 = vshrl.u32 %v2281, 7
      %v2283 = vsub.s32 0, %v2282
      %v2284 = vrot.slane %v2279, %v2283
      %v2285 = vlaneseq
      %v2286 = vshrl.u32 %v2285, 7
      %v2287 = vsub.s32 1, %v2286
      %v2288 = vrot.slane %v2279, %v2287
      %v2291 = vmul.f32 %v2276, %v2284
      %v2292 = vmul.f32 %v2274, %v2288
      %v2293 = vmul.f32 %v2277, %v2284
      %v2294 = vmul.f32 %v2275, %v2288
      %2295 = vset.pattern.permute.xlu0 2
      %2296 = vperm.xlu0 %2295, %v2079
      %v2297 = vpop.permute.xlu0 %2296
      %2299 = vset.pattern.permute.xlu0 2
      %2300 = vperm.xlu0 %2299, %v2080
      %v2301 = vpop.permute.xlu0 %2300
      %v2303 = vmul.f32 %v2297, %v2024
      %v2304 = vmul.f32 %v2297, %v2025
      %v2305 = vmul.f32 %v2301, %v2026
      %v2306 = vmul.f32 %v2301, %v2027
      %2307 = vset.pattern.permute.xlu0 7
      %2308 = vperm.xlu0 %2307, %v2079
      %v2309 = vpop.permute.xlu0 %2308
      %2311 = vset.pattern.permute.xlu0 7
      %2312 = vperm.xlu0 %2311, %v2080
      %v2313 = vpop.permute.xlu0 %2312
      %v2315 = vmul.f32 %v2309, %v2041
      %v2316 = vmul.f32 %v2309, %v2042
      %v2317 = vmul.f32 %v2313, %v2043
      %v2318 = vmul.f32 %v2313, %v2044
      %2319 = vset.pattern.permute.xlu0 12
      %2320 = vperm.xlu0 %2319, %v2079
      %v2321 = vpop.permute.xlu0 %2320
      %2323 = vset.pattern.permute.xlu0 12
      %2324 = vperm.xlu0 %2323, %v2080
      %v2325 = vpop.permute.xlu0 %2324
      %v2327 = vmul.f32 %v2321, %v832
      %v2328 = vmul.f32 %v2321, %v833
      %v2329 = vmul.f32 %v2325, %v834
      %v2330 = vmul.f32 %v2325, %v835
      %2331 = vset.pattern.permute.xlu0 17
      %2332 = vperm.xlu0 %2331, %v2079
      %v2333 = vpop.permute.xlu0 %2332
      %2335 = vset.pattern.permute.xlu0 17
      %2336 = vperm.xlu0 %2335, %v2080
      %v2337 = vpop.permute.xlu0 %2336
      %v2339 = vmul.f32 %v2333, %v2058
      %v2340 = vmul.f32 %v2333, %v2059
      %v2341 = vmul.f32 %v2337, %v2060
      %v2342 = vmul.f32 %v2337, %v2061
      %2343 = vset.pattern.permute.xlu0 22
      %2344 = vperm.xlu0 %2343, %v2079
      %v2345 = vpop.permute.xlu0 %2344
      %2347 = vset.pattern.permute.xlu0 22
      %2348 = vperm.xlu0 %2347, %v2080
      %v2349 = vpop.permute.xlu0 %2348
      %v2351 = vmul.f32 %v2345, %v2075
      %v2352 = vmul.f32 %v2345, %v2076
      %v2353 = vmul.f32 %v2349, %v2077
      %v2354 = vmul.f32 %v2349, %v2078
      %v2355 = vadd.f32 %v2303, %v2315
      %v2356 = vadd.f32 %v2304, %v2316
      %v2357 = vadd.f32 %v2305, %v2317
      %v2358 = vadd.f32 %v2306, %v2318
      %v2359 = vadd.f32 %v2327, %v2339
      %v2360 = vadd.f32 %v2328, %v2340
      %v2361 = vadd.f32 %v2329, %v2341
      %v2362 = vadd.f32 %v2330, %v2342
      %v2363 = vadd.f32 %v2355, %v2359
      %v2364 = vadd.f32 %v2356, %v2360
      %v2365 = vadd.f32 %v2357, %v2361
      %v2366 = vadd.f32 %v2358, %v2362
      %v2367 = vadd.f32 %v2363, %v2351
      %v2368 = vadd.f32 %v2364, %v2352
      %v2369 = vadd.f32 %v2365, %v2353
      %v2370 = vadd.f32 %v2366, %v2354
      %2371 = vset.pattern.permute.xlu0 3
      %2372 = vperm.xlu0 %2371, %v2079
      %v2373 = vpop.permute.xlu0 %2372
      %2375 = vset.pattern.permute.xlu0 3
      %2376 = vperm.xlu0 %2375, %v2080
      %v2377 = vpop.permute.xlu0 %2376
      %v2379 = vmul.f32 %v2373, %v2024
      %v2380 = vmul.f32 %v2373, %v2025
      %v2381 = vmul.f32 %v2377, %v2026
      %v2382 = vmul.f32 %v2377, %v2027
      %2383 = vset.pattern.permute.xlu0 8
      %2384 = vperm.xlu0 %2383, %v2079
      %v2385 = vpop.permute.xlu0 %2384
      %2387 = vset.pattern.permute.xlu0 8
      %2388 = vperm.xlu0 %2387, %v2080
      %v2389 = vpop.permute.xlu0 %2388
      %v2391 = vmul.f32 %v2385, %v2041
      %v2392 = vmul.f32 %v2385, %v2042
      %v2393 = vmul.f32 %v2389, %v2043
      %v2394 = vmul.f32 %v2389, %v2044
      %2395 = vset.pattern.permute.xlu0 13
      %2396 = vperm.xlu0 %2395, %v2079
      %v2397 = vpop.permute.xlu0 %2396
      %2399 = vset.pattern.permute.xlu0 13
      %2400 = vperm.xlu0 %2399, %v2080
      %v2401 = vpop.permute.xlu0 %2400
      %v2403 = vmul.f32 %v2397, %v832
      %v2404 = vmul.f32 %v2397, %v833
      %v2405 = vmul.f32 %v2401, %v834
      %v2406 = vmul.f32 %v2401, %v835
      %2407 = vset.pattern.permute.xlu0 18
      %2408 = vperm.xlu0 %2407, %v2079
      %v2409 = vpop.permute.xlu0 %2408
      %2411 = vset.pattern.permute.xlu0 18
      %2412 = vperm.xlu0 %2411, %v2080
      %v2413 = vpop.permute.xlu0 %2412
      %v2415 = vmul.f32 %v2409, %v2058
      %v2416 = vmul.f32 %v2409, %v2059
      %v2417 = vmul.f32 %v2413, %v2060
      %v2418 = vmul.f32 %v2413, %v2061
      %2419 = vset.pattern.permute.xlu0 23
      %2420 = vperm.xlu0 %2419, %v2079
      %v2421 = vpop.permute.xlu0 %2420
      %2423 = vset.pattern.permute.xlu0 23
      %2424 = vperm.xlu0 %2423, %v2080
      %v2425 = vpop.permute.xlu0 %2424
      %v2427 = vmul.f32 %v2421, %v2075
      %v2428 = vmul.f32 %v2421, %v2076
      %v2429 = vmul.f32 %v2425, %v2077
      %v2430 = vmul.f32 %v2425, %v2078
      %v2431 = vadd.f32 %v2379, %v2391
      %v2432 = vadd.f32 %v2380, %v2392
      %v2433 = vadd.f32 %v2381, %v2393
      %v2434 = vadd.f32 %v2382, %v2394
      %v2435 = vadd.f32 %v2403, %v2415
      %v2436 = vadd.f32 %v2404, %v2416
      %v2437 = vadd.f32 %v2405, %v2417
      %v2438 = vadd.f32 %v2406, %v2418
      %v2439 = vadd.f32 %v2431, %v2435
      %v2440 = vadd.f32 %v2432, %v2436
      %v2441 = vadd.f32 %v2433, %v2437
      %v2442 = vadd.f32 %v2434, %v2438
      %v2443 = vadd.f32 %v2439, %v2427
      %v2444 = vadd.f32 %v2440, %v2428
      %v2445 = vadd.f32 %v2441, %v2429
      %v2446 = vadd.f32 %v2442, %v2430
      %2447 = vrot.lane.b32.xlu0 %v2443, 126
      %v2448 = vpop.permute.xlu0 %2447
      %2449 = vrot.lane.b32.xlu0 %v2445, 126
      %v2450 = vpop.permute.xlu0 %2449
      %2451 = vrot.lane.b32.xlu0 %v2444, 126
      %v2452 = vpop.permute.xlu0 %2451
      %2453 = vrot.lane.b32.xlu0 %v2446, 126
      %v2454 = vpop.permute.xlu0 %2453
      %vm2455 = vcmp.lt.s32.totalorder %v845, 126
      %v2456 = vsel %vm2455, %v2448, %v2452
      %v2457 = vsel %vm2455, %v2450, %v2454
      %v2458 = vsel %vm2455, %v2452, %v2448
      %v2459 = vsel %vm2455, %v2454, %v2450
      %s2460 = scalar_lea.vmem %s19, 22
      %v2461 = vld [vmem:[%s2460] ss:$8 sm:$0x3]
      %v2463 = vlaneseq
      %v2464 = vshrl.u32 %v2463, 7
      %v2465 = vsub.s32 0, %v2464
      %v2466 = vrot.slane %v2461, %v2465
      %v2467 = vlaneseq
      %v2468 = vshrl.u32 %v2467, 7
      %v2469 = vsub.s32 1, %v2468
      %v2470 = vrot.slane %v2461, %v2469
      %v2473 = vmul.f32 %v2456, %v2466
      %v2474 = vmul.f32 %v2458, %v2470
      %v2475 = vmul.f32 %v2457, %v2466
      %v2476 = vmul.f32 %v2459, %v2470
      %2477 = vset.pattern.permute.xlu0 4
      %2478 = vperm.xlu0 %2477, %v2079
      %v2479 = vpop.permute.xlu0 %2478
      %2481 = vset.pattern.permute.xlu0 4
      %2482 = vperm.xlu0 %2481, %v2080
      %v2483 = vpop.permute.xlu0 %2482
      %v2485 = vmul.f32 %v2479, %v2024
      %v2486 = vmul.f32 %v2479, %v2025
      %v2487 = vmul.f32 %v2483, %v2026
      %v2488 = vmul.f32 %v2483, %v2027
      %2489 = vset.pattern.permute.xlu0 9
      %2490 = vperm.xlu0 %2489, %v2079
      %v2491 = vpop.permute.xlu0 %2490
      %2493 = vset.pattern.permute.xlu0 9
      %2494 = vperm.xlu0 %2493, %v2080
      %v2495 = vpop.permute.xlu0 %2494
      %v2497 = vmul.f32 %v2491, %v2041
      %v2498 = vmul.f32 %v2491, %v2042
      %v2499 = vmul.f32 %v2495, %v2043
      %v2500 = vmul.f32 %v2495, %v2044
      %2501 = vset.pattern.permute.xlu0 14
      %2502 = vperm.xlu0 %2501, %v2079
      %v2503 = vpop.permute.xlu0 %2502
      %2505 = vset.pattern.permute.xlu0 14
      %2506 = vperm.xlu0 %2505, %v2080
      %v2507 = vpop.permute.xlu0 %2506
      %v2509 = vmul.f32 %v2503, %v832
      %v2510 = vmul.f32 %v2503, %v833
      %v2511 = vmul.f32 %v2507, %v834
      %v2512 = vmul.f32 %v2507, %v835
      %2513 = vset.pattern.permute.xlu0 19
      %2514 = vperm.xlu0 %2513, %v2079
      %v2515 = vpop.permute.xlu0 %2514
      %2517 = vset.pattern.permute.xlu0 19
      %2518 = vperm.xlu0 %2517, %v2080
      %v2519 = vpop.permute.xlu0 %2518
      %v2521 = vmul.f32 %v2515, %v2058
      %v2522 = vmul.f32 %v2515, %v2059
      %v2523 = vmul.f32 %v2519, %v2060
      %v2524 = vmul.f32 %v2519, %v2061
      %2525 = vset.pattern.permute.xlu0 24
      %2526 = vperm.xlu0 %2525, %v2079
      %v2527 = vpop.permute.xlu0 %2526
      %2529 = vset.pattern.permute.xlu0 24
      %2530 = vperm.xlu0 %2529, %v2080
      %v2531 = vpop.permute.xlu0 %2530
      %v2533 = vmul.f32 %v2527, %v2075
      %v2534 = vmul.f32 %v2527, %v2076
      %v2535 = vmul.f32 %v2531, %v2077
      %v2536 = vmul.f32 %v2531, %v2078
      %v2537 = vadd.f32 %v2485, %v2497
      %v2538 = vadd.f32 %v2486, %v2498
      %v2539 = vadd.f32 %v2487, %v2499
      %v2540 = vadd.f32 %v2488, %v2500
      %v2541 = vadd.f32 %v2509, %v2521
      %v2542 = vadd.f32 %v2510, %v2522
      %v2543 = vadd.f32 %v2511, %v2523
      %v2544 = vadd.f32 %v2512, %v2524
      %v2545 = vadd.f32 %v2537, %v2541
      %v2546 = vadd.f32 %v2538, %v2542
      %v2547 = vadd.f32 %v2539, %v2543
      %v2548 = vadd.f32 %v2540, %v2544
      %v2549 = vadd.f32 %v2545, %v2533
      %v2550 = vadd.f32 %v2546, %v2534
      %v2551 = vadd.f32 %v2547, %v2535
      %v2552 = vadd.f32 %v2548, %v2536
      %2553 = vrot.lane.b32.xlu0 %v2549, 124
      %v2554 = vpop.permute.xlu0 %2553
      %2555 = vrot.lane.b32.xlu0 %v2551, 124
      %v2556 = vpop.permute.xlu0 %2555
      %2557 = vrot.lane.b32.xlu0 %v2550, 124
      %v2558 = vpop.permute.xlu0 %2557
      %2559 = vrot.lane.b32.xlu0 %v2552, 124
      %v2560 = vpop.permute.xlu0 %2559
      %vm2561 = vcmp.lt.s32.totalorder %v845, 124
      %v2562 = vsel %vm2561, %v2554, %v2558
      %v2563 = vsel %vm2561, %v2556, %v2560
      %v2564 = vsel %vm2561, %v2558, %v2554
      %v2565 = vsel %vm2561, %v2560, %v2556
      %s2566 = scalar_lea.vmem %s19, 23
      %v2567 = vld [vmem:[%s2566] ss:$8 sm:$0x3]
      %v2569 = vlaneseq
      %v2570 = vshrl.u32 %v2569, 7
      %v2571 = vsub.s32 0, %v2570
      %v2572 = vrot.slane %v2567, %v2571
      %v2573 = vlaneseq
      %v2574 = vshrl.u32 %v2573, 7
      %v2575 = vsub.s32 1, %v2574
      %v2576 = vrot.slane %v2567, %v2575
      %v2579 = vmul.f32 %v2562, %v2572
      %v2580 = vmul.f32 %v2564, %v2576
      %v2581 = vmul.f32 %v2563, %v2572
      %v2582 = vmul.f32 %v2565, %v2576
      %v2583 = vadd.f32 %v2185, %v2291
      %v2584 = vadd.f32 %v2186, %v2292
      %v2585 = vadd.f32 %v2187, %v2293
      %v2586 = vadd.f32 %v2188, %v2294
      %v2587 = vadd.f32 %v2367, %v2473
      %v2588 = vadd.f32 %v2368, %v2474
      %v2589 = vadd.f32 %v2369, %v2475
      %v2590 = vadd.f32 %v2370, %v2476
      %v2591 = vadd.f32 %v2583, %v2587
      %v2592 = vadd.f32 %v2584, %v2588
      %v2593 = vadd.f32 %v2585, %v2589
      %v2594 = vadd.f32 %v2586, %v2590
      %v2595 = vadd.f32 %v2591, %v2579
      %v2596 = vadd.f32 %v2592, %v2580
      %v2597 = vadd.f32 %v2593, %v2581
      %v2598 = vadd.f32 %v2594, %v2582
      %v2599 = vld [vmem:[%s8] sm:$0xff]
      %v2600 = vld [vmem:[%s8 + $0x8] sm:$0xff]
      %2602 = vset.pattern.permute.xlu0 0
      %2603 = vperm.xlu0 %2602, %v2599
      %v2604 = vpop.permute.xlu0 %2603
      %2607 = vset.pattern.permute.xlu0 0
      %2608 = vperm.xlu0 %2607, %v2600
      %v2609 = vpop.permute.xlu0 %2608
      %v2611 = vadd.f32 %v2595, %v2604
      %v2612 = vadd.f32 %v2596, %v2604
      %v2613 = vadd.f32 %v2597, %v2609
      %v2614 = vadd.f32 %v2598, %v2609
      %v2615 = vld [vmem:[%s19] ss:$8 sm:$0x3]
      %v2617 = vlaneseq
      %v2618 = vshrl.u32 %v2617, 7
      %v2619 = vsub.s32 0, %v2618
      %v2620 = vrot.slane %v2615, %v2619
      %v2621 = vlaneseq
      %v2622 = vshrl.u32 %v2621, 7
      %v2623 = vsub.s32 1, %v2622
      %v2624 = vrot.slane %v2615, %v2623
      %v2627 = vmul.f32 %v849, %v2620
      %v2628 = vmul.f32 %v847, %v2624
      %v2629 = vmul.f32 %v850, %v2620
      %v2630 = vmul.f32 %v848, %v2624
      %s2631 = scalar_lea.vmem %s19, 2
      %v2632 = vld [vmem:[%s2631] ss:$8 sm:$0x3]
      %v2634 = vlaneseq
      %v2635 = vshrl.u32 %v2634, 7
      %v2636 = vsub.s32 0, %v2635
      %v2637 = vrot.slane %v2632, %v2636
      %v2638 = vlaneseq
      %v2639 = vshrl.u32 %v2638, 7
      %v2640 = vsub.s32 1, %v2639
      %v2641 = vrot.slane %v2632, %v2640
      %v2644 = vmul.f32 %v997, %v2637
      %v2645 = vmul.f32 %v999, %v2641
      %v2646 = vmul.f32 %v998, %v2637
      %v2647 = vmul.f32 %v1000, %v2641
      %v2648 = vld [vmem:[%s5] sm:$0xff]
      %v2649 = vld [vmem:[%s5 + $0x8] sm:$0xff]
      %s2650 = scalar_lea.vmem %s5, 48
      %v2651 = vld [vmem:[%s2650] sm:$0xff]
      %v2652 = vld [vmem:[%s2650 + $0x8] sm:$0xff]
      %v2654 = vsel %vm648, %v2651, 0
      %v2657 = vsel %vm648, %v2652, 0
      %2659 = vmatprep.subr.mxu0 0.0
      %2660 = vmatpush1.msra.mxu0 0.0
      %2661 = vmatprep.subr.mxu0 0.0
      %2662 = vmatpush1.msra.mxu0 0.0
      %2663 = vmatprep.subr.mxu0 0.0
      %2664 = vmatpush1.msra.mxu0 0.0
      %2665 = vmatprep.subr.mxu0 0.0
      %2666 = vmatpush1.msra.mxu0 0.0
      %2667 = vmatprep.subr.mxu0 0.0
      %2668 = vmatpush1.msra.mxu0 0.0
      %2669 = vmatprep.subr.mxu0 0.0
      %2670 = vmatpush1.msra.mxu0 0.0
      %2671 = vmatprep.subr.mxu0 0.0
      %2672 = vmatpush1.msra.mxu0 0.0
      %2673 = vmatprep.subr.mxu0 0.0
      %2674 = vmatpush1.msra.mxu0 0.0
      %2675 = vmatprep.subr.mxu0 0.0
      %2676 = vmatpush1.msra.mxu0 0.0
      %2677 = vmatprep.subr.mxu0 0.0
      %2678 = vmatpush1.msra.mxu0 0.0
      %2679 = vmatprep.subr.mxu0 0.0
      %2680 = vmatpush1.msra.mxu0 0.0
      %2681 = vmatprep.subr.mxu0 0.0
      %2682 = vmatpush1.msra.mxu0 0.0
      %2683 = vmatprep.subr.mxu0 0.0
      %2684 = vmatpush1.msra.mxu0 0.0
      %2685 = vmatprep.subr.mxu0 0.0
      %2686 = vmatpush1.msra.mxu0 0.0
      %2687 = vmatprep.subr.mxu0 %v835
      %2688 = vmatpush1.msra.mxu0 %v834
      %2689 = vmatprep.subr.mxu0 %v833
      %2690 = vmatpush1.msra.mxu0 %v832
      %2691 = vmatprep.subr.mxu0 0.0
      %2692 = vmatpush2.msra.mxu0 0.0
      %2693 = vmatprep.subr.mxu0 0.0
      %2694 = vmatpush2.msra.mxu0 0.0
      %2695 = vmatprep.subr.mxu0 0.0
      %2696 = vmatpush2.msra.mxu0 0.0
      %2697 = vmatprep.subr.mxu0 0.0
      %2698 = vmatpush2.msra.mxu0 0.0
      %2699 = vmatprep.subr.mxu0 0.0
      %2700 = vmatpush2.msra.mxu0 0.0
      %2701 = vmatprep.subr.mxu0 0.0
      %2702 = vmatpush2.msra.mxu0 0.0
      %2703 = vmatprep.subr.mxu0 0.0
      %2704 = vmatpush2.msra.mxu0 0.0
      %2705 = vmatprep.subr.mxu0 0.0
      %2706 = vmatpush2.msra.mxu0 0.0
      %2707 = vmatprep.subr.mxu0 0.0
      %2708 = vmatpush2.msra.mxu0 0.0
      %2709 = vmatprep.subr.mxu0 0.0
      %2710 = vmatpush2.msra.mxu0 0.0
      %2711 = vmatprep.subr.mxu0 0.0
      %2712 = vmatpush2.msra.mxu0 0.0
      %2713 = vmatprep.subr.mxu0 0.0
      %2714 = vmatpush2.msra.mxu0 0.0
      %2715 = vmatprep.subr.mxu0 0.0
      %2716 = vmatpush2.msra.mxu0 0.0
      %2717 = vmatprep.subr.mxu0 0.0
      %2718 = vmatpush2.msra.mxu0 0.0
      %2719 = vmatprep.subr.mxu0 0.0
      %2720 = vmatpush2.msra.mxu0 0.0
      %2721 = vmatprep.subr.mxu0 0.0
      %2722 = vmatpush2.msra.mxu0 0.0
      %2723 = vmatprep.mubr.f32.mxu0 0.0
      %2724 = vmatmul.mubr.f32.gmra.mxu0 %v2654
      %v2725 = vpop.f32.mrf.mxu0
      %v2726 = vadd.f32 0.0, %v2725
      %v2727 = vpop.f32.mrf.mxu0
      %v2728 = vadd.f32 0.0, %v2727
      %2729 = vmatprep.mubr.f32.mxu0 0.0
      %2730 = vmatmul.mubr.f32.gmra.mxu0 %v2657
      %v2731 = vpop.f32.mrf.mxu0
      %v2732 = vadd.f32 0.0, %v2731
      %v2733 = vpop.f32.mrf.mxu0
      %v2734 = vadd.f32 0.0, %v2733
      %2735 = vdwg.mxu0
      %s2736 = scalar_lea.vmem %s5, 96
      %v2737 = vld [vmem:[%s2736] sm:$0xff]
      %v2738 = vld [vmem:[%s2736 + $0x8] sm:$0xff]
      %v2740 = vsel %vm648, %v2737, 0
      %v2743 = vsel %vm648, %v2738, 0
      %2745 = vmatprep.subr.mxu0 0.0
      %2746 = vmatpush1.msra.mxu0 0.0
      %2747 = vmatprep.subr.mxu0 0.0
      %2748 = vmatpush1.msra.mxu0 0.0
      %2749 = vmatprep.subr.mxu0 0.0
      %2750 = vmatpush1.msra.mxu0 0.0
      %2751 = vmatprep.subr.mxu0 0.0
      %2752 = vmatpush1.msra.mxu0 0.0
      %2753 = vmatprep.subr.mxu0 0.0
      %2754 = vmatpush1.msra.mxu0 0.0
      %2755 = vmatprep.subr.mxu0 0.0
      %2756 = vmatpush1.msra.mxu0 0.0
      %2757 = vmatprep.subr.mxu0 0.0
      %2758 = vmatpush1.msra.mxu0 0.0
      %2759 = vmatprep.subr.mxu0 0.0
      %2760 = vmatpush1.msra.mxu0 0.0
      %2761 = vmatprep.subr.mxu0 0.0
      %2762 = vmatpush1.msra.mxu0 0.0
      %2763 = vmatprep.subr.mxu0 0.0
      %2764 = vmatpush1.msra.mxu0 0.0
      %2765 = vmatprep.subr.mxu0 0.0
      %2766 = vmatpush1.msra.mxu0 0.0
      %2767 = vmatprep.subr.mxu0 0.0
      %2768 = vmatpush1.msra.mxu0 0.0
      %2769 = vmatprep.subr.mxu0 0.0
      %2770 = vmatpush1.msra.mxu0 0.0
      %2771 = vmatprep.subr.mxu0 0.0
      %2772 = vmatpush1.msra.mxu0 0.0
      %2773 = vmatprep.subr.mxu0 %v2647
      %2774 = vmatpush1.msra.mxu0 %v2646
      %2775 = vmatprep.subr.mxu0 %v2645
      %2776 = vmatpush1.msra.mxu0 %v2644
      %2777 = vmatprep.subr.mxu0 0.0
      %2778 = vmatpush2.msra.mxu0 0.0
      %2779 = vmatprep.subr.mxu0 0.0
      %2780 = vmatpush2.msra.mxu0 0.0
      %2781 = vmatprep.subr.mxu0 0.0
      %2782 = vmatpush2.msra.mxu0 0.0
      %2783 = vmatprep.subr.mxu0 0.0
      %2784 = vmatpush2.msra.mxu0 0.0
      %2785 = vmatprep.subr.mxu0 0.0
      %2786 = vmatpush2.msra.mxu0 0.0
      %2787 = vmatprep.subr.mxu0 0.0
      %2788 = vmatpush2.msra.mxu0 0.0
      %2789 = vmatprep.subr.mxu0 0.0
      %2790 = vmatpush2.msra.mxu0 0.0
      %2791 = vmatprep.subr.mxu0 0.0
      %2792 = vmatpush2.msra.mxu0 0.0
      %2793 = vmatprep.subr.mxu0 0.0
      %2794 = vmatpush2.msra.mxu0 0.0
      %2795 = vmatprep.subr.mxu0 0.0
      %2796 = vmatpush2.msra.mxu0 0.0
      %2797 = vmatprep.subr.mxu0 0.0
      %2798 = vmatpush2.msra.mxu0 0.0
      %2799 = vmatprep.subr.mxu0 0.0
      %2800 = vmatpush2.msra.mxu0 0.0
      %2801 = vmatprep.subr.mxu0 0.0
      %2802 = vmatpush2.msra.mxu0 0.0
      %2803 = vmatprep.subr.mxu0 0.0
      %2804 = vmatpush2.msra.mxu0 0.0
      %2805 = vmatprep.subr.mxu0 0.0
      %2806 = vmatpush2.msra.mxu0 0.0
      %2807 = vmatprep.subr.mxu0 0.0
      %2808 = vmatpush2.msra.mxu0 0.0
      %2809 = vmatprep.mubr.f32.mxu0 0.0
      %2810 = vmatmul.mubr.f32.gmra.mxu0 %v2740
      %v2811 = vpop.f32.mrf.mxu0
      %v2812 = vadd.f32 0.0, %v2811
      %v2813 = vpop.f32.mrf.mxu0
      %v2814 = vadd.f32 0.0, %v2813
      %2815 = vmatprep.mubr.f32.mxu0 0.0
      %2816 = vmatmul.mubr.f32.gmra.mxu0 %v2743
      %v2817 = vpop.f32.mrf.mxu0
      %v2818 = vadd.f32 0.0, %v2817
      %v2819 = vpop.f32.mrf.mxu0
      %v2820 = vadd.f32 0.0, %v2819
      %2821 = vdwg.mxu0
      %v2823 = vsel %vm648, %v2648, 0
      %v2826 = vsel %vm648, %v2649, 0
      %2828 = vmatprep.subr.mxu0 0.0
      %2829 = vmatpush1.msra.mxu0 0.0
      %2830 = vmatprep.subr.mxu0 0.0
      %2831 = vmatpush1.msra.mxu0 0.0
      %2832 = vmatprep.subr.mxu0 0.0
      %2833 = vmatpush1.msra.mxu0 0.0
      %2834 = vmatprep.subr.mxu0 0.0
      %2835 = vmatpush1.msra.mxu0 0.0
      %2836 = vmatprep.subr.mxu0 0.0
      %2837 = vmatpush1.msra.mxu0 0.0
      %2838 = vmatprep.subr.mxu0 0.0
      %2839 = vmatpush1.msra.mxu0 0.0
      %2840 = vmatprep.subr.mxu0 0.0
      %2841 = vmatpush1.msra.mxu0 0.0
      %2842 = vmatprep.subr.mxu0 0.0
      %2843 = vmatpush1.msra.mxu0 0.0
      %2844 = vmatprep.subr.mxu0 0.0
      %2845 = vmatpush1.msra.mxu0 0.0
      %2846 = vmatprep.subr.mxu0 0.0
      %2847 = vmatpush1.msra.mxu0 0.0
      %2848 = vmatprep.subr.mxu0 0.0
      %2849 = vmatpush1.msra.mxu0 0.0
      %2850 = vmatprep.subr.mxu0 0.0
      %2851 = vmatpush1.msra.mxu0 0.0
      %2852 = vmatprep.subr.mxu0 0.0
      %2853 = vmatpush1.msra.mxu0 0.0
      %2854 = vmatprep.subr.mxu0 0.0
      %2855 = vmatpush1.msra.mxu0 0.0
      %2856 = vmatprep.subr.mxu0 %v2630
      %2857 = vmatpush1.msra.mxu0 %v2629
      %2858 = vmatprep.subr.mxu0 %v2628
      %2859 = vmatpush1.msra.mxu0 %v2627
      %2860 = vmatprep.subr.mxu0 0.0
      %2861 = vmatpush2.msra.mxu0 0.0
      %2862 = vmatprep.subr.mxu0 0.0
      %2863 = vmatpush2.msra.mxu0 0.0
      %2864 = vmatprep.subr.mxu0 0.0
      %2865 = vmatpush2.msra.mxu0 0.0
      %2866 = vmatprep.subr.mxu0 0.0
      %2867 = vmatpush2.msra.mxu0 0.0
      %2868 = vmatprep.subr.mxu0 0.0
      %2869 = vmatpush2.msra.mxu0 0.0
      %2870 = vmatprep.subr.mxu0 0.0
      %2871 = vmatpush2.msra.mxu0 0.0
      %2872 = vmatprep.subr.mxu0 0.0
      %2873 = vmatpush2.msra.mxu0 0.0
      %2874 = vmatprep.subr.mxu0 0.0
      %2875 = vmatpush2.msra.mxu0 0.0
      %2876 = vmatprep.subr.mxu0 0.0
      %2877 = vmatpush2.msra.mxu0 0.0
      %2878 = vmatprep.subr.mxu0 0.0
      %2879 = vmatpush2.msra.mxu0 0.0
      %2880 = vmatprep.subr.mxu0 0.0
      %2881 = vmatpush2.msra.mxu0 0.0
      %2882 = vmatprep.subr.mxu0 0.0
      %2883 = vmatpush2.msra.mxu0 0.0
      %2884 = vmatprep.subr.mxu0 0.0
      %2885 = vmatpush2.msra.mxu0 0.0
      %2886 = vmatprep.subr.mxu0 0.0
      %2887 = vmatpush2.msra.mxu0 0.0
      %2888 = vmatprep.subr.mxu0 0.0
      %2889 = vmatpush2.msra.mxu0 0.0
      %2890 = vmatprep.subr.mxu0 0.0
      %2891 = vmatpush2.msra.mxu0 0.0
      %2892 = vmatprep.mubr.f32.mxu0 0.0
      %2893 = vmatmul.mubr.f32.gmra.mxu0 %v2823
      %v2894 = vpop.f32.mrf.mxu0
      %v2895 = vadd.f32 %v2726, %v2894
      %v2896 = vpop.f32.mrf.mxu0
      %v2897 = vadd.f32 %v2728, %v2896
      %2898 = vmatprep.mubr.f32.mxu0 0.0
      %2899 = vmatmul.mubr.f32.gmra.mxu0 %v2826
      %v2900 = vpop.f32.mrf.mxu0
      %v2901 = vadd.f32 %v2732, %v2900
      %v2902 = vpop.f32.mrf.mxu0
      %v2903 = vadd.f32 %v2734, %v2902
      %2904 = vdwg.mxu0
      %v2905 = vadd.f32 %v2895, %v2812
      %v2906 = vadd.f32 %v2897, %v2814
      %v2907 = vadd.f32 %v2901, %v2818
      %v2908 = vadd.f32 %v2903, %v2820
      %2909 = vrot.lane.b32.xlu0 %v2905, 1
      %v2910 = vpop.permute.xlu0 %2909
      %2911 = vrot.lane.b32.xlu0 %v2907, 1
      %v2912 = vpop.permute.xlu0 %2911
      %2913 = vrot.lane.b32.xlu0 %v2906, 1
      %v2914 = vpop.permute.xlu0 %2913
      %2915 = vrot.lane.b32.xlu0 %v2908, 1
      %v2916 = vpop.permute.xlu0 %2915
      %vm2917 = vcmp.lt.s32.totalorder %v845, 1
      %v2918 = vsel %vm2917, %v2910, %v2914
      %v2919 = vsel %vm2917, %v2912, %v2916
      %v2920 = vsel %vm2917, %v2914, %v2910
      %v2921 = vsel %vm2917, %v2916, %v2912
      %s2922 = scalar_lea.vmem %s19, 3
      %v2923 = vld [vmem:[%s2922] ss:$8 sm:$0x3]
      %v2925 = vlaneseq
      %v2926 = vshrl.u32 %v2925, 7
      %v2927 = vsub.s32 0, %v2926
      %v2928 = vrot.slane %v2923, %v2927
      %v2929 = vlaneseq
      %v2930 = vshrl.u32 %v2929, 7
      %v2931 = vsub.s32 1, %v2930
      %v2932 = vrot.slane %v2923, %v2931
      %v2935 = vmul.f32 %v2920, %v2928
      %v2936 = vmul.f32 %v2918, %v2932
      %v2937 = vmul.f32 %v2921, %v2928
      %v2938 = vmul.f32 %v2919, %v2932
      %s2939 = scalar_lea.vmem %s5, 16
      %v2940 = vld [vmem:[%s2939] sm:$0xff]
      %v2941 = vld [vmem:[%s2939 + $0x8] sm:$0xff]
      %s2942 = scalar_lea.vmem %s5, 64
      %v2943 = vld [vmem:[%s2942] sm:$0xff]
      %v2944 = vld [vmem:[%s2942 + $0x8] sm:$0xff]
      %v2946 = vsel %vm648, %v2943, 0
      %v2949 = vsel %vm648, %v2944, 0
      %2951 = vmatprep.subr.mxu0 0.0
      %2952 = vmatpush1.msra.mxu0 0.0
      %2953 = vmatprep.subr.mxu0 0.0
      %2954 = vmatpush1.msra.mxu0 0.0
      %2955 = vmatprep.subr.mxu0 0.0
      %2956 = vmatpush1.msra.mxu0 0.0
      %2957 = vmatprep.subr.mxu0 0.0
      %2958 = vmatpush1.msra.mxu0 0.0
      %2959 = vmatprep.subr.mxu0 0.0
      %2960 = vmatpush1.msra.mxu0 0.0
      %2961 = vmatprep.subr.mxu0 0.0
      %2962 = vmatpush1.msra.mxu0 0.0
      %2963 = vmatprep.subr.mxu0 0.0
      %2964 = vmatpush1.msra.mxu0 0.0
      %2965 = vmatprep.subr.mxu0 0.0
      %2966 = vmatpush1.msra.mxu0 0.0
      %2967 = vmatprep.subr.mxu0 0.0
      %2968 = vmatpush1.msra.mxu0 0.0
      %2969 = vmatprep.subr.mxu0 0.0
      %2970 = vmatpush1.msra.mxu0 0.0
      %2971 = vmatprep.subr.mxu0 0.0
      %2972 = vmatpush1.msra.mxu0 0.0
      %2973 = vmatprep.subr.mxu0 0.0
      %2974 = vmatpush1.msra.mxu0 0.0
      %2975 = vmatprep.subr.mxu0 0.0
      %2976 = vmatpush1.msra.mxu0 0.0
      %2977 = vmatprep.subr.mxu0 0.0
      %2978 = vmatpush1.msra.mxu0 0.0
      %2979 = vmatprep.subr.mxu0 %v835
      %2980 = vmatpush1.msra.mxu0 %v834
      %2981 = vmatprep.subr.mxu0 %v833
      %2982 = vmatpush1.msra.mxu0 %v832
      %2983 = vmatprep.subr.mxu0 0.0
      %2984 = vmatpush2.msra.mxu0 0.0
      %2985 = vmatprep.subr.mxu0 0.0
      %2986 = vmatpush2.msra.mxu0 0.0
      %2987 = vmatprep.subr.mxu0 0.0
      %2988 = vmatpush2.msra.mxu0 0.0
      %2989 = vmatprep.subr.mxu0 0.0
      %2990 = vmatpush2.msra.mxu0 0.0
      %2991 = vmatprep.subr.mxu0 0.0
      %2992 = vmatpush2.msra.mxu0 0.0
      %2993 = vmatprep.subr.mxu0 0.0
      %2994 = vmatpush2.msra.mxu0 0.0
      %2995 = vmatprep.subr.mxu0 0.0
      %2996 = vmatpush2.msra.mxu0 0.0
      %2997 = vmatprep.subr.mxu0 0.0
      %2998 = vmatpush2.msra.mxu0 0.0
      %2999 = vmatprep.subr.mxu0 0.0
      %3000 = vmatpush2.msra.mxu0 0.0
      %3001 = vmatprep.subr.mxu0 0.0
      %3002 = vmatpush2.msra.mxu0 0.0
      %3003 = vmatprep.subr.mxu0 0.0
      %3004 = vmatpush2.msra.mxu0 0.0
      %3005 = vmatprep.subr.mxu0 0.0
      %3006 = vmatpush2.msra.mxu0 0.0
      %3007 = vmatprep.subr.mxu0 0.0
      %3008 = vmatpush2.msra.mxu0 0.0
      %3009 = vmatprep.subr.mxu0 0.0
      %3010 = vmatpush2.msra.mxu0 0.0
      %3011 = vmatprep.subr.mxu0 0.0
      %3012 = vmatpush2.msra.mxu0 0.0
      %3013 = vmatprep.subr.mxu0 0.0
      %3014 = vmatpush2.msra.mxu0 0.0
      %3015 = vmatprep.mubr.f32.mxu0 0.0
      %3016 = vmatmul.mubr.f32.gmra.mxu0 %v2946
      %v3017 = vpop.f32.mrf.mxu0
      %v3018 = vadd.f32 0.0, %v3017
      %v3019 = vpop.f32.mrf.mxu0
      %v3020 = vadd.f32 0.0, %v3019
      %3021 = vmatprep.mubr.f32.mxu0 0.0
      %3022 = vmatmul.mubr.f32.gmra.mxu0 %v2949
      %v3023 = vpop.f32.mrf.mxu0
      %v3024 = vadd.f32 0.0, %v3023
      %v3025 = vpop.f32.mrf.mxu0
      %v3026 = vadd.f32 0.0, %v3025
      %3027 = vdwg.mxu0
      %s3028 = scalar_lea.vmem %s5, 112
      %v3029 = vld [vmem:[%s3028] sm:$0xff]
      %v3030 = vld [vmem:[%s3028 + $0x8] sm:$0xff]
      %v3032 = vsel %vm648, %v3029, 0
      %v3035 = vsel %vm648, %v3030, 0
      %3037 = vmatprep.subr.mxu0 0.0
      %3038 = vmatpush1.msra.mxu0 0.0
      %3039 = vmatprep.subr.mxu0 0.0
      %3040 = vmatpush1.msra.mxu0 0.0
      %3041 = vmatprep.subr.mxu0 0.0
      %3042 = vmatpush1.msra.mxu0 0.0
      %3043 = vmatprep.subr.mxu0 0.0
      %3044 = vmatpush1.msra.mxu0 0.0
      %3045 = vmatprep.subr.mxu0 0.0
      %3046 = vmatpush1.msra.mxu0 0.0
      %3047 = vmatprep.subr.mxu0 0.0
      %3048 = vmatpush1.msra.mxu0 0.0
      %3049 = vmatprep.subr.mxu0 0.0
      %3050 = vmatpush1.msra.mxu0 0.0
      %3051 = vmatprep.subr.mxu0 0.0
      %3052 = vmatpush1.msra.mxu0 0.0
      %3053 = vmatprep.subr.mxu0 0.0
      %3054 = vmatpush1.msra.mxu0 0.0
      %3055 = vmatprep.subr.mxu0 0.0
      %3056 = vmatpush1.msra.mxu0 0.0
      %3057 = vmatprep.subr.mxu0 0.0
      %3058 = vmatpush1.msra.mxu0 0.0
      %3059 = vmatprep.subr.mxu0 0.0
      %3060 = vmatpush1.msra.mxu0 0.0
      %3061 = vmatprep.subr.mxu0 0.0
      %3062 = vmatpush1.msra.mxu0 0.0
      %3063 = vmatprep.subr.mxu0 0.0
      %3064 = vmatpush1.msra.mxu0 0.0
      %3065 = vmatprep.subr.mxu0 %v2647
      %3066 = vmatpush1.msra.mxu0 %v2646
      %3067 = vmatprep.subr.mxu0 %v2645
      %3068 = vmatpush1.msra.mxu0 %v2644
      %3069 = vmatprep.subr.mxu0 0.0
      %3070 = vmatpush2.msra.mxu0 0.0
      %3071 = vmatprep.subr.mxu0 0.0
      %3072 = vmatpush2.msra.mxu0 0.0
      %3073 = vmatprep.subr.mxu0 0.0
      %3074 = vmatpush2.msra.mxu0 0.0
      %3075 = vmatprep.subr.mxu0 0.0
      %3076 = vmatpush2.msra.mxu0 0.0
      %3077 = vmatprep.subr.mxu0 0.0
      %3078 = vmatpush2.msra.mxu0 0.0
      %3079 = vmatprep.subr.mxu0 0.0
      %3080 = vmatpush2.msra.mxu0 0.0
      %3081 = vmatprep.subr.mxu0 0.0
      %3082 = vmatpush2.msra.mxu0 0.0
      %3083 = vmatprep.subr.mxu0 0.0
      %3084 = vmatpush2.msra.mxu0 0.0
      %3085 = vmatprep.subr.mxu0 0.0
      %3086 = vmatpush2.msra.mxu0 0.0
      %3087 = vmatprep.subr.mxu0 0.0
      %3088 = vmatpush2.msra.mxu0 0.0
      %3089 = vmatprep.subr.mxu0 0.0
      %3090 = vmatpush2.msra.mxu0 0.0
      %3091 = vmatprep.subr.mxu0 0.0
      %3092 = vmatpush2.msra.mxu0 0.0
      %3093 = vmatprep.subr.mxu0 0.0
      %3094 = vmatpush2.msra.mxu0 0.0
      %3095 = vmatprep.subr.mxu0 0.0
      %3096 = vmatpush2.msra.mxu0 0.0
      %3097 = vmatprep.subr.mxu0 0.0
      %3098 = vmatpush2.msra.mxu0 0.0
      %3099 = vmatprep.subr.mxu0 0.0
      %3100 = vmatpush2.msra.mxu0 0.0
      %3101 = vmatprep.mubr.f32.mxu0 0.0
      %3102 = vmatmul.mubr.f32.gmra.mxu0 %v3032
      %v3103 = vpop.f32.mrf.mxu0
      %v3104 = vadd.f32 0.0, %v3103
      %v3105 = vpop.f32.mrf.mxu0
      %v3106 = vadd.f32 0.0, %v3105
      %3107 = vmatprep.mubr.f32.mxu0 0.0
      %3108 = vmatmul.mubr.f32.gmra.mxu0 %v3035
      %v3109 = vpop.f32.mrf.mxu0
      %v3110 = vadd.f32 0.0, %v3109
      %v3111 = vpop.f32.mrf.mxu0
      %v3112 = vadd.f32 0.0, %v3111
      %3113 = vdwg.mxu0
      %v3115 = vsel %vm648, %v2940, 0
      %v3118 = vsel %vm648, %v2941, 0
      %3120 = vmatprep.subr.mxu0 0.0
      %3121 = vmatpush1.msra.mxu0 0.0
      %3122 = vmatprep.subr.mxu0 0.0
      %3123 = vmatpush1.msra.mxu0 0.0
      %3124 = vmatprep.subr.mxu0 0.0
      %3125 = vmatpush1.msra.mxu0 0.0
      %3126 = vmatprep.subr.mxu0 0.0
      %3127 = vmatpush1.msra.mxu0 0.0
      %3128 = vmatprep.subr.mxu0 0.0
      %3129 = vmatpush1.msra.mxu0 0.0
      %3130 = vmatprep.subr.mxu0 0.0
      %3131 = vmatpush1.msra.mxu0 0.0
      %3132 = vmatprep.subr.mxu0 0.0
      %3133 = vmatpush1.msra.mxu0 0.0
      %3134 = vmatprep.subr.mxu0 0.0
      %3135 = vmatpush1.msra.mxu0 0.0
      %3136 = vmatprep.subr.mxu0 0.0
      %3137 = vmatpush1.msra.mxu0 0.0
      %3138 = vmatprep.subr.mxu0 0.0
      %3139 = vmatpush1.msra.mxu0 0.0
      %3140 = vmatprep.subr.mxu0 0.0
      %3141 = vmatpush1.msra.mxu0 0.0
      %3142 = vmatprep.subr.mxu0 0.0
      %3143 = vmatpush1.msra.mxu0 0.0
      %3144 = vmatprep.subr.mxu0 0.0
      %3145 = vmatpush1.msra.mxu0 0.0
      %3146 = vmatprep.subr.mxu0 0.0
      %3147 = vmatpush1.msra.mxu0 0.0
      %3148 = vmatprep.subr.mxu0 %v2630
      %3149 = vmatpush1.msra.mxu0 %v2629
      %3150 = vmatprep.subr.mxu0 %v2628
      %3151 = vmatpush1.msra.mxu0 %v2627
      %3152 = vmatprep.subr.mxu0 0.0
      %3153 = vmatpush2.msra.mxu0 0.0
      %3154 = vmatprep.subr.mxu0 0.0
      %3155 = vmatpush2.msra.mxu0 0.0
      %3156 = vmatprep.subr.mxu0 0.0
      %3157 = vmatpush2.msra.mxu0 0.0
      %3158 = vmatprep.subr.mxu0 0.0
      %3159 = vmatpush2.msra.mxu0 0.0
      %3160 = vmatprep.subr.mxu0 0.0
      %3161 = vmatpush2.msra.mxu0 0.0
      %3162 = vmatprep.subr.mxu0 0.0
      %3163 = vmatpush2.msra.mxu0 0.0
      %3164 = vmatprep.subr.mxu0 0.0
      %3165 = vmatpush2.msra.mxu0 0.0
      %3166 = vmatprep.subr.mxu0 0.0
      %3167 = vmatpush2.msra.mxu0 0.0
      %3168 = vmatprep.subr.mxu0 0.0
      %3169 = vmatpush2.msra.mxu0 0.0
      %3170 = vmatprep.subr.mxu0 0.0
      %3171 = vmatpush2.msra.mxu0 0.0
      %3172 = vmatprep.subr.mxu0 0.0
      %3173 = vmatpush2.msra.mxu0 0.0
      %3174 = vmatprep.subr.mxu0 0.0
      %3175 = vmatpush2.msra.mxu0 0.0
      %3176 = vmatprep.subr.mxu0 0.0
      %3177 = vmatpush2.msra.mxu0 0.0
      %3178 = vmatprep.subr.mxu0 0.0
      %3179 = vmatpush2.msra.mxu0 0.0
      %3180 = vmatprep.subr.mxu0 0.0
      %3181 = vmatpush2.msra.mxu0 0.0
      %3182 = vmatprep.subr.mxu0 0.0
      %3183 = vmatpush2.msra.mxu0 0.0
      %3184 = vmatprep.mubr.f32.mxu0 0.0
      %3185 = vmatmul.mubr.f32.gmra.mxu0 %v3115
      %v3186 = vpop.f32.mrf.mxu0
      %v3187 = vadd.f32 %v3018, %v3186
      %v3188 = vpop.f32.mrf.mxu0
      %v3189 = vadd.f32 %v3020, %v3188
      %3190 = vmatprep.mubr.f32.mxu0 0.0
      %3191 = vmatmul.mubr.f32.gmra.mxu0 %v3118
      %v3192 = vpop.f32.mrf.mxu0
      %v3193 = vadd.f32 %v3024, %v3192
      %v3194 = vpop.f32.mrf.mxu0
      %v3195 = vadd.f32 %v3026, %v3194
      %3196 = vdwg.mxu0
      %v3197 = vadd.f32 %v3187, %v3104
      %v3198 = vadd.f32 %v3189, %v3106
      %v3199 = vadd.f32 %v3193, %v3110
      %v3200 = vadd.f32 %v3195, %v3112
      %s3201 = scalar_lea.vmem %s5, 32
      %v3202 = vld [vmem:[%s3201] sm:$0xff]
      %v3203 = vld [vmem:[%s3201 + $0x8] sm:$0xff]
      %s3204 = scalar_lea.vmem %s5, 80
      %v3205 = vld [vmem:[%s3204] sm:$0xff]
      %v3206 = vld [vmem:[%s3204 + $0x8] sm:$0xff]
      %v3208 = vsel %vm648, %v3205, 0
      %v3211 = vsel %vm648, %v3206, 0
      %3213 = vmatprep.subr.mxu0 0.0
      %3214 = vmatpush1.msra.mxu0 0.0
      %3215 = vmatprep.subr.mxu0 0.0
      %3216 = vmatpush1.msra.mxu0 0.0
      %3217 = vmatprep.subr.mxu0 0.0
      %3218 = vmatpush1.msra.mxu0 0.0
      %3219 = vmatprep.subr.mxu0 0.0
      %3220 = vmatpush1.msra.mxu0 0.0
      %3221 = vmatprep.subr.mxu0 0.0
      %3222 = vmatpush1.msra.mxu0 0.0
      %3223 = vmatprep.subr.mxu0 0.0
      %3224 = vmatpush1.msra.mxu0 0.0
      %3225 = vmatprep.subr.mxu0 0.0
      %3226 = vmatpush1.msra.mxu0 0.0
      %3227 = vmatprep.subr.mxu0 0.0
      %3228 = vmatpush1.msra.mxu0 0.0
      %3229 = vmatprep.subr.mxu0 0.0
      %3230 = vmatpush1.msra.mxu0 0.0
      %3231 = vmatprep.subr.mxu0 0.0
      %3232 = vmatpush1.msra.mxu0 0.0
      %3233 = vmatprep.subr.mxu0 0.0
      %3234 = vmatpush1.msra.mxu0 0.0
      %3235 = vmatprep.subr.mxu0 0.0
      %3236 = vmatpush1.msra.mxu0 0.0
      %3237 = vmatprep.subr.mxu0 0.0
      %3238 = vmatpush1.msra.mxu0 0.0
      %3239 = vmatprep.subr.mxu0 0.0
      %3240 = vmatpush1.msra.mxu0 0.0
      %3241 = vmatprep.subr.mxu0 %v835
      %3242 = vmatpush1.msra.mxu0 %v834
      %3243 = vmatprep.subr.mxu0 %v833
      %3244 = vmatpush1.msra.mxu0 %v832
      %3245 = vmatprep.subr.mxu0 0.0
      %3246 = vmatpush2.msra.mxu0 0.0
      %3247 = vmatprep.subr.mxu0 0.0
      %3248 = vmatpush2.msra.mxu0 0.0
      %3249 = vmatprep.subr.mxu0 0.0
      %3250 = vmatpush2.msra.mxu0 0.0
      %3251 = vmatprep.subr.mxu0 0.0
      %3252 = vmatpush2.msra.mxu0 0.0
      %3253 = vmatprep.subr.mxu0 0.0
      %3254 = vmatpush2.msra.mxu0 0.0
      %3255 = vmatprep.subr.mxu0 0.0
      %3256 = vmatpush2.msra.mxu0 0.0
      %3257 = vmatprep.subr.mxu0 0.0
      %3258 = vmatpush2.msra.mxu0 0.0
      %3259 = vmatprep.subr.mxu0 0.0
      %3260 = vmatpush2.msra.mxu0 0.0
      %3261 = vmatprep.subr.mxu0 0.0
      %3262 = vmatpush2.msra.mxu0 0.0
      %3263 = vmatprep.subr.mxu0 0.0
      %3264 = vmatpush2.msra.mxu0 0.0
      %3265 = vmatprep.subr.mxu0 0.0
      %3266 = vmatpush2.msra.mxu0 0.0
      %3267 = vmatprep.subr.mxu0 0.0
      %3268 = vmatpush2.msra.mxu0 0.0
      %3269 = vmatprep.subr.mxu0 0.0
      %3270 = vmatpush2.msra.mxu0 0.0
      %3271 = vmatprep.subr.mxu0 0.0
      %3272 = vmatpush2.msra.mxu0 0.0
      %3273 = vmatprep.subr.mxu0 0.0
      %3274 = vmatpush2.msra.mxu0 0.0
      %3275 = vmatprep.subr.mxu0 0.0
      %3276 = vmatpush2.msra.mxu0 0.0
      %3277 = vmatprep.mubr.f32.mxu0 0.0
      %3278 = vmatmul.mubr.f32.gmra.mxu0 %v3208
      %v3279 = vpop.f32.mrf.mxu0
      %v3280 = vadd.f32 0.0, %v3279
      %v3281 = vpop.f32.mrf.mxu0
      %v3282 = vadd.f32 0.0, %v3281
      %3283 = vmatprep.mubr.f32.mxu0 0.0
      %3284 = vmatmul.mubr.f32.gmra.mxu0 %v3211
      %v3285 = vpop.f32.mrf.mxu0
      %v3286 = vadd.f32 0.0, %v3285
      %v3287 = vpop.f32.mrf.mxu0
      %v3288 = vadd.f32 0.0, %v3287
      %3289 = vdwg.mxu0
      %s3290 = scalar_lea.vmem %s5, 128
      %v3291 = vld [vmem:[%s3290] sm:$0xff]
      %v3292 = vld [vmem:[%s3290 + $0x8] sm:$0xff]
      %v3294 = vsel %vm648, %v3291, 0
      %v3297 = vsel %vm648, %v3292, 0
      %3299 = vmatprep.subr.mxu0 0.0
      %3300 = vmatpush1.msra.mxu0 0.0
      %3301 = vmatprep.subr.mxu0 0.0
      %3302 = vmatpush1.msra.mxu0 0.0
      %3303 = vmatprep.subr.mxu0 0.0
      %3304 = vmatpush1.msra.mxu0 0.0
      %3305 = vmatprep.subr.mxu0 0.0
      %3306 = vmatpush1.msra.mxu0 0.0
      %3307 = vmatprep.subr.mxu0 0.0
      %3308 = vmatpush1.msra.mxu0 0.0
      %3309 = vmatprep.subr.mxu0 0.0
      %3310 = vmatpush1.msra.mxu0 0.0
      %3311 = vmatprep.subr.mxu0 0.0
      %3312 = vmatpush1.msra.mxu0 0.0
      %3313 = vmatprep.subr.mxu0 0.0
      %3314 = vmatpush1.msra.mxu0 0.0
      %3315 = vmatprep.subr.mxu0 0.0
      %3316 = vmatpush1.msra.mxu0 0.0
      %3317 = vmatprep.subr.mxu0 0.0
      %3318 = vmatpush1.msra.mxu0 0.0
      %3319 = vmatprep.subr.mxu0 0.0
      %3320 = vmatpush1.msra.mxu0 0.0
      %3321 = vmatprep.subr.mxu0 0.0
      %3322 = vmatpush1.msra.mxu0 0.0
      %3323 = vmatprep.subr.mxu0 0.0
      %3324 = vmatpush1.msra.mxu0 0.0
      %3325 = vmatprep.subr.mxu0 0.0
      %3326 = vmatpush1.msra.mxu0 0.0
      %3327 = vmatprep.subr.mxu0 %v2647
      %3328 = vmatpush1.msra.mxu0 %v2646
      %3329 = vmatprep.subr.mxu0 %v2645
      %3330 = vmatpush1.msra.mxu0 %v2644
      %3331 = vmatprep.subr.mxu0 0.0
      %3332 = vmatpush2.msra.mxu0 0.0
      %3333 = vmatprep.subr.mxu0 0.0
      %3334 = vmatpush2.msra.mxu0 0.0
      %3335 = vmatprep.subr.mxu0 0.0
      %3336 = vmatpush2.msra.mxu0 0.0
      %3337 = vmatprep.subr.mxu0 0.0
      %3338 = vmatpush2.msra.mxu0 0.0
      %3339 = vmatprep.subr.mxu0 0.0
      %3340 = vmatpush2.msra.mxu0 0.0
      %3341 = vmatprep.subr.mxu0 0.0
      %3342 = vmatpush2.msra.mxu0 0.0
      %3343 = vmatprep.subr.mxu0 0.0
      %3344 = vmatpush2.msra.mxu0 0.0
      %3345 = vmatprep.subr.mxu0 0.0
      %3346 = vmatpush2.msra.mxu0 0.0
      %3347 = vmatprep.subr.mxu0 0.0
      %3348 = vmatpush2.msra.mxu0 0.0
      %3349 = vmatprep.subr.mxu0 0.0
      %3350 = vmatpush2.msra.mxu0 0.0
      %3351 = vmatprep.subr.mxu0 0.0
      %3352 = vmatpush2.msra.mxu0 0.0
      %3353 = vmatprep.subr.mxu0 0.0
      %3354 = vmatpush2.msra.mxu0 0.0
      %3355 = vmatprep.subr.mxu0 0.0
      %3356 = vmatpush2.msra.mxu0 0.0
      %3357 = vmatprep.subr.mxu0 0.0
      %3358 = vmatpush2.msra.mxu0 0.0
      %3359 = vmatprep.subr.mxu0 0.0
      %3360 = vmatpush2.msra.mxu0 0.0
      %3361 = vmatprep.subr.mxu0 0.0
      %3362 = vmatpush2.msra.mxu0 0.0
      %3363 = vmatprep.mubr.f32.mxu0 0.0
      %3364 = vmatmul.mubr.f32.gmra.mxu0 %v3294
      %v3365 = vpop.f32.mrf.mxu0
      %v3366 = vadd.f32 0.0, %v3365
      %v3367 = vpop.f32.mrf.mxu0
      %v3368 = vadd.f32 0.0, %v3367
      %3369 = vmatprep.mubr.f32.mxu0 0.0
      %3370 = vmatmul.mubr.f32.gmra.mxu0 %v3297
      %v3371 = vpop.f32.mrf.mxu0
      %v3372 = vadd.f32 0.0, %v3371
      %v3373 = vpop.f32.mrf.mxu0
      %v3374 = vadd.f32 0.0, %v3373
      %3375 = vdwg.mxu0
      %v3377 = vsel %vm648, %v3202, 0
      %v3380 = vsel %vm648, %v3203, 0
      %3382 = vmatprep.subr.mxu0 0.0
      %3383 = vmatpush1.msra.mxu0 0.0
      %3384 = vmatprep.subr.mxu0 0.0
      %3385 = vmatpush1.msra.mxu0 0.0
      %3386 = vmatprep.subr.mxu0 0.0
      %3387 = vmatpush1.msra.mxu0 0.0
      %3388 = vmatprep.subr.mxu0 0.0
      %3389 = vmatpush1.msra.mxu0 0.0
      %3390 = vmatprep.subr.mxu0 0.0
      %3391 = vmatpush1.msra.mxu0 0.0
      %3392 = vmatprep.subr.mxu0 0.0
      %3393 = vmatpush1.msra.mxu0 0.0
      %3394 = vmatprep.subr.mxu0 0.0
      %3395 = vmatpush1.msra.mxu0 0.0
      %3396 = vmatprep.subr.mxu0 0.0
      %3397 = vmatpush1.msra.mxu0 0.0
      %3398 = vmatprep.subr.mxu0 0.0
      %3399 = vmatpush1.msra.mxu0 0.0
      %3400 = vmatprep.subr.mxu0 0.0
      %3401 = vmatpush1.msra.mxu0 0.0
      %3402 = vmatprep.subr.mxu0 0.0
      %3403 = vmatpush1.msra.mxu0 0.0
      %3404 = vmatprep.subr.mxu0 0.0
      %3405 = vmatpush1.msra.mxu0 0.0
      %3406 = vmatprep.subr.mxu0 0.0
      %3407 = vmatpush1.msra.mxu0 0.0
      %3408 = vmatprep.subr.mxu0 0.0
      %3409 = vmatpush1.msra.mxu0 0.0
      %3410 = vmatprep.subr.mxu0 %v2630
      %3411 = vmatpush1.msra.mxu0 %v2629
      %3412 = vmatprep.subr.mxu0 %v2628
      %3413 = vmatpush1.msra.mxu0 %v2627
      %3414 = vmatprep.subr.mxu0 0.0
      %3415 = vmatpush2.msra.mxu0 0.0
      %3416 = vmatprep.subr.mxu0 0.0
      %3417 = vmatpush2.msra.mxu0 0.0
      %3418 = vmatprep.subr.mxu0 0.0
      %3419 = vmatpush2.msra.mxu0 0.0
      %3420 = vmatprep.subr.mxu0 0.0
      %3421 = vmatpush2.msra.mxu0 0.0
      %3422 = vmatprep.subr.mxu0 0.0
      %3423 = vmatpush2.msra.mxu0 0.0
      %3424 = vmatprep.subr.mxu0 0.0
      %3425 = vmatpush2.msra.mxu0 0.0
      %3426 = vmatprep.subr.mxu0 0.0
      %3427 = vmatpush2.msra.mxu0 0.0
      %3428 = vmatprep.subr.mxu0 0.0
      %3429 = vmatpush2.msra.mxu0 0.0
      %3430 = vmatprep.subr.mxu0 0.0
      %3431 = vmatpush2.msra.mxu0 0.0
      %3432 = vmatprep.subr.mxu0 0.0
      %3433 = vmatpush2.msra.mxu0 0.0
      %3434 = vmatprep.subr.mxu0 0.0
      %3435 = vmatpush2.msra.mxu0 0.0
      %3436 = vmatprep.subr.mxu0 0.0
      %3437 = vmatpush2.msra.mxu0 0.0
      %3438 = vmatprep.subr.mxu0 0.0
      %3439 = vmatpush2.msra.mxu0 0.0
      %3440 = vmatprep.subr.mxu0 0.0
      %3441 = vmatpush2.msra.mxu0 0.0
      %3442 = vmatprep.subr.mxu0 0.0
      %3443 = vmatpush2.msra.mxu0 0.0
      %3444 = vmatprep.subr.mxu0 0.0
      %3445 = vmatpush2.msra.mxu0 0.0
      %3446 = vmatprep.mubr.f32.mxu0 0.0
      %3447 = vmatmul.mubr.f32.gmra.mxu0 %v3377
      %v3448 = vpop.f32.mrf.mxu0
      %v3449 = vadd.f32 %v3280, %v3448
      %v3450 = vpop.f32.mrf.mxu0
      %v3451 = vadd.f32 %v3282, %v3450
      %3452 = vmatprep.mubr.f32.mxu0 0.0
      %3453 = vmatmul.mubr.f32.gmra.mxu0 %v3380
      %v3454 = vpop.f32.mrf.mxu0
      %v3455 = vadd.f32 %v3286, %v3454
      %v3456 = vpop.f32.mrf.mxu0
      %v3457 = vadd.f32 %v3288, %v3456
      %3458 = vdwg.mxu0
      %v3459 = vadd.f32 %v3449, %v3366
      %v3460 = vadd.f32 %v3451, %v3368
      %v3461 = vadd.f32 %v3455, %v3372
      %v3462 = vadd.f32 %v3457, %v3374
      %3463 = vrot.lane.b32.xlu0 %v3459, 127
      %v3464 = vpop.permute.xlu0 %3463
      %3465 = vrot.lane.b32.xlu0 %v3461, 127
      %v3466 = vpop.permute.xlu0 %3465
      %3467 = vrot.lane.b32.xlu0 %v3460, 127
      %v3468 = vpop.permute.xlu0 %3467
      %3469 = vrot.lane.b32.xlu0 %v3462, 127
      %v3470 = vpop.permute.xlu0 %3469
      %vm3471 = vcmp.lt.s32.totalorder %v845, 127
      %v3472 = vsel %vm3471, %v3464, %v3468
      %v3473 = vsel %vm3471, %v3466, %v3470
      %v3474 = vsel %vm3471, %v3468, %v3464
      %v3475 = vsel %vm3471, %v3470, %v3466
      %s3476 = scalar_lea.vmem %s19, 5
      %v3477 = vld [vmem:[%s3476] ss:$8 sm:$0x3]
      %v3479 = vlaneseq
      %v3480 = vshrl.u32 %v3479, 7
      %v3481 = vsub.s32 0, %v3480
      %v3482 = vrot.slane %v3477, %v3481
      %v3483 = vlaneseq
      %v3484 = vshrl.u32 %v3483, 7
      %v3485 = vsub.s32 1, %v3484
      %v3486 = vrot.slane %v3477, %v3485
      %v3489 = vmul.f32 %v3472, %v3482
      %v3490 = vmul.f32 %v3474, %v3486
      %v3491 = vmul.f32 %v3473, %v3482
      %v3492 = vmul.f32 %v3475, %v3486
      %v3493 = vadd.f32 %v2935, %v3197
      %v3494 = vadd.f32 %v2936, %v3198
      %v3495 = vadd.f32 %v2937, %v3199
      %v3496 = vadd.f32 %v2938, %v3200
      %v3497 = vadd.f32 %v3493, %v3489
      %v3498 = vadd.f32 %v3494, %v3490
      %v3499 = vadd.f32 %v3495, %v3491
      %v3500 = vadd.f32 %v3496, %v3492
      %v3501 = vld [vmem:[%s6] sm:$0xff]
      %v3502 = vld [vmem:[%s6 + $0x8] sm:$0xff]
      %3504 = vset.pattern.permute.xlu0 0
      %3505 = vperm.xlu0 %3504, %v3501
      %v3506 = vpop.permute.xlu0 %3505
      %3509 = vset.pattern.permute.xlu0 0
      %3510 = vperm.xlu0 %3509, %v3502
      %v3511 = vpop.permute.xlu0 %3510
      %v3513 = vadd.f32 %v3497, %v3506
      %v3514 = vadd.f32 %v3498, %v3506
      %v3515 = vadd.f32 %v3499, %v3511
      %v3516 = vadd.f32 %v3500, %v3511
      %v3517 = vld [vmem:[%s3] sm:$0xff]
      %v3518 = vld [vmem:[%s3 + $0x8] sm:$0xff]
      %3520 = vset.pattern.permute.xlu0 0
      %3521 = vperm.xlu0 %3520, %v3517
      %v3522 = vpop.permute.xlu0 %3521
      %3525 = vset.pattern.permute.xlu0 0
      %3526 = vperm.xlu0 %3525, %v3518
      %v3527 = vpop.permute.xlu0 %3526
      %v3529 = vmul.f32 %v3522, %v832
      %v3530 = vmul.f32 %v3522, %v833
      %v3531 = vmul.f32 %v3527, %v834
      %v3532 = vmul.f32 %v3527, %v835
      %v3533 = vld [vmem:[%s4] sm:$0xff]
      %v3534 = vld [vmem:[%s4 + $0x8] sm:$0xff]
      %3536 = vset.pattern.permute.xlu0 0
      %3537 = vperm.xlu0 %3536, %v3533
      %v3538 = vpop.permute.xlu0 %3537
      %3541 = vset.pattern.permute.xlu0 0
      %3542 = vperm.xlu0 %3541, %v3534
      %v3543 = vpop.permute.xlu0 %3542
      %v3545 = vadd.f32 %v3529, %v3538
      %v3546 = vadd.f32 %v3530, %v3538
      %v3547 = vadd.f32 %v3531, %v3543
      %v3548 = vadd.f32 %v3532, %v3543
      %v3549 = vld [vmem:[%s11] sm:$0xff]
      %v3550 = vld [vmem:[%s11 + $0x8] sm:$0xff]
      %v3551 = vld [vmem:[%s12] sm:$0xff]
      %v3552 = vld [vmem:[%s12 + $0x8] sm:$0xff]
      %3554 = vset.pattern.permute.xlu0 0
      %3555 = vperm.xlu0 %3554, %v3551
      %v3556 = vpop.permute.xlu0 %3555
      %3559 = vset.pattern.permute.xlu0 0
      %3560 = vperm.xlu0 %3559, %v3552
      %v3561 = vpop.permute.xlu0 %3560
      %vm3563 = vcmask 523264
      %v3565 = vsel %vm3563, %v3549, 0
      %v3568 = vsel %vm3563, %v3550, 0
      %3570 = vmatprep.subr.mxu0 0.0
      %3571 = vmatpush1.msra.mxu0 0.0
      %3572 = vmatprep.subr.mxu0 0.0
      %3573 = vmatpush1.msra.mxu0 0.0
      %3574 = vmatprep.subr.mxu0 0.0
      %3575 = vmatpush1.msra.mxu0 0.0
      %3576 = vmatprep.subr.mxu0 0.0
      %3577 = vmatpush1.msra.mxu0 0.0
      %3578 = vmatprep.subr.mxu0 0.0
      %3579 = vmatpush1.msra.mxu0 0.0
      %3580 = vmatprep.subr.mxu0 0.0
      %3581 = vmatpush1.msra.mxu0 0.0
      %3582 = vmatprep.subr.mxu0 0.0
      %3583 = vmatpush1.msra.mxu0 0.0
      %3584 = vmatprep.subr.mxu0 0.0
      %3585 = vmatpush1.msra.mxu0 0.0
      %3586 = vmatprep.subr.mxu0 %v1997
      %3587 = vmatpush1.msra.mxu0 %v1996
      %3588 = vmatprep.subr.mxu0 %v1995
      %3589 = vmatpush1.msra.mxu0 %v1994
      %3590 = vmatprep.subr.mxu0 %v2614
      %3591 = vmatpush1.msra.mxu0 %v2613
      %3592 = vmatprep.subr.mxu0 %v2612
      %3593 = vmatpush1.msra.mxu0 %v2611
      %3594 = vmatprep.subr.mxu0 %v3516
      %3595 = vmatpush1.msra.mxu0 %v3515
      %3596 = vmatprep.subr.mxu0 %v3514
      %3597 = vmatpush1.msra.mxu0 %v3513
      %3598 = vmatprep.subr.mxu0 %v3548
      %3599 = vmatpush1.msra.mxu0 %v3547
      %3600 = vmatprep.subr.mxu0 %v3546
      %3601 = vmatpush1.msra.mxu0 %v3545
      %3602 = vmatprep.subr.mxu0 0.0
      %3603 = vmatpush2.msra.mxu0 0.0
      %3604 = vmatprep.subr.mxu0 0.0
      %3605 = vmatpush2.msra.mxu0 0.0
      %3606 = vmatprep.subr.mxu0 0.0
      %3607 = vmatpush2.msra.mxu0 0.0
      %3608 = vmatprep.subr.mxu0 0.0
      %3609 = vmatpush2.msra.mxu0 0.0
      %3610 = vmatprep.subr.mxu0 0.0
      %3611 = vmatpush2.msra.mxu0 0.0
      %3612 = vmatprep.subr.mxu0 0.0
      %3613 = vmatpush2.msra.mxu0 0.0
      %3614 = vmatprep.subr.mxu0 0.0
      %3615 = vmatpush2.msra.mxu0 0.0
      %3616 = vmatprep.subr.mxu0 0.0
      %3617 = vmatpush2.msra.mxu0 0.0
      %3618 = vmatprep.subr.mxu0 0.0
      %3619 = vmatpush2.msra.mxu0 0.0
      %3620 = vmatprep.subr.mxu0 0.0
      %3621 = vmatpush2.msra.mxu0 0.0
      %3622 = vmatprep.subr.mxu0 0.0
      %3623 = vmatpush2.msra.mxu0 0.0
      %3624 = vmatprep.subr.mxu0 0.0
      %3625 = vmatpush2.msra.mxu0 0.0
      %3626 = vmatprep.subr.mxu0 0.0
      %3627 = vmatpush2.msra.mxu0 0.0
      %3628 = vmatprep.subr.mxu0 0.0
      %3629 = vmatpush2.msra.mxu0 0.0
      %3630 = vmatprep.subr.mxu0 0.0
      %3631 = vmatpush2.msra.mxu0 0.0
      %3632 = vmatprep.subr.mxu0 0.0
      %3633 = vmatpush2.msra.mxu0 0.0
      %3634 = vmatprep.mubr.f32.mxu0 0.0
      %3635 = vmatmul.mubr.f32.gmra.mxu0 %v3565
      %v3636 = vpop.f32.mrf.mxu0
      %v3637 = vadd.f32 %v3556, %v3636
      %v3638 = vpop.f32.mrf.mxu0
      %v3639 = vadd.f32 %v3556, %v3638
      %3640 = vmatprep.mubr.f32.mxu0 0.0
      %3641 = vmatmul.mubr.f32.gmra.mxu0 %v3568
      %v3642 = vpop.f32.mrf.mxu0
      %v3643 = vadd.f32 %v3561, %v3642
      %v3644 = vpop.f32.mrf.mxu0
      %v3645 = vadd.f32 %v3561, %v3644
      %3646 = vdwg.mxu0
      %v3647 = vadd.f32 %v3637, %v3643
      %v3648 = vrot.slane %v3647, 4
      %v3649 = vadd.f32 %v3647, %v3648
      %v3650 = vrot.slane %v3649, 2
      %v3651 = vadd.f32 %v3649, %v3650
      %v3652 = vrot.slane %v3651, 1
      %v3653 = vadd.f32 %v3651, %v3652
      %v3654 = vadd.f32 %v3639, %v3645
      %v3655 = vrot.slane %v3654, 4
      %v3656 = vadd.f32 %v3654, %v3655
      %v3657 = vrot.slane %v3656, 2
      %v3658 = vadd.f32 %v3656, %v3657
      %v3659 = vrot.slane %v3658, 1
      %v3660 = vadd.f32 %v3658, %v3659
      %v3661 = vmul.f32 %v3653, 0.0625
      %v3662 = vmul.f32 %v3660, 0.0625
      %v3663 = vmax.f32 %v3637, %v3643
      %v3664 = vrot.slane %v3663, 4
      %v3665 = vmax.f32 %v3663, %v3664
      %v3666 = vrot.slane %v3665, 2
      %v3667 = vmax.f32 %v3665, %v3666
      %v3668 = vrot.slane %v3667, 1
      %v3669 = vmax.f32 %v3667, %v3668
      %v3670 = vmax.f32 %v3639, %v3645
      %v3671 = vrot.slane %v3670, 4
      %v3672 = vmax.f32 %v3670, %v3671
      %v3673 = vrot.slane %v3672, 2
      %v3674 = vmax.f32 %v3672, %v3673
      %v3675 = vrot.slane %v3674, 1
      %v3676 = vmax.f32 %v3674, %v3675
      %vm3677 = vcmask 1040384
      %v3678 = vsel %vm3677, %v3661, %v3669
      %v3679 = vsel %vm3677, %v3662, %v3676
      %3680 = vrot.lane.b32.xlu0 %v3678, 48
      %v3681 = vpop.permute.xlu0 %3680
      %3682 = vrot.lane.b32.xlu0 %v3679, 48
      %v3683 = vpop.permute.xlu0 %3682
      %v3684 = vsel %vm906, %v3681, %v3683
      %v3685 = vsel %vm906, %v3683, %v3681
      %s3686 = scalar_lea.vmem %s19, 54
      %v3687 = vld [vmem:[%s3686] ss:$8 sm:$0x3]
      %v3689 = vlaneseq
      %v3690 = vshrl.u32 %v3689, 7
      %v3691 = vsub.s32 0, %v3690
      %v3692 = vrot.slane %v3687, %v3691
      %v3693 = vlaneseq
      %v3694 = vshrl.u32 %v3693, 7
      %v3695 = vsub.s32 1, %v3694
      %v3696 = vrot.slane %v3687, %v3695
      %v3699 = vmul.f32 %v3685, %v3692
      %v3700 = vmul.f32 %v3684, %v3696
      %3701 = vrot.lane.b32.xlu0 %v3678, 32
      %v3702 = vpop.permute.xlu0 %3701
      %3703 = vrot.lane.b32.xlu0 %v3679, 32
      %v3704 = vpop.permute.xlu0 %3703
      %v3705 = vsel %vm966, %v3702, %v3704
      %v3706 = vsel %vm966, %v3704, %v3702
      %s3707 = scalar_lea.vmem %s19, 55
      %v3708 = vld [vmem:[%s3707] ss:$8 sm:$0x3]
      %v3710 = vlaneseq
      %v3711 = vshrl.u32 %v3710, 7
      %v3712 = vsub.s32 0, %v3711
      %v3713 = vrot.slane %v3708, %v3712
      %v3714 = vlaneseq
      %v3715 = vshrl.u32 %v3714, 7
      %v3716 = vsub.s32 1, %v3715
      %v3717 = vrot.slane %v3708, %v3716
      %v3720 = vmul.f32 %v3706, %v3713
      %v3721 = vmul.f32 %v3705, %v3717
      %3722 = vrot.lane.b32.xlu0 %v3678, 16
      %v3723 = vpop.permute.xlu0 %3722
      %3724 = vrot.lane.b32.xlu0 %v3679, 16
      %v3725 = vpop.permute.xlu0 %3724
      %v3726 = vsel %vm846, %v3723, %v3725
      %v3727 = vsel %vm846, %v3725, %v3723
      %s3728 = scalar_lea.vmem %s19, 64
      %v3729 = vld [vmem:[%s3728] ss:$8 sm:$0x3]
      %v3731 = vlaneseq
      %v3732 = vshrl.u32 %v3731, 7
      %v3733 = vsub.s32 0, %v3732
      %v3734 = vrot.slane %v3729, %v3733
      %v3735 = vlaneseq
      %v3736 = vshrl.u32 %v3735, 7
      %v3737 = vsub.s32 1, %v3736
      %v3738 = vrot.slane %v3729, %v3737
      %v3741 = vmul.f32 %v3727, %v3734
      %v3742 = vmul.f32 %v3726, %v3738
      %3743 = vrot.lane.b32.xlu0 %v3678, 112
      %v3744 = vpop.permute.xlu0 %3743
      %3745 = vrot.lane.b32.xlu0 %v3679, 112
      %v3746 = vpop.permute.xlu0 %3745
      %v3747 = vsel %vm996, %v3744, %v3746
      %v3748 = vsel %vm996, %v3746, %v3744
      %s3749 = scalar_lea.vmem %s19, 66
      %v3750 = vld [vmem:[%s3749] ss:$8 sm:$0x3]
      %v3752 = vlaneseq
      %v3753 = vshrl.u32 %v3752, 7
      %v3754 = vsub.s32 0, %v3753
      %v3755 = vrot.slane %v3750, %v3754
      %v3756 = vlaneseq
      %v3757 = vshrl.u32 %v3756, 7
      %v3758 = vsub.s32 1, %v3757
      %v3759 = vrot.slane %v3750, %v3758
      %v3762 = vmul.f32 %v3747, %v3755
      %v3763 = vmul.f32 %v3748, %v3759
      %3764 = vrot.lane.b32.xlu0 %v3678, 96
      %v3765 = vpop.permute.xlu0 %3764
      %3766 = vrot.lane.b32.xlu0 %v3679, 96
      %v3767 = vpop.permute.xlu0 %3766
      %v3768 = vsel %vm876, %v3765, %v3767
      %v3769 = vsel %vm876, %v3767, %v3765
      %s3770 = scalar_lea.vmem %s19, 67
      %v3771 = vld [vmem:[%s3770] ss:$8 sm:$0x3]
      %v3773 = vlaneseq
      %v3774 = vshrl.u32 %v3773, 7
      %v3775 = vsub.s32 0, %v3774
      %v3776 = vrot.slane %v3771, %v3775
      %v3777 = vlaneseq
      %v3778 = vshrl.u32 %v3777, 7
      %v3779 = vsub.s32 1, %v3778
      %v3780 = vrot.slane %v3771, %v3779
      %v3783 = vmul.f32 %v3768, %v3776
      %v3784 = vmul.f32 %v3769, %v3780
      %3785 = vrot.lane.b32.xlu0 %v3678, 80
      %v3786 = vpop.permute.xlu0 %3785
      %3787 = vrot.lane.b32.xlu0 %v3679, 80
      %v3788 = vpop.permute.xlu0 %3787
      %v3789 = vsel %vm936, %v3786, %v3788
      %v3790 = vsel %vm936, %v3788, %v3786
      %s3791 = scalar_lea.vmem %s19, 68
      %v3792 = vld [vmem:[%s3791] ss:$8 sm:$0x3]
      %v3794 = vlaneseq
      %v3795 = vshrl.u32 %v3794, 7
      %v3796 = vsub.s32 0, %v3795
      %v3797 = vrot.slane %v3792, %v3796
      %v3798 = vlaneseq
      %v3799 = vshrl.u32 %v3798, 7
      %v3800 = vsub.s32 1, %v3799
      %v3801 = vrot.slane %v3792, %v3800
      %v3804 = vmul.f32 %v3789, %v3797
      %v3805 = vmul.f32 %v3790, %v3801
      %v3808 = vrot.slane %v3720, 6
      %v3809 = vrot.slane %v3721, 6
      %v3814 = vrot.slane %v3741, 4
      %v3815 = vrot.slane %v3742, 4
      %v3820 = vrot.slane %v3678, 2
      %v3821 = vrot.slane %v3679, 2
      %v3826 = vrot.slane %v3783, 6
      %v3827 = vrot.slane %v3784, 6
      %v3832 = vrot.slane %v3804, 4
      %v3833 = vrot.slane %v3805, 4
      %vm3836 = vcmask 1041408
      %v3837 = vsel %vm3836, %v3699, %v3808
      %v3838 = vsel %vm3836, %v3700, %v3809
      %vm3839 = vcmask 1043456
      %v3840 = vsel %vm3839, %v3837, %v3814
      %v3841 = vsel %vm3839, %v3838, %v3815
      %vm3842 = vcmask 1045504
      %v3843 = vsel %vm3842, %v3840, %v3820
      %v3844 = vsel %vm3842, %v3841, %v3821
      %v3845 = vsel %vm3836, %v3762, %v3826
      %v3846 = vsel %vm3836, %v3763, %v3827
      %v3847 = vsel %vm3839, %v3845, %v3832
      %v3848 = vsel %vm3839, %v3846, %v3833
      %v3849 = vld [vmem:[%s13] sm:$0xff]
      %v3850 = vld [vmem:[%s13 + $0x8] sm:$0xff]
      %v3851 = vld [vmem:[%s13 + $0x10] sm:$0xff]
      %v3852 = vld [vmem:[%s13 + $0x18] sm:$0xf]
      %vm3853 = vcmask 113664
      %v3855 = vsel %vm3853, %v3849, 0
      %v3858 = vsel %vm3853, %v3850, 0
      %v3861 = vsel %vm3853, %v3851, 0
      %v3864 = vsel %vm3853, %v3852, 0
      %v3867 = vsel %vm3842, %v3847, 0
      %v3870 = vsel %vm3842, %v3848, 0
      %3872 = vmatprep.subr.mxu0 0.0
      %3873 = vmatpush1.msra.mxu0 0.0
      %3874 = vmatprep.subr.mxu0 0.0
      %3875 = vmatpush1.msra.mxu0 0.0
      %3876 = vmatprep.subr.mxu0 0.0
      %3877 = vmatpush1.msra.mxu0 0.0
      %3878 = vmatprep.subr.mxu0 0.0
      %3879 = vmatpush1.msra.mxu0 0.0
      %3880 = vmatprep.subr.mxu0 0.0
      %3881 = vmatpush1.msra.mxu0 0.0
      %3882 = vmatprep.subr.mxu0 0.0
      %3883 = vmatpush1.msra.mxu0 0.0
      %3884 = vmatprep.subr.mxu0 0.0
      %3885 = vmatpush1.msra.mxu0 0.0
      %3886 = vmatprep.subr.mxu0 0.0
      %3887 = vmatpush1.msra.mxu0 0.0
      %3888 = vmatprep.subr.mxu0 0.0
      %3889 = vmatpush1.msra.mxu0 0.0
      %3890 = vmatprep.subr.mxu0 0.0
      %3891 = vmatpush1.msra.mxu0 0.0
      %3892 = vmatprep.subr.mxu0 0.0
      %3893 = vmatpush1.msra.mxu0 0.0
      %3894 = vmatprep.subr.mxu0 0.0
      %3895 = vmatpush1.msra.mxu0 0.0
      %3896 = vmatprep.subr.mxu0 0.0
      %3897 = vmatpush1.msra.mxu0 0.0
      %3898 = vmatprep.subr.mxu0 0.0
      %3899 = vmatpush1.msra.mxu0 0.0
      %3900 = vmatprep.subr.mxu0 %v3870
      %3901 = vmatpush1.msra.mxu0 %v3867
      %3902 = vmatprep.subr.mxu0 %v3844
      %3903 = vmatpush1.msra.mxu0 %v3843
      %3904 = vmatprep.subr.mxu0 0.0
      %3905 = vmatpush2.msra.mxu0 0.0
      %3906 = vmatprep.subr.mxu0 0.0
      %3907 = vmatpush2.msra.mxu0 0.0
      %3908 = vmatprep.subr.mxu0 0.0
      %3909 = vmatpush2.msra.mxu0 0.0
      %3910 = vmatprep.subr.mxu0 0.0
      %3911 = vmatpush2.msra.mxu0 0.0
      %3912 = vmatprep.subr.mxu0 0.0
      %3913 = vmatpush2.msra.mxu0 0.0
      %3914 = vmatprep.subr.mxu0 0.0
      %3915 = vmatpush2.msra.mxu0 0.0
      %3916 = vmatprep.subr.mxu0 0.0
      %3917 = vmatpush2.msra.mxu0 0.0
      %3918 = vmatprep.subr.mxu0 0.0
      %3919 = vmatpush2.msra.mxu0 0.0
      %3920 = vmatprep.subr.mxu0 0.0
      %3921 = vmatpush2.msra.mxu0 0.0
      %3922 = vmatprep.subr.mxu0 0.0
      %3923 = vmatpush2.msra.mxu0 0.0
      %3924 = vmatprep.subr.mxu0 0.0
      %3925 = vmatpush2.msra.mxu0 0.0
      %3926 = vmatprep.subr.mxu0 0.0
      %3927 = vmatpush2.msra.mxu0 0.0
      %3928 = vmatprep.subr.mxu0 0.0
      %3929 = vmatpush2.msra.mxu0 0.0
      %3930 = vmatprep.subr.mxu0 0.0
      %3931 = vmatpush2.msra.mxu0 0.0
      %3932 = vmatprep.subr.mxu0 0.0
      %3933 = vmatpush2.msra.mxu0 0.0
      %3934 = vmatprep.subr.mxu0 0.0
      %3935 = vmatpush2.msra.mxu0 0.0
      %3936 = vmatprep.mubr.f32.mxu0 0.0
      %3937 = vmatmul.mubr.f32.gmra.mxu0 %v3855
      %v3938 = vpop.f32.mrf.mxu0
      %v3939 = vadd.f32 0.0, %v3938
      %v3940 = vpop.f32.mrf.mxu0
      %v3941 = vadd.f32 0.0, %v3940
      %3942 = vmatprep.mubr.f32.mxu0 0.0
      %3943 = vmatmul.mubr.f32.gmra.mxu0 %v3858
      %v3944 = vpop.f32.mrf.mxu0
      %v3945 = vadd.f32 0.0, %v3944
      %v3946 = vpop.f32.mrf.mxu0
      %v3947 = vadd.f32 0.0, %v3946
      %3948 = vmatprep.mubr.f32.mxu0 0.0
      %3949 = vmatmul.mubr.f32.gmra.mxu0 %v3861
      %v3950 = vpop.f32.mrf.mxu0
      %v3951 = vadd.f32 0.0, %v3950
      %v3952 = vpop.f32.mrf.mxu0
      %v3953 = vadd.f32 0.0, %v3952
      %3954 = vmatprep.mubr.f32.mxu0 0.0
      %3955 = vmatmul.mubr.f32.gmra.mxu0 %v3864
      %v3956 = vpop.f32.mrf.mxu0
      %v3957 = vadd.f32 0.0, %v3956
      %v3958 = vpop.f32.mrf.mxu0
      %v3959 = vadd.f32 0.0, %v3958
      %3960 = vdwg.mxu0
      %3961 = vrot.lane.b32.xlu0 %v3939, 3
      %v3962 = vpop.permute.xlu0 %3961
      %3963 = vrot.lane.b32.xlu0 %v3941, 3
      %v3964 = vpop.permute.xlu0 %3963
      %v3965 = vsel %vm1414, %v3962, %v3964
      %v3966 = vsel %vm1414, %v3964, %v3962
      %s3967 = scalar_lea.vmem %s19, 69
      %v3968 = vld [vmem:[%s3967] ss:$8 sm:$0x3]
      %v3970 = vlaneseq
      %v3971 = vshrl.u32 %v3970, 7
      %v3972 = vsub.s32 0, %v3971
      %v3973 = vrot.slane %v3968, %v3972
      %v3974 = vlaneseq
      %v3975 = vshrl.u32 %v3974, 7
      %v3976 = vsub.s32 1, %v3975
      %v3977 = vrot.slane %v3968, %v3976
      %v3980 = vmul.f32 %v3966, %v3973
      %v3981 = vmul.f32 %v3965, %v3977
      %v3984 = vrot.slane %v3939, 4
      %v3985 = vrot.slane %v3941, 4
      %3988 = vrot.lane.b32.xlu0 %v3984, 2
      %v3989 = vpop.permute.xlu0 %3988
      %3990 = vrot.lane.b32.xlu0 %v3985, 2
      %v3991 = vpop.permute.xlu0 %3990
      %v3992 = vsel %vm2273, %v3989, %v3991
      %v3993 = vsel %vm2273, %v3991, %v3989
      %s3994 = scalar_lea.vmem %s19, 70
      %v3995 = vld [vmem:[%s3994] ss:$8 sm:$0x3]
      %v3997 = vlaneseq
      %v3998 = vshrl.u32 %v3997, 7
      %v3999 = vsub.s32 0, %v3998
      %v4000 = vrot.slane %v3995, %v3999
      %v4001 = vlaneseq
      %v4002 = vshrl.u32 %v4001, 7
      %v4003 = vsub.s32 1, %v4002
      %v4004 = vrot.slane %v3995, %v4003
      %v4007 = vmul.f32 %v3993, %v4000
      %v4008 = vmul.f32 %v3992, %v4004
      %4009 = vrot.lane.b32.xlu0 %v3945, 1
      %v4010 = vpop.permute.xlu0 %4009
      %4011 = vrot.lane.b32.xlu0 %v3947, 1
      %v4012 = vpop.permute.xlu0 %4011
      %v4013 = vsel %vm2917, %v4010, %v4012
      %v4014 = vsel %vm2917, %v4012, %v4010
      %s4015 = scalar_lea.vmem %s19, 71
      %v4016 = vld [vmem:[%s4015] ss:$8 sm:$0x3]
      %v4018 = vlaneseq
      %v4019 = vshrl.u32 %v4018, 7
      %v4020 = vsub.s32 0, %v4019
      %v4021 = vrot.slane %v4016, %v4020
      %v4022 = vlaneseq
      %v4023 = vshrl.u32 %v4022, 7
      %v4024 = vsub.s32 1, %v4023
      %v4025 = vrot.slane %v4016, %v4024
      %v4028 = vmul.f32 %v4014, %v4021
      %v4029 = vmul.f32 %v4013, %v4025
      %4030 = vrot.lane.b32.xlu0 %v3951, 127
      %v4031 = vpop.permute.xlu0 %4030
      %4032 = vrot.lane.b32.xlu0 %v3953, 127
      %v4033 = vpop.permute.xlu0 %4032
      %v4034 = vsel %vm3471, %v4031, %v4033
      %v4035 = vsel %vm3471, %v4033, %v4031
      %s4036 = scalar_lea.vmem %s19, 81
      %v4037 = vld [vmem:[%s4036] ss:$8 sm:$0x3]
      %v4039 = vlaneseq
      %v4040 = vshrl.u32 %v4039, 7
      %v4041 = vsub.s32 0, %v4040
      %v4042 = vrot.slane %v4037, %v4041
      %v4043 = vlaneseq
      %v4044 = vshrl.u32 %v4043, 7
      %v4045 = vsub.s32 1, %v4044
      %v4046 = vrot.slane %v4037, %v4045
      %v4049 = vmul.f32 %v4034, %v4042
      %v4050 = vmul.f32 %v4035, %v4046
      %v4053 = vrot.slane %v3951, 4
      %v4054 = vrot.slane %v3953, 4
      %4057 = vrot.lane.b32.xlu0 %v4053, 126
      %v4058 = vpop.permute.xlu0 %4057
      %4059 = vrot.lane.b32.xlu0 %v4054, 126
      %v4060 = vpop.permute.xlu0 %4059
      %v4061 = vsel %vm2455, %v4058, %v4060
      %v4062 = vsel %vm2455, %v4060, %v4058
      %s4063 = scalar_lea.vmem %s19, 82
      %v4064 = vld [vmem:[%s4063] ss:$8 sm:$0x3]
      %v4066 = vlaneseq
      %v4067 = vshrl.u32 %v4066, 7
      %v4068 = vsub.s32 0, %v4067
      %v4069 = vrot.slane %v4064, %v4068
      %v4070 = vlaneseq
      %v4071 = vshrl.u32 %v4070, 7
      %v4072 = vsub.s32 1, %v4071
      %v4073 = vrot.slane %v4064, %v4072
      %v4076 = vmul.f32 %v4061, %v4069
      %v4077 = vmul.f32 %v4062, %v4073
      %4078 = vrot.lane.b32.xlu0 %v3957, 125
      %v4079 = vpop.permute.xlu0 %4078
      %4080 = vrot.lane.b32.xlu0 %v3959, 125
      %v4081 = vpop.permute.xlu0 %4080
      %v4082 = vsel %vm1660, %v4079, %v4081
      %v4083 = vsel %vm1660, %v4081, %v4079
      %s4084 = scalar_lea.vmem %s19, 83
      %v4085 = vld [vmem:[%s4084] ss:$8 sm:$0x3]
      %v4087 = vlaneseq
      %v4088 = vshrl.u32 %v4087, 7
      %v4089 = vsub.s32 0, %v4088
      %v4090 = vrot.slane %v4085, %v4089
      %v4091 = vlaneseq
      %v4092 = vshrl.u32 %v4091, 7
      %v4093 = vsub.s32 1, %v4092
      %v4094 = vrot.slane %v4085, %v4093
      %v4097 = vmul.f32 %v4082, %v4090
      %v4098 = vmul.f32 %v4083, %v4094
      %v4099 = vadd.f32 %v3980, %v4007
      %v4100 = vadd.f32 %v3981, %v4008
      %v4103 = vrot.slane %v3945, 4
      %v4104 = vrot.slane %v3947, 4
      %v4107 = vadd.f32 %v4028, %v4103
      %v4108 = vadd.f32 %v4029, %v4104
      %v4109 = vadd.f32 %v4049, %v4076
      %v4110 = vadd.f32 %v4050, %v4077
      %v4111 = vadd.f32 %v4099, %v4107
      %v4112 = vadd.f32 %v4100, %v4108
      %v4113 = vadd.f32 %v4109, %v4097
      %v4114 = vadd.f32 %v4110, %v4098
      %v4115 = vadd.f32 %v4111, %v4113
      %v4116 = vadd.f32 %v4112, %v4114
      %v4117 = vld [vmem:[%s14] sm:$0xf]
      %4119 = vset.pattern.permute.xlu0 0
      %4120 = vperm.xlu0 %4119, %v4117
      %v4121 = vpop.permute.xlu0 %4120
      %v4123 = vadd.f32 %v4115, %v4121
      %v4124 = vadd.f32 %v4116, %v4121
      %v4125 = vxor.u32 %v4123, 2147483648
      %v4126 = vxor.u32 %v4124, 2147483648
      %v4127 = vmul.f32 %v4125, 1.442695
      %v4128 = vpow.pop %v4127
      %v4129 = vmul.f32 %v4126, 1.442695
      %v4130 = vpow.pop %v4129
      %v4131 = vadd.f32 %v4128, 1.0
      %v4132 = vadd.f32 %v4130, 1.0
      %v4133 = vrcp.pop %v4131
      %v4134 = vmul.f32 1.0, %v4133
      %v4135 = vrcp.pop %v4132
      %v4136 = vmul.f32 1.0, %v4135
      %v4137 = vlaneseq
      %v4138 = vshrl.u32 %v4137, 7
      %v4139 = vsub.s32 0, %v4138
      %v4140 = vrot.slane %v4134, %v4139
      %v4141 = vlaneseq
      %v4142 = vshrl.u32 %v4141, 7
      %v4143 = vsub.s32 0, %v4142
      %v4144 = vrot.slane %v4136, %v4143
      %v4145 = vmul.f32 %v3545, %v4140
      %v4146 = vmul.f32 %v3546, %v4144
      %v4147 = vmul.f32 %v3547, %v4140
      %v4148 = vmul.f32 %v3548, %v4144
      %v4149 = vlaneseq
      %v4150 = vshrl.u32 %v4149, 7
      %v4151 = vsub.s32 1, %v4150
      %v4152 = vrot.slane %v4134, %v4151
      %v4153 = vlaneseq
      %v4154 = vshrl.u32 %v4153, 7
      %v4155 = vsub.s32 1, %v4154
      %v4156 = vrot.slane %v4136, %v4155
      %v4157 = vmul.f32 %v3513, %v4152
      %v4158 = vmul.f32 %v3514, %v4156
      %v4159 = vmul.f32 %v3515, %v4152
      %v4160 = vmul.f32 %v3516, %v4156
      %v4161 = vadd.f32 %v4145, %v4157
      %v4162 = vadd.f32 %v4146, %v4158
      %v4163 = vadd.f32 %v4147, %v4159
      %v4164 = vadd.f32 %v4148, %v4160
      %v4165 = vlaneseq
      %v4166 = vshrl.u32 %v4165, 7
      %v4167 = vsub.s32 2, %v4166
      %v4168 = vrot.slane %v4134, %v4167
      %v4169 = vlaneseq
      %v4170 = vshrl.u32 %v4169, 7
      %v4171 = vsub.s32 2, %v4170
      %v4172 = vrot.slane %v4136, %v4171
      %v4173 = vmul.f32 %v2611, %v4168
      %v4174 = vmul.f32 %v2612, %v4172
      %v4175 = vmul.f32 %v2613, %v4168
      %v4176 = vmul.f32 %v2614, %v4172
      %v4177 = vadd.f32 %v4161, %v4173
      %v4178 = vadd.f32 %v4162, %v4174
      %v4179 = vadd.f32 %v4163, %v4175
      %v4180 = vadd.f32 %v4164, %v4176
      %v4181 = vlaneseq
      %v4182 = vshrl.u32 %v4181, 7
      %v4183 = vsub.s32 3, %v4182
      %v4184 = vrot.slane %v4134, %v4183
      %v4185 = vlaneseq
      %v4186 = vshrl.u32 %v4185, 7
      %v4187 = vsub.s32 3, %v4186
      %v4188 = vrot.slane %v4136, %v4187
      %v4189 = vmul.f32 %v1994, %v4184
      %v4190 = vmul.f32 %v1995, %v4188
      %v4191 = vmul.f32 %v1996, %v4184
      %v4192 = vmul.f32 %v1997, %v4188
      %v4193 = vadd.f32 %v4177, %v4189
      %v4194 = vadd.f32 %v4178, %v4190
      %v4195 = vadd.f32 %v4179, %v4191
      %v4196 = vadd.f32 %v4180, %v4192
      %v4197 = vld [vmem:[%s15] sm:$0xff]
      %v4198 = vld [vmem:[%s15 + $0x8] sm:$0xff]
      %v4199 = vld [vmem:[%s16] sm:$0xff]
      %v4200 = vld [vmem:[%s16 + $0x8] sm:$0xff]
      %4202 = vset.pattern.permute.xlu0 0
      %4203 = vperm.xlu0 %4202, %v4199
      %v4204 = vpop.permute.xlu0 %4203
      %4207 = vset.pattern.permute.xlu0 0
      %4208 = vperm.xlu0 %4207, %v4200
      %v4209 = vpop.permute.xlu0 %4208
      %v4212 = vsel %vm648, %v4197, 0
      %v4215 = vsel %vm648, %v4198, 0
      %4217 = vmatprep.subr.mxu0 0.0
      %4218 = vmatpush1.msra.mxu0 0.0
      %4219 = vmatprep.subr.mxu0 0.0
      %4220 = vmatpush1.msra.mxu0 0.0
      %4221 = vmatprep.subr.mxu0 0.0
      %4222 = vmatpush1.msra.mxu0 0.0
      %4223 = vmatprep.subr.mxu0 0.0
      %4224 = vmatpush1.msra.mxu0 0.0
      %4225 = vmatprep.subr.mxu0 0.0
      %4226 = vmatpush1.msra.mxu0 0.0
      %4227 = vmatprep.subr.mxu0 0.0
      %4228 = vmatpush1.msra.mxu0 0.0
      %4229 = vmatprep.subr.mxu0 0.0
      %4230 = vmatpush1.msra.mxu0 0.0
      %4231 = vmatprep.subr.mxu0 0.0
      %4232 = vmatpush1.msra.mxu0 0.0
      %4233 = vmatprep.subr.mxu0 0.0
      %4234 = vmatpush1.msra.mxu0 0.0
      %4235 = vmatprep.subr.mxu0 0.0
      %4236 = vmatpush1.msra.mxu0 0.0
      %4237 = vmatprep.subr.mxu0 0.0
      %4238 = vmatpush1.msra.mxu0 0.0
      %4239 = vmatprep.subr.mxu0 0.0
      %4240 = vmatpush1.msra.mxu0 0.0
      %4241 = vmatprep.subr.mxu0 0.0
      %4242 = vmatpush1.msra.mxu0 0.0
      %4243 = vmatprep.subr.mxu0 0.0
      %4244 = vmatpush1.msra.mxu0 0.0
      %4245 = vmatprep.subr.mxu0 %v4196
      %4246 = vmatpush1.msra.mxu0 %v4195
      %4247 = vmatprep.subr.mxu0 %v4194
      %4248 = vmatpush1.msra.mxu0 %v4193
      %4249 = vmatprep.subr.mxu0 0.0
      %4250 = vmatpush2.msra.mxu0 0.0
      %4251 = vmatprep.subr.mxu0 0.0
      %4252 = vmatpush2.msra.mxu0 0.0
      %4253 = vmatprep.subr.mxu0 0.0
      %4254 = vmatpush2.msra.mxu0 0.0
      %4255 = vmatprep.subr.mxu0 0.0
      %4256 = vmatpush2.msra.mxu0 0.0
      %4257 = vmatprep.subr.mxu0 0.0
      %4258 = vmatpush2.msra.mxu0 0.0
      %4259 = vmatprep.subr.mxu0 0.0
      %4260 = vmatpush2.msra.mxu0 0.0
      %4261 = vmatprep.subr.mxu0 0.0
      %4262 = vmatpush2.msra.mxu0 0.0
      %4263 = vmatprep.subr.mxu0 0.0
      %4264 = vmatpush2.msra.mxu0 0.0
      %4265 = vmatprep.subr.mxu0 0.0
      %4266 = vmatpush2.msra.mxu0 0.0
      %4267 = vmatprep.subr.mxu0 0.0
      %4268 = vmatpush2.msra.mxu0 0.0
      %4269 = vmatprep.subr.mxu0 0.0
      %4270 = vmatpush2.msra.mxu0 0.0
      %4271 = vmatprep.subr.mxu0 0.0
      %4272 = vmatpush2.msra.mxu0 0.0
      %4273 = vmatprep.subr.mxu0 0.0
      %4274 = vmatpush2.msra.mxu0 0.0
      %4275 = vmatprep.subr.mxu0 0.0
      %4276 = vmatpush2.msra.mxu0 0.0
      %4277 = vmatprep.subr.mxu0 0.0
      %4278 = vmatpush2.msra.mxu0 0.0
      %4279 = vmatprep.subr.mxu0 0.0
      %4280 = vmatpush2.msra.mxu0 0.0
      %4281 = vmatprep.mubr.f32.mxu0 0.0
      %4282 = vmatmul.mubr.f32.gmra.mxu0 %v4212
      %v4283 = vpop.f32.mrf.mxu0
      %v4284 = vadd.f32 %v4204, %v4283
      %v4285 = vpop.f32.mrf.mxu0
      %v4286 = vadd.f32 %v4204, %v4285
      %4287 = vmatprep.mubr.f32.mxu0 0.0
      %4288 = vmatmul.mubr.f32.gmra.mxu0 %v4215
      %v4289 = vpop.f32.mrf.mxu0
      %v4290 = vadd.f32 %v4209, %v4289
      %v4291 = vpop.f32.mrf.mxu0
      %v4292 = vadd.f32 %v4209, %v4291
      %4293 = vdwg.mxu0
      %v4294 = vmul.f32 %v832, %v4284
      %v4295 = vmul.f32 %v833, %v4286
      %v4296 = vmul.f32 %v834, %v4290
      %v4297 = vmul.f32 %v835, %v4292
      %v4298 = vld [vmem:[%s17] sm:$0xff]
      %v4299 = vld [vmem:[%s17 + $0x8] sm:$0xff]
      %v4300 = vld [vmem:[%s18] sm:$0xff]
      %v4301 = vld [vmem:[%s18 + $0x8] sm:$0xff]
      %4303 = vset.pattern.permute.xlu0 0
      %4304 = vperm.xlu0 %4303, %v4300
      %v4305 = vpop.permute.xlu0 %4304
      %4308 = vset.pattern.permute.xlu0 0
      %4309 = vperm.xlu0 %4308, %v4301
      %v4310 = vpop.permute.xlu0 %4309
      %v4313 = vsel %vm648, %v4298, 0
      %v4316 = vsel %vm648, %v4299, 0
      %4318 = vmatprep.subr.mxu0 0.0
      %4319 = vmatpush1.msra.mxu0 0.0
      %4320 = vmatprep.subr.mxu0 0.0
      %4321 = vmatpush1.msra.mxu0 0.0
      %4322 = vmatprep.subr.mxu0 0.0
      %4323 = vmatpush1.msra.mxu0 0.0
      %4324 = vmatprep.subr.mxu0 0.0
      %4325 = vmatpush1.msra.mxu0 0.0
      %4326 = vmatprep.subr.mxu0 0.0
      %4327 = vmatpush1.msra.mxu0 0.0
      %4328 = vmatprep.subr.mxu0 0.0
      %4329 = vmatpush1.msra.mxu0 0.0
      %4330 = vmatprep.subr.mxu0 0.0
      %4331 = vmatpush1.msra.mxu0 0.0
      %4332 = vmatprep.subr.mxu0 0.0
      %4333 = vmatpush1.msra.mxu0 0.0
      %4334 = vmatprep.subr.mxu0 0.0
      %4335 = vmatpush1.msra.mxu0 0.0
      %4336 = vmatprep.subr.mxu0 0.0
      %4337 = vmatpush1.msra.mxu0 0.0
      %4338 = vmatprep.subr.mxu0 0.0
      %4339 = vmatpush1.msra.mxu0 0.0
      %4340 = vmatprep.subr.mxu0 0.0
      %4341 = vmatpush1.msra.mxu0 0.0
      %4342 = vmatprep.subr.mxu0 0.0
      %4343 = vmatpush1.msra.mxu0 0.0
      %4344 = vmatprep.subr.mxu0 0.0
      %4345 = vmatpush1.msra.mxu0 0.0
      %4346 = vmatprep.subr.mxu0 %v4297
      %4347 = vmatpush1.msra.mxu0 %v4296
      %4348 = vmatprep.subr.mxu0 %v4295
      %4349 = vmatpush1.msra.mxu0 %v4294
      %4350 = vmatprep.subr.mxu0 0.0
      %4351 = vmatpush2.msra.mxu0 0.0
      %4352 = vmatprep.subr.mxu0 0.0
      %4353 = vmatpush2.msra.mxu0 0.0
      %4354 = vmatprep.subr.mxu0 0.0
      %4355 = vmatpush2.msra.mxu0 0.0
      %4356 = vmatprep.subr.mxu0 0.0
      %4357 = vmatpush2.msra.mxu0 0.0
      %4358 = vmatprep.subr.mxu0 0.0
      %4359 = vmatpush2.msra.mxu0 0.0
      %4360 = vmatprep.subr.mxu0 0.0
      %4361 = vmatpush2.msra.mxu0 0.0
      %4362 = vmatprep.subr.mxu0 0.0
      %4363 = vmatpush2.msra.mxu0 0.0
      %4364 = vmatprep.subr.mxu0 0.0
      %4365 = vmatpush2.msra.mxu0 0.0
      %4366 = vmatprep.subr.mxu0 0.0
      %4367 = vmatpush2.msra.mxu0 0.0
      %4368 = vmatprep.subr.mxu0 0.0
      %4369 = vmatpush2.msra.mxu0 0.0
      %4370 = vmatprep.subr.mxu0 0.0
      %4371 = vmatpush2.msra.mxu0 0.0
      %4372 = vmatprep.subr.mxu0 0.0
      %4373 = vmatpush2.msra.mxu0 0.0
      %4374 = vmatprep.subr.mxu0 0.0
      %4375 = vmatpush2.msra.mxu0 0.0
      %4376 = vmatprep.subr.mxu0 0.0
      %4377 = vmatpush2.msra.mxu0 0.0
      %4378 = vmatprep.subr.mxu0 0.0
      %4379 = vmatpush2.msra.mxu0 0.0
      %4380 = vmatprep.subr.mxu0 0.0
      %4381 = vmatpush2.msra.mxu0 0.0
      %4382 = vmatprep.mubr.f32.mxu0 0.0
      %4383 = vmatmul.mubr.f32.gmra.mxu0 %v4313
      %v4384 = vpop.f32.mrf.mxu0
      %v4385 = vadd.f32 %v4305, %v4384
      %v4386 = vpop.f32.mrf.mxu0
      %v4387 = vadd.f32 %v4305, %v4386
      %4388 = vmatprep.mubr.f32.mxu0 0.0
      %4389 = vmatmul.mubr.f32.gmra.mxu0 %v4316
      %v4390 = vpop.f32.mrf.mxu0
      %v4391 = vadd.f32 %v4310, %v4390
      %v4392 = vpop.f32.mrf.mxu0
      %v4393 = vadd.f32 %v4310, %v4392
      %4394 = vdwg.mxu0
      %4395 = vst [vmem:[%s629] sm:$0xff] %v4385
      %4396 = vst [vmem:[%s629 + $0x8] sm:$0xff] %v4387
      %4397 = vst [vmem:[%s629 + $0x10] sm:$0xff] %v4391
      %4398 = vst [vmem:[%s629 + $0x18] sm:$0xff] %v4393
      %p4399 = scmp.lt.s32.totalorder %s31, 1
      %s4400 = scalar_select %p4399, %s31, 1
      %s4401 = smul.addr %s4400, 4
      %s4402 = smul.addr %s4401, 8
      %s4403 = scalar_lea.vmem %s20, %s4402
      // Predicated region
      $region101: #{cisb_forward.1} parent=99 // pred_check
        %p4404 = pneg %p474
      $region102: #{cisb_forward.1} parent=99 // pred_check_branch
        %4406 = sbr.rel (%p4404) target = $region104
      $region103: #{cisb_forward.1} parent=99 // pred_region
        _
      $region104: #{cisb_forward.1} parent=99 // pred_fallthru
        _
    $region100: #{cisb_forward.1} parent=5 // pred_fallthru
      _
    %p4407 = scmp.le.s32.totalorder 2, %s26
    // Predicated region
    $region105: #{cisb_forward.1} parent=5 // pred_check
      %p4408 = pneg %p4407
    $region106: #{cisb_forward.1} parent=5 // pred_check_branch
      %4410 = sbr.rel (%p4408) target = $region108
    $region107: #{cisb_forward.1} parent=5 // pred_region
      %s4411 = ssub.s32 %s26, 2
      // Predicated region
      $region109: #{cisb_forward.1} parent=107 // pred_check
        %p4412 = pneg %p480
      $region110: #{cisb_forward.1} parent=107 // pred_check_branch
        %4414 = sbr.rel (%p4412) target = $region112
      $region111: #{cisb_forward.1} parent=107 // pred_region
        %p4415 = scmp.lt.s32.totalorder %s32, 1
        %s4416 = scalar_select %p4415, %s32, 1
        %s4417 = smul.addr %s4416, 4
        %s4418 = smul.addr %s4417, 8
        %s4419 = scalar_lea.vmem %s20, %s4418
      $region112: #{cisb_forward.1} parent=107 // pred_fallthru
        _
    $region108: #{cisb_forward.1} parent=5 // pred_fallthru
      _
  $region6: #{cisb_forward.1} parent=0 // loop_footer
    %s30 = sadd.s32 1, %s26
  $region7: #{cisb_forward.1} parent=0 // loop_footer_branch
    %25 = sbr.rel target = $region3
  $region8: #{cisb_forward.1} parent=0 // loop_exit
    _

</llo_original>
